<compile_context>
chip_gen: v7x
topology: tpu7x:2x2x1
jax: 0.10.0
libtpu: 0.0.40
codegen_flags: <defaults>
</compile_context>

<pallas_src>
import functools
import math

import jax
import jax.numpy as jnp
from jax.experimental import pallas as pl
from jax.experimental.pallas import tpu as pltpu


# Sized against v7x (64 MiB physical VMEM/TC); tiles below keep the
# double-buffered working set well under this.
_VMEM_LIMIT = 32 * 1024 * 1024
_K_UNTILED = 2048  # reduction dims <= this are kept whole (no k grid axis)


def _pick_tile(dim, target, align):
    """Largest tile <= target that divides dim (stepping by align), else full dim."""
    if dim <= target:
        return dim
    t = (target // align) * align
    while t > 0 and dim % t != 0:
        t -= align
    return t if t > 0 else dim


def _apply_act(y, activation):
    if activation == "gelu":
        # TODO(synk): HF BertIntermediate defaults to exact erf-GELU; this is the
        # tanh ("gelu_new") approximation (~1e-3 logit-level difference).
        y = 0.5 * y * (1.0 + jnp.tanh(
            0.7978845608028654 * (y + 0.044715 * y * y * y)))
    elif activation == "tanh":
        y = jnp.tanh(y)
    return y


def _layernorm(y, g, be, eps):
    mean = jnp.mean(y, axis=-1, keepdims=True)
    cen = y - mean
    var = jnp.mean(cen * cen, axis=-1, keepdims=True)
    return cen * jax.lax.rsqrt(var + eps) * g + be


# ----------------------------------------------------------------------------
# Dense (+ optional activation epilogue)
# ----------------------------------------------------------------------------
def _dense_kernel(x_ref, w_ref, b_ref, o_ref, *, activation):
    # K un-tiled: single matmul, no accumulator scratch needed.
    y = jnp.dot(x_ref[...], w_ref[...],
                preferred_element_type=jnp.float32) + b_ref[...]
    o_ref[...] = _apply_act(y, activation).astype(o_ref.dtype)


def _dense_acc_kernel(x_ref, w_ref, b_ref, o_ref, acc_ref, *, activation):
    @pl.when(pl.program_id(2) == 0)
    def _init():
        acc_ref[...] = jnp.zeros_like(acc_ref)

    acc_ref[...] += jnp.dot(x_ref[...], w_ref[...],
                            preferred_element_type=jnp.float32)

    @pl.when(pl.program_id(2) == pl.num_programs(2) - 1)
    def _fin():
        o_ref[...] = _apply_act(acc_ref[...] + b_ref[...],
                                activation).astype(o_ref.dtype)


def dense_act(x, w, b, activation="none", out_dtype=jnp.bfloat16,
              tm=512, tn=768, tk=1536):
    """y = act(x @ w + b).  x:(M,K) bf16, w:(K,N) bf16, b:(N,) f32 -> (M,N)."""
    M, K = x.shape
    N = w.shape[1]
    tm = _pick_tile(M, tm, 8)
    tn = _pick_tile(N, tn, 128)
    b2 = b.reshape(1, N).astype(jnp.float32)

    if K <= _K_UNTILED:
        return pl.pallas_call(
            functools.partial(_dense_kernel, activation=activation),
            out_shape=jax.ShapeDtypeStruct((M, N), out_dtype),
            grid=(M // tm, N // tn),
            in_specs=[
                pl.BlockSpec((tm, K), lambda i, j: (i, 0)),
                pl.BlockSpec((K, tn), lambda i, j: (0, j)),
                pl.BlockSpec((1, tn), lambda i, j: (0, j)),
            ],
            out_specs=pl.BlockSpec((tm, tn), lambda i, j: (i, j)),
            compiler_params=pltpu.CompilerParams(
                dimension_semantics=("parallel", "parallel"),
                vmem_limit_bytes=_VMEM_LIMIT),
        )(x, w, b2)

    tk = _pick_tile(K, tk, 128)
    return pl.pallas_call(
        functools.partial(_dense_acc_kernel, activation=activation),
        out_shape=jax.ShapeDtypeStruct((M, N), out_dtype),
        grid=(M // tm, N // tn, K // tk),
        in_specs=[
            pl.BlockSpec((tm, tk), lambda i, j, k: (i, k)),
            pl.BlockSpec((tk, tn), lambda i, j, k: (k, j)),
            pl.BlockSpec((1, tn), lambda i, j, k: (0, j)),
        ],
        out_specs=pl.BlockSpec((tm, tn), lambda i, j, k: (i, j)),
        scratch_shapes=[pltpu.VMEM((tm, tn), jnp.float32)],
        compiler_params=pltpu.CompilerParams(
            dimension_semantics=("parallel", "parallel", "arbitrary"),
            vmem_limit_bytes=_VMEM_LIMIT),
    )(x, w, b2)


# ----------------------------------------------------------------------------
# Dense with fused (residual add + LayerNorm) epilogue
# ----------------------------------------------------------------------------
def _dense_ln_kernel(x_ref, w_ref, b_ref, r_ref, g_ref, be_ref, o_ref, *, eps):
    y = (jnp.dot(x_ref[...], w_ref[...], preferred_element_type=jnp.float32)
         + b_ref[...] + r_ref[...].astype(jnp.float32))
    o_ref[...] = _layernorm(y, g_ref[...], be_ref[...], eps).astype(o_ref.dtype)


def _dense_ln_acc_kernel(x_ref, w_ref, b_ref, r_ref, g_ref, be_ref, o_ref,
                         acc_ref, *, eps):
    @pl.when(pl.program_id(1) == 0)
    def _init():
        acc_ref[...] = jnp.zeros_like(acc_ref)

    acc_ref[...] += jnp.dot(x_ref[...], w_ref[...],
                            preferred_element_type=jnp.float32)

    @pl.when(pl.program_id(1) == pl.num_programs(1) - 1)
    def _fin():
        y = acc_ref[...] + b_ref[...] + r_ref[...].astype(jnp.float32)
        o_ref[...] = _layernorm(y, g_ref[...], be_ref[...], eps
                                ).astype(o_ref.dtype)


def dense_add_layernorm(x, w, b, residual, gamma, beta, eps=1e-12,
                        tm=512, tk=1536):
    """LayerNorm((x @ w + b) + residual).  Output dim N kept whole so row
    statistics are exact (N = 768 in real BERT -> fits VMEM comfortably)."""
    M, K = x.shape
    N = w.shape[1]
    tm = _pick_tile(M, tm, 8)
    b2 = b.reshape(1, N).astype(jnp.float32)
    g2 = gamma.reshape(1, N).astype(jnp.float32)
    be2 = beta.reshape(1, N).astype(jnp.float32)

    if K <= _K_UNTILED:
        return pl.pallas_call(
            functools.partial(_dense_ln_kernel, eps=eps),
            out_shape=jax.ShapeDtypeStruct((M, N), jnp.bfloat16),
            grid=(M // tm,),
            in_specs=[
                pl.BlockSpec((tm, K), lambda i: (i, 0)),
                pl.BlockSpec((K, N), lambda i: (0, 0)),
                pl.BlockSpec((1, N), lambda i: (0, 0)),
                pl.BlockSpec((tm, N), lambda i: (i, 0)),
                pl.BlockSpec((1, N), lambda i: (0, 0)),
                pl.BlockSpec((1, N), lambda i: (0, 0)),
            ],
            out_specs=pl.BlockSpec((tm, N), lambda i: (i, 0)),
            compiler_params=pltpu.CompilerParams(
                dimension_semantics=("parallel",),
                vmem_limit_bytes=_VMEM_LIMIT),
        )(x, w, b2, residual, g2, be2)

    tk = _pick_tile(K, tk, 128)
    return pl.pallas_call(
        functools.partial(_dense_ln_acc_kernel, eps=eps),
        out_shape=jax.ShapeDtypeStruct((M, N), jnp.bfloat16),
        grid=(M // tm, K // tk),
        in_specs=[
            pl.BlockSpec((tm, tk), lambda i, k: (i, k)),
            pl.BlockSpec((tk, N), lambda i, k: (k, 0)),
            pl.BlockSpec((1, N), lambda i, k: (0, 0)),
            pl.BlockSpec((tm, N), lambda i, k: (i, 0)),
            pl.BlockSpec((1, N), lambda i, k: (0, 0)),
            pl.BlockSpec((1, N), lambda i, k: (0, 0)),
        ],
        out_specs=pl.BlockSpec((tm, N), lambda i, k: (i, 0)),
        scratch_shapes=[pltpu.VMEM((tm, N), jnp.float32)],
        compiler_params=pltpu.CompilerParams(
            dimension_semantics=("parallel", "arbitrary"),
            vmem_limit_bytes=_VMEM_LIMIT),
    )(x, w, b2, residual, g2, be2)


# ----------------------------------------------------------------------------
# Fused QKV-projection + self-attention.  grid = (batch, head).
#   x        : (B, S, H)            bf16   (resident in VMEM across the head axis)
#   qkv_w    : (num_heads, H, 3d)   bf16   per-head [Wq_h | Wk_h | Wv_h]
#   qkv_b    : (num_heads, 1, 3d)   f32
#   mask     : (B, 1, S)            f32    additive key mask
#   out ctx  : (B, num_heads, S, d) bf16
# ----------------------------------------------------------------------------
def _fused_qkv_attn_kernel(x_ref, w_ref, b_ref, mask_ref, o_ref,
                           *, head_dim, scale):
    d = head_dim
    # per-head QKV projection (never round-trips HBM)
    qkv = jnp.dot(x_ref[...], w_ref[...],
                  preferred_element_type=jnp.float32) + b_ref[...]   # (S, 3d) f32
    q = (qkv[:, :d] * scale).astype(jnp.bfloat16)
    k = qkv[:, d:2 * d].astype(jnp.bfloat16)
    v = qkv[:, 2 * d:].astype(jnp.bfloat16)
    # q @ k^T without an explicit transpose (contract last dims on the MXU)
    s = jax.lax.dot_general(q, k, (((1,), (1,)), ((), ())),
                            preferred_element_type=jnp.float32)      # (S, S)
    s = s + mask_ref[...]                           # broadcast over query rows
    s = s - jnp.max(s, axis=-1, keepdims=True)
    p = jnp.exp(s)
    p = p * pl.reciprocal(jnp.sum(p, axis=-1, keepdims=True), approx=True)
    o_ref[...] = jnp.dot(p.astype(jnp.bfloat16), v,
                         preferred_element_type=jnp.float32).astype(o_ref.dtype)


def fused_qkv_attention(x, qkv_w, qkv_b, mask_bias, num_heads):
    """x:(B,S,H) bf16 -> context (B,S,H) bf16."""
    B, S, H = x.shape
    d = H // num_heads
    scale = 1.0 / math.sqrt(d)
    ctx = pl.pallas_call(
        functools.partial(_fused_qkv_attn_kernel, head_dim=d, scale=scale),
        out_shape=jax.ShapeDtypeStruct((B, num_heads, S, d), jnp.bfloat16),
        grid=(B, num_heads),
        in_specs=[
            pl.BlockSpec((None, S, H), lambda b, h: (b, 0, 0)),
            pl.BlockSpec((None, H, 3 * d), lambda b, h: (h, 0, 0)),
            pl.BlockSpec((None, 1, 3 * d), lambda b, h: (h, 0, 0)),
            pl.BlockSpec((None, 1, S), lambda b, h: (b, 0, 0)),
        ],
        out_specs=pl.BlockSpec((None, None, S, d), lambda b, h: (b, h, 0, 0)),
        compiler_params=pltpu.CompilerParams(
            dimension_semantics=("parallel", "parallel"),
            vmem_limit_bytes=_VMEM_LIMIT),
    )(x, qkv_w, qkv_b, mask_bias)
    # (B, nh, S, d) -> (B, S, H): one XLA relayout, ~3x cheaper than the QKV
    # HBM round-trip that the fusion removed.
    return jnp.transpose(ctx, (0, 2, 1, 3)).reshape(B, S, H)


# ----------------------------------------------------------------------------
# Fused pooler (Linear + tanh on [CLS]) + classifier head in one tiny kernel
# ----------------------------------------------------------------------------
def _pool_cls_kernel(cls_ref, wp_ref, bp_ref, wf_ref, bf_ref, o_ref):
    pooled = jnp.tanh(jnp.dot(cls_ref[...], wp_ref[...],
                              preferred_element_type=jnp.float32) + bp_ref[...])
    # dropout(p=0.1) of the reference module is identity at inference time.
    o_ref[...] = (jnp.dot(pooled.astype(jnp.bfloat16), wf_ref[...],
                          preferred_element_type=jnp.float32)
                  + bf_ref[...]).astype(o_ref.dtype)


def pooler_classifier(cls_tok, wp, bp, wf, bf):
    B, H = cls_tok.shape
    L = wf.shape[1]
    return pl.pallas_call(
        _pool_cls_kernel,
        out_shape=jax.ShapeDtypeStruct((B, L), jnp.float32),
        grid=(1,),
        in_specs=[
            pl.BlockSpec((B, H), lambda i: (0, 0)),
            pl.BlockSpec((H, H), lambda i: (0, 0)),
            pl.BlockSpec((1, H), lambda i: (0, 0)),
            pl.BlockSpec((H, L), lambda i: (0, 0)),
            pl.BlockSpec((1, L), lambda i: (0, 0)),
        ],
        out_specs=pl.BlockSpec((B, L), lambda i: (0, 0)),
        compiler_params=pltpu.CompilerParams(vmem_limit_bytes=_VMEM_LIMIT),
    )(cls_tok, wp, bp.reshape(1, H).astype(jnp.float32), wf,
      bf.reshape(1, L).astype(jnp.float32))


# ----------------------------------------------------------------------------
# Model glue (plain JAX): reshapes / parameter plumbing only
# ----------------------------------------------------------------------------
def encoder_layer(h, mask_bias, p, num_heads):
    B, S, H = h.shape
    x2 = h.reshape(B * S, H)

    # fused QKV projection + self-attention
    ctx = fused_qkv_attention(h, p["qkv_w"], p["qkv_b"], mask_bias, num_heads)

    # attention output projection + residual + LayerNorm (fused epilogue)
    h1 = dense_add_layernorm(ctx.reshape(B * S, H), p["ao_w"], p["ao_b"],
                             x2, p["ln1_g"], p["ln1_b"])

    # FFN: gelu dense, then output dense + residual + LayerNorm (fused epilogue)
    inter = dense_act(h1, p["i_w"], p["i_b"], activation="gelu")
    h2 = dense_add_layernorm(inter, p["o_w"], p["o_b"],
                             h1, p["ln2_g"], p["ln2_b"])
    return h2.reshape(B, S, H)


def bert_back_forward(hidden_q, q_scale, q_zero_point, attention_mask, params,
                      *, num_heads):
    # torch.dequantize equivalent (per-tensor affine dequant) -> bf16 activations
    h = ((hidden_q.astype(jnp.float32) - q_zero_point) * q_scale
         ).astype(jnp.bfloat16)                                     # (B, S, H)

    # extended_attention_mask = (1 - mask)[:, None, None, :] * -10000
    mask_bias = ((1.0 - attention_mask.astype(jnp.float32)) * -10000.0)[:, None, :]

    for layer_params in params["layers"]:
        h = encoder_layer(h, mask_bias, layer_params, num_heads)

    # pooler(Linear+tanh on [CLS]) + dropout(identity) + classifier, fused
    cls = h[:, 0, :]                                                # (B, H)
    return pooler_classifier(cls, params["pooler_w"], params["pooler_b"],
                             params["fc_w"], params["fc_b"])        # (B, labels) f32


# ----------------------------------------------------------------------------
# Deterministic parameter init (weights bf16, biases/LN in f32)
# ----------------------------------------------------------------------------
def init_params(key, num_layers, hidden, intermediate, label_nums, num_heads):
    d = hidden // num_heads

    def nrm(k, shape):
        return (0.02 * jax.random.normal(k, shape, jnp.float32)
                ).astype(jnp.bfloat16)

    layers = []
    for li in range(num_layers):
        k = jax.random.fold_in(key, li)
        ks = jax.random.split(k, 6)
        wq = nrm(ks[0], (hidden, hidden)).reshape(hidden, num_heads, d)
        wk = nrm(ks[1], (hidden, hidden)).reshape(hidden, num_heads, d)
        wv = nrm(ks[2], (hidden, hidden)).reshape(hidden, num_heads, d)
        # per-head [Wq_h | Wk_h | Wv_h] slabs, laid out head-major: (nh, H, 3d)
        qkv_w = jnp.transpose(jnp.concatenate([wq, wk, wv], axis=-1), (1, 0, 2))
        layers.append(dict(
            qkv_w=qkv_w,
            qkv_b=jnp.zeros((num_heads, 1, 3 * d), jnp.float32),
            ao_w=nrm(ks[3], (hidden, hidden)),
            ao_b=jnp.zeros((hidden,), jnp.float32),
            ln1_g=jnp.ones((hidden,), jnp.float32),
            ln1_b=jnp.zeros((hidden,), jnp.float32),
            i_w=nrm(ks[4], (hidden, intermediate)),
            i_b=jnp.zeros((intermediate,), jnp.float32),
            o_w=nrm(ks[5], (intermediate, hidden)),
            o_b=jnp.zeros((hidden,), jnp.float32),
            ln2_g=jnp.ones((hidden,), jnp.float32),
            ln2_b=jnp.zeros((hidden,), jnp.float32),
        ))
    kp, kf = jax.random.split(jax.random.fold_in(key, 1000))
    return dict(
        layers=layers,
        pooler_w=nrm(kp, (hidden, hidden)),
        pooler_b=jnp.zeros((hidden,), jnp.float32),
        fc_w=nrm(kf, (hidden, label_nums)),
        fc_b=jnp.zeros((label_nums,), jnp.float32),
    )


# ----------------------------------------------------------------------------
if __name__ == "__main__":
    # Small but (8,128)-aligned config; split_num=10 -> 2 remaining encoder layers.
    B, S, H = 2, 128, 128
    NUM_HEADS = 2
    INTER = 512
    LABELS = 8
    NUM_LAYERS = 2

    key = jax.random.PRNGKey(0)
    k_param, k_hidden, k_mask = jax.random.split(key, 3)

    params = init_params(k_param, NUM_LAYERS, H, INTER, LABELS, NUM_HEADS)

    # Synthetic quantized hidden states (uint8-style values stored as int32)
    # + affine quantization params; mimics torch.dequantize on the input.
    hidden_q = jax.random.randint(k_hidden, (B, S, H), 0, 256, dtype=jnp.int32)
    q_scale = jnp.float32(0.05)
    q_zero_point = jnp.float32(128.0)

    # attention mask of ones/zeros, shape (B, S)
    attention_mask = (jax.random.uniform(k_mask, (B, S)) > 0.2).astype(jnp.float32)
    attention_mask = attention_mask.at[:, 0].set(1.0)  # keep [CLS] visible

    fwd = jax.jit(functools.partial(bert_back_forward, num_heads=NUM_HEADS))
    prediction = fwd(hidden_q, q_scale, q_zero_point, attention_mask, params)
    jax.block_until_ready(prediction)
    assert prediction.shape == (B, LABELS)
    print("KERNEL_OK")
</pallas_src>

<mosaic_0001>
module attributes {stable_mosaic.version = 11 : i64} {
  func.func @_fused_qkv_attn_kernel(%arg0: i32, %arg1: i32, %arg2: memref<1x128x128xbf16, #tpu.memory_space<vmem>>, %arg3: memref<1x128x192xbf16, #tpu.memory_space<vmem>>, %arg4: memref<1x1x192xf32, #tpu.memory_space<vmem>>, %arg5: memref<1x1x128xf32, #tpu.memory_space<vmem>>, %arg6: memref<1x1x128x64xbf16, #tpu.memory_space<vmem>>) attributes {dimension_semantics = [#tpu.dimension_semantics<parallel>, #tpu.dimension_semantics<parallel>], iteration_bounds = array<i64: 2, 2>, scalar_prefetch = 0 : i64, scratch_operands = 0 : i64, tpu.core_type = #tpu.core_type<tc>, window_params = [{transform_indices = @transform_0, window_bounds = array<i64: 1, 128, 128>}, {transform_indices = @transform_1, window_bounds = array<i64: 1, 128, 192>}, {transform_indices = @transform_2, window_bounds = array<i64: 1, 1, 192>}, {transform_indices = @transform_3, window_bounds = array<i64: 1, 1, 128>}, {transform_indices = @transform_4, window_bounds = array<i64: 1, 1, 128, 64>}]} {
    %c0 = arith.constant 0 : index
    %c0_0 = arith.constant 0 : index
    %c0_1 = arith.constant 0 : index
    %0 = vector.load %arg2[%c0, %c0_0, %c0_1] : memref<1x128x128xbf16, #tpu.memory_space<vmem>>, vector<1x128x128xbf16>
    %1 = vector.shape_cast %0 : vector<1x128x128xbf16> to vector<128x128xbf16>
    %c0_2 = arith.constant 0 : index
    %c0_3 = arith.constant 0 : index
    %c0_4 = arith.constant 0 : index
    %2 = vector.load %arg3[%c0_2, %c0_3, %c0_4] : memref<1x128x192xbf16, #tpu.memory_space<vmem>>, vector<1x128x192xbf16>
    %3 = vector.shape_cast %2 : vector<1x128x192xbf16> to vector<128x192xbf16>
    %cst = arith.constant dense<0.000000e+00> : vector<128x192xf32>
    %4 = tpu.matmul %1, %3, %cst {dimension_numbers = #tpu.dot_dimension_numbers<[1], [0], [0], [1], [0, 0, 1, 1], [], []>} : vector<128x128xbf16>, vector<128x192xbf16>, vector<128x192xf32> -> vector<128x192xf32>
    %c0_5 = arith.constant 0 : index
    %c0_6 = arith.constant 0 : index
    %c0_7 = arith.constant 0 : index
    %5 = vector.load %arg4[%c0_5, %c0_6, %c0_7] : memref<1x1x192xf32, #tpu.memory_space<vmem>>, vector<1x1x192xf32>
    %6 = vector.shape_cast %5 : vector<1x1x192xf32> to vector<1x192xf32>
    %7 = vector.broadcast %6 : vector<1x192xf32> to vector<128x192xf32>
    %8 = arith.addf %4, %7 : vector<128x192xf32>
    %9 = vector.extract_strided_slice %8 {offsets = [0, 0], sizes = [128, 64], strides = [1, 1]} : vector<128x192xf32> to vector<128x64xf32>
    %cst_8 = arith.constant 1.250000e-01 : f32
    %10 = vector.broadcast %cst_8 : f32 to vector<128x64xf32>
    %11 = arith.mulf %9, %10 : vector<128x64xf32>
    %12 = arith.truncf %11 : vector<128x64xf32> to vector<128x64xbf16>
    %13 = vector.extract_strided_slice %8 {offsets = [0, 64], sizes = [128, 64], strides = [1, 1]} : vector<128x192xf32> to vector<128x64xf32>
    %14 = arith.truncf %13 : vector<128x64xf32> to vector<128x64xbf16>
    %15 = vector.extract_strided_slice %8 {offsets = [0, 128], sizes = [128, 64], strides = [1, 1]} : vector<128x192xf32> to vector<128x64xf32>
    %16 = arith.truncf %15 : vector<128x64xf32> to vector<128x64xbf16>
    %cst_9 = arith.constant dense<0.000000e+00> : vector<128x128xf32>
    %17 = tpu.matmul %12, %14, %cst_9 {dimension_numbers = #tpu.dot_dimension_numbers<[1], [1], [0], [0], [0, 0, 1, 0], [], []>} : vector<128x64xbf16>, vector<128x64xbf16>, vector<128x128xf32> -> vector<128x128xf32>
    %c0_10 = arith.constant 0 : index
    %c0_11 = arith.constant 0 : index
    %c0_12 = arith.constant 0 : index
    %18 = vector.load %arg5[%c0_10, %c0_11, %c0_12] : memref<1x1x128xf32, #tpu.memory_space<vmem>>, vector<1x1x128xf32>
    %19 = vector.shape_cast %18 : vector<1x1x128xf32> to vector<1x128xf32>
    %20 = vector.broadcast %19 : vector<1x128xf32> to vector<128x128xf32>
    %21 = arith.addf %17, %20 : vector<128x128xf32>
    %cst_13 = arith.constant dense<0xFF800000> : vector<128xf32>
    %22 = vector.multi_reduction <maximumf>, %21, %cst_13 [1] : vector<128x128xf32> to vector<128xf32>
    %23 = vector.shape_cast %22 : vector<128xf32> to vector<128x1xf32>
    %24 = vector.broadcast %23 : vector<128x1xf32> to vector<128x128xf32>
    %25 = arith.subf %21, %24 : vector<128x128xf32>
    %26 = math.exp %25 : vector<128x128xf32>
    %cst_14 = arith.constant dense<0.000000e+00> : vector<128xf32>
    %27 = vector.multi_reduction <add>, %26, %cst_14 [1] : vector<128x128xf32> to vector<128xf32>
    %28 = vector.shape_cast %27 : vector<128xf32> to vector<128x1xf32>
    %29 = tpu.reciprocal %28 {approx = true} : vector<128x1xf32> -> vector<128x1xf32>
    %30 = vector.broadcast %29 : vector<128x1xf32> to vector<128x128xf32>
    %31 = arith.mulf %26, %30 : vector<128x128xf32>
    %32 = arith.truncf %31 : vector<128x128xf32> to vector<128x128xbf16>
    %cst_15 = arith.constant dense<0.000000e+00> : vector<128x64xf32>
    %33 = tpu.matmul %32, %16, %cst_15 {dimension_numbers = #tpu.dot_dimension_numbers<[1], [0], [0], [1], [0, 0, 1, 1], [], []>} : vector<128x128xbf16>, vector<128x64xbf16>, vector<128x64xf32> -> vector<128x64xf32>
    %34 = arith.truncf %33 : vector<128x64xf32> to vector<128x64xbf16>
    %c0_16 = arith.constant 0 : index
    %c0_17 = arith.constant 0 : index
    %c0_18 = arith.constant 0 : index
    %c0_19 = arith.constant 0 : index
    %35 = vector.load %arg6[%c0_16, %c0_17, %c0_18, %c0_19] : memref<1x1x128x64xbf16, #tpu.memory_space<vmem>>, vector<1x1x128x64xbf16>
    %36 = vector.shape_cast %35 : vector<1x1x128x64xbf16> to vector<128x64xbf16>
    %37 = vector.shape_cast %34 : vector<128x64xbf16> to vector<1x1x128x64xbf16>
    tpu.vector_store %arg6[%c0_16, %c0_17, %c0_18, %c0_19], %37 {strides = array<i32>} : memref<1x1x128x64xbf16, #tpu.memory_space<vmem>>, vector<1x1x128x64xbf16>,
    return
  }
  func.func @transform_0(%arg0: i32, %arg1: i32) -> (i32, i32, i32) {
    %c0_i32 = arith.constant 0 : i32
    %c0_i32_0 = arith.constant 0 : i32
    %c0_i32_1 = arith.constant 0 : i32
    return %arg0, %c0_i32, %c0_i32_0 : i32, i32, i32
  }
  func.func @transform_1(%arg0: i32, %arg1: i32) -> (i32, i32, i32) {
    %c0_i32 = arith.constant 0 : i32
    %c0_i32_0 = arith.constant 0 : i32
    %c0_i32_1 = arith.constant 0 : i32
    return %arg1, %c0_i32, %c0_i32_0 : i32, i32, i32
  }
  func.func @transform_2(%arg0: i32, %arg1: i32) -> (i32, i32, i32) {
    %c0_i32 = arith.constant 0 : i32
    %c0_i32_0 = arith.constant 0 : i32
    %c0_i32_1 = arith.constant 0 : i32
    return %arg1, %c0_i32, %c0_i32_0 : i32, i32, i32
  }
  func.func @transform_3(%arg0: i32, %arg1: i32) -> (i32, i32, i32) {
    %c0_i32 = arith.constant 0 : i32
    %c0_i32_0 = arith.constant 0 : i32
    %c0_i32_1 = arith.constant 0 : i32
    return %arg0, %c0_i32, %c0_i32_0 : i32, i32, i32
  }
  func.func @transform_4(%arg0: i32, %arg1: i32) -> (i32, i32, i32, i32) {
    %c0_i32 = arith.constant 0 : i32
    %c0_i32_0 = arith.constant 0 : i32
    %c0_i32_1 = arith.constant 0 : i32
    return %arg0, %arg1, %c0_i32, %c0_i32_0 : i32, i32, i32, i32
  }
}

module attributes {stable_mosaic.version = 11 : i64} {
  func.func @_dense_ln_kernel(%arg0: i32, %arg1: memref<256x128xbf16, #tpu.memory_space<vmem>>, %arg2: memref<128x128xbf16, #tpu.memory_space<vmem>>, %arg3: memref<1x128xf32, #tpu.memory_space<vmem>>, %arg4: memref<256x128xbf16, #tpu.memory_space<vmem>>, %arg5: memref<1x128xf32, #tpu.memory_space<vmem>>, %arg6: memref<1x128xf32, #tpu.memory_space<vmem>>, %arg7: memref<256x128xbf16, #tpu.memory_space<vmem>>) attributes {dimension_semantics = [#tpu.dimension_semantics<parallel>], iteration_bounds = array<i64: 1>, scalar_prefetch = 0 : i64, scratch_operands = 0 : i64, tpu.core_type = #tpu.core_type<tc>, window_params = [{transform_indices = @transform_0, window_bounds = array<i64: 256, 128>}, {pipeline_mode = #tpu.pipeline_mode<synchronous>, transform_indices = @transform_1, window_bounds = array<i64: 128, 128>}, {pipeline_mode = #tpu.pipeline_mode<synchronous>, transform_indices = @transform_2, window_bounds = array<i64: 1, 128>}, {transform_indices = @transform_3, window_bounds = array<i64: 256, 128>}, {pipeline_mode = #tpu.pipeline_mode<synchronous>, transform_indices = @transform_4, window_bounds = array<i64: 1, 128>}, {pipeline_mode = #tpu.pipeline_mode<synchronous>, transform_indices = @transform_5, window_bounds = array<i64: 1, 128>}, {transform_indices = @transform_6, window_bounds = array<i64: 256, 128>}]} {
    %c0 = arith.constant 0 : index
    %c0_0 = arith.constant 0 : index
    %0 = vector.load %arg1[%c0, %c0_0] : memref<256x128xbf16, #tpu.memory_space<vmem>>, vector<256x128xbf16>
    %c0_1 = arith.constant 0 : index
    %c0_2 = arith.constant 0 : index
    %1 = vector.load %arg2[%c0_1, %c0_2] : memref<128x128xbf16, #tpu.memory_space<vmem>>, vector<128x128xbf16>
    %cst = arith.constant dense<0.000000e+00> : vector<256x128xf32>
    %2 = tpu.matmul %0, %1, %cst {dimension_numbers = #tpu.dot_dimension_numbers<[1], [0], [0], [1], [0, 0, 1, 1], [], []>} : vector<256x128xbf16>, vector<128x128xbf16>, vector<256x128xf32> -> vector<256x128xf32>
    %c0_3 = arith.constant 0 : index
    %c0_4 = arith.constant 0 : index
    %3 = vector.load %arg3[%c0_3, %c0_4] : memref<1x128xf32, #tpu.memory_space<vmem>>, vector<1x128xf32>
    %4 = vector.broadcast %3 : vector<1x128xf32> to vector<256x128xf32>
    %5 = arith.addf %2, %4 : vector<256x128xf32>
    %c0_5 = arith.constant 0 : index
    %c0_6 = arith.constant 0 : index
    %6 = vector.load %arg4[%c0_5, %c0_6] : memref<256x128xbf16, #tpu.memory_space<vmem>>, vector<256x128xbf16>
    %7 = arith.extf %6 : vector<256x128xbf16> to vector<256x128xf32>
    %8 = arith.addf %5, %7 : vector<256x128xf32>
    %c0_7 = arith.constant 0 : index
    %c0_8 = arith.constant 0 : index
    %9 = vector.load %arg5[%c0_7, %c0_8] : memref<1x128xf32, #tpu.memory_space<vmem>>, vector<1x128xf32>
    %c0_9 = arith.constant 0 : index
    %c0_10 = arith.constant 0 : index
    %10 = vector.load %arg6[%c0_9, %c0_10] : memref<1x128xf32, #tpu.memory_space<vmem>>, vector<1x128xf32>
    %cst_11 = arith.constant dense<0.000000e+00> : vector<256xf32>
    %11 = vector.multi_reduction <add>, %8, %cst_11 [1] : vector<256x128xf32> to vector<256xf32>
    %12 = vector.shape_cast %11 : vector<256xf32> to vector<256x1xf32>
    %cst_12 = arith.constant 1.280000e+02 : f32
    %13 = vector.broadcast %cst_12 : f32 to vector<256x1xf32>
    %14 = arith.divf %12, %13 : vector<256x1xf32>
    %15 = vector.broadcast %14 : vector<256x1xf32> to vector<256x128xf32>
    %16 = arith.subf %8, %15 : vector<256x128xf32>
    %17 = arith.mulf %16, %16 : vector<256x128xf32>
    %cst_13 = arith.constant dense<0.000000e+00> : vector<256xf32>
    %18 = vector.multi_reduction <add>, %17, %cst_13 [1] : vector<256x128xf32> to vector<256xf32>
    %19 = vector.shape_cast %18 : vector<256xf32> to vector<256x1xf32>
    %cst_14 = arith.constant 1.280000e+02 : f32
    %20 = vector.broadcast %cst_14 : f32 to vector<256x1xf32>
    %21 = arith.divf %19, %20 : vector<256x1xf32>
    %cst_15 = arith.constant 9.99999996E-13 : f32
    %22 = vector.broadcast %cst_15 : f32 to vector<256x1xf32>
    %23 = arith.addf %21, %22 : vector<256x1xf32>
    %24 = math.rsqrt %23 : vector<256x1xf32>
    %25 = vector.broadcast %24 : vector<256x1xf32> to vector<256x128xf32>
    %26 = arith.mulf %16, %25 : vector<256x128xf32>
    %27 = vector.broadcast %9 : vector<1x128xf32> to vector<256x128xf32>
    %28 = arith.mulf %26, %27 : vector<256x128xf32>
    %29 = vector.broadcast %10 : vector<1x128xf32> to vector<256x128xf32>
    %30 = arith.addf %28, %29 : vector<256x128xf32>
    %31 = arith.truncf %30 : vector<256x128xf32> to vector<256x128xbf16>
    %c0_16 = arith.constant 0 : index
    %c0_17 = arith.constant 0 : index
    %32 = vector.load %arg7[%c0_16, %c0_17] : memref<256x128xbf16, #tpu.memory_space<vmem>>, vector<256x128xbf16>
    tpu.vector_store %arg7[%c0_16, %c0_17], %31 {strides = array<i32>} : memref<256x128xbf16, #tpu.memory_space<vmem>>, vector<256x128xbf16>,
    return
  }
  func.func @transform_0(%arg0: i32) -> (i32, i32) {
    %c0_i32 = arith.constant 0 : i32
    %c0_i32_0 = arith.constant 0 : i32
    return %arg0, %c0_i32 : i32, i32
  }
  func.func @transform_1(%arg0: i32) -> (i32, i32) {
    %c0_i32 = arith.constant 0 : i32
    %c0_i32_0 = arith.constant 0 : i32
    %c0_i32_1 = arith.constant 0 : i32
    return %c0_i32, %c0_i32_0 : i32, i32
  }
  func.func @transform_2(%arg0: i32) -> (i32, i32) {
    %c0_i32 = arith.constant 0 : i32
    %c0_i32_0 = arith.constant 0 : i32
    %c0_i32_1 = arith.constant 0 : i32
    return %c0_i32, %c0_i32_0 : i32, i32
  }
  func.func @transform_3(%arg0: i32) -> (i32, i32) {
    %c0_i32 = arith.constant 0 : i32
    %c0_i32_0 = arith.constant 0 : i32
    return %arg0, %c0_i32 : i32, i32
  }
  func.func @transform_4(%arg0: i32) -> (i32, i32) {
    %c0_i32 = arith.constant 0 : i32
    %c0_i32_0 = arith.constant 0 : i32
    %c0_i32_1 = arith.constant 0 : i32
    return %c0_i32, %c0_i32_0 : i32, i32
  }
  func.func @transform_5(%arg0: i32) -> (i32, i32) {
    %c0_i32 = arith.constant 0 : i32
    %c0_i32_0 = arith.constant 0 : i32
    %c0_i32_1 = arith.constant 0 : i32
    return %c0_i32, %c0_i32_0 : i32, i32
  }
  func.func @transform_6(%arg0: i32) -> (i32, i32) {
    %c0_i32 = arith.constant 0 : i32
    %c0_i32_0 = arith.constant 0 : i32
    return %arg0, %c0_i32 : i32, i32
  }
}

module attributes {stable_mosaic.version = 11 : i64} {
  func.func @_dense_kernel(%arg0: i32, %arg1: i32, %arg2: memref<256x128xbf16, #tpu.memory_space<vmem>>, %arg3: memref<128x512xbf16, #tpu.memory_space<vmem>>, %arg4: memref<1x512xf32, #tpu.memory_space<vmem>>, %arg5: memref<256x512xbf16, #tpu.memory_space<vmem>>) attributes {dimension_semantics = [#tpu.dimension_semantics<parallel>, #tpu.dimension_semantics<parallel>], iteration_bounds = array<i64: 1, 1>, scalar_prefetch = 0 : i64, scratch_operands = 0 : i64, tpu.core_type = #tpu.core_type<tc>, window_params = [{transform_indices = @transform_0, window_bounds = array<i64: 256, 128>}, {transform_indices = @transform_1, window_bounds = array<i64: 128, 512>}, {transform_indices = @transform_2, window_bounds = array<i64: 1, 512>}, {transform_indices = @transform_3, window_bounds = array<i64: 256, 512>}]} {
    %c0 = arith.constant 0 : index
    %c0_0 = arith.constant 0 : index
    %0 = vector.load %arg2[%c0, %c0_0] : memref<256x128xbf16, #tpu.memory_space<vmem>>, vector<256x128xbf16>
    %c0_1 = arith.constant 0 : index
    %c0_2 = arith.constant 0 : index
    %1 = vector.load %arg3[%c0_1, %c0_2] : memref<128x512xbf16, #tpu.memory_space<vmem>>, vector<128x512xbf16>
    %cst = arith.constant dense<0.000000e+00> : vector<256x512xf32>
    %2 = tpu.matmul %0, %1, %cst {dimension_numbers = #tpu.dot_dimension_numbers<[1], [0], [0], [1], [0, 0, 1, 1], [], []>} : vector<256x128xbf16>, vector<128x512xbf16>, vector<256x512xf32> -> vector<256x512xf32>
    %c0_3 = arith.constant 0 : index
    %c0_4 = arith.constant 0 : index
    %3 = vector.load %arg4[%c0_3, %c0_4] : memref<1x512xf32, #tpu.memory_space<vmem>>, vector<1x512xf32>
    %4 = vector.broadcast %3 : vector<1x512xf32> to vector<256x512xf32>
    %5 = arith.addf %2, %4 : vector<256x512xf32>
    %cst_5 = arith.constant 5.000000e-01 : f32
    %6 = vector.broadcast %cst_5 : f32 to vector<256x512xf32>
    %7 = arith.mulf %6, %5 : vector<256x512xf32>
    %cst_6 = arith.constant 4.471500e-02 : f32
    %8 = vector.broadcast %cst_6 : f32 to vector<256x512xf32>
    %9 = arith.mulf %8, %5 : vector<256x512xf32>
    %10 = arith.mulf %9, %5 : vector<256x512xf32>
    %11 = arith.mulf %10, %5 : vector<256x512xf32>
    %12 = arith.addf %5, %11 : vector<256x512xf32>
    %cst_7 = arith.constant 0.797884583 : f32
    %13 = vector.broadcast %cst_7 : f32 to vector<256x512xf32>
    %14 = arith.mulf %13, %12 : vector<256x512xf32>
    %15 = math.tanh %14 : vector<256x512xf32>
    %cst_8 = arith.constant 1.000000e+00 : f32
    %16 = vector.broadcast %cst_8 : f32 to vector<256x512xf32>
    %17 = arith.addf %16, %15 : vector<256x512xf32>
    %18 = arith.mulf %7, %17 : vector<256x512xf32>
    %19 = arith.truncf %18 : vector<256x512xf32> to vector<256x512xbf16>
    %c0_9 = arith.constant 0 : index
    %c0_10 = arith.constant 0 : index
    %20 = vector.load %arg5[%c0_9, %c0_10] : memref<256x512xbf16, #tpu.memory_space<vmem>>, vector<256x512xbf16>
    tpu.vector_store %arg5[%c0_9, %c0_10], %19 {strides = array<i32>} : memref<256x512xbf16, #tpu.memory_space<vmem>>, vector<256x512xbf16>,
    return
  }
  func.func @transform_0(%arg0: i32, %arg1: i32) -> (i32, i32) {
    %c0_i32 = arith.constant 0 : i32
    %c0_i32_0 = arith.constant 0 : i32
    return %arg0, %c0_i32 : i32, i32
  }
  func.func @transform_1(%arg0: i32, %arg1: i32) -> (i32, i32) {
    %c0_i32 = arith.constant 0 : i32
    %c0_i32_0 = arith.constant 0 : i32
    return %c0_i32, %arg1 : i32, i32
  }
  func.func @transform_2(%arg0: i32, %arg1: i32) -> (i32, i32) {
    %c0_i32 = arith.constant 0 : i32
    %c0_i32_0 = arith.constant 0 : i32
    return %c0_i32, %arg1 : i32, i32
  }
  func.func @transform_3(%arg0: i32, %arg1: i32) -> (i32, i32) {
    %c0_i32 = arith.constant 0 : i32
    return %arg0, %arg1 : i32, i32
  }
}

module attributes {stable_mosaic.version = 11 : i64} {
  func.func @_dense_ln_kernel(%arg0: i32, %arg1: memref<256x512xbf16, #tpu.memory_space<vmem>>, %arg2: memref<512x128xbf16, #tpu.memory_space<vmem>>, %arg3: memref<1x128xf32, #tpu.memory_space<vmem>>, %arg4: memref<256x128xbf16, #tpu.memory_space<vmem>>, %arg5: memref<1x128xf32, #tpu.memory_space<vmem>>, %arg6: memref<1x128xf32, #tpu.memory_space<vmem>>, %arg7: memref<256x128xbf16, #tpu.memory_space<vmem>>) attributes {dimension_semantics = [#tpu.dimension_semantics<parallel>], iteration_bounds = array<i64: 1>, scalar_prefetch = 0 : i64, scratch_operands = 0 : i64, tpu.core_type = #tpu.core_type<tc>, window_params = [{transform_indices = @transform_0, window_bounds = array<i64: 256, 512>}, {pipeline_mode = #tpu.pipeline_mode<synchronous>, transform_indices = @transform_1, window_bounds = array<i64: 512, 128>}, {pipeline_mode = #tpu.pipeline_mode<synchronous>, transform_indices = @transform_2, window_bounds = array<i64: 1, 128>}, {transform_indices = @transform_3, window_bounds = array<i64: 256, 128>}, {pipeline_mode = #tpu.pipeline_mode<synchronous>, transform_indices = @transform_4, window_bounds = array<i64: 1, 128>}, {pipeline_mode = #tpu.pipeline_mode<synchronous>, transform_indices = @transform_5, window_bounds = array<i64: 1, 128>}, {transform_indices = @transform_6, window_bounds = array<i64: 256, 128>}]} {
    %c0 = arith.constant 0 : index
    %c0_0 = arith.constant 0 : index
    %0 = vector.load %arg1[%c0, %c0_0] : memref<256x512xbf16, #tpu.memory_space<vmem>>, vector<256x512xbf16>
    %c0_1 = arith.constant 0 : index
    %c0_2 = arith.constant 0 : index
    %1 = vector.load %arg2[%c0_1, %c0_2] : memref<512x128xbf16, #tpu.memory_space<vmem>>, vector<512x128xbf16>
    %cst = arith.constant dense<0.000000e+00> : vector<256x128xf32>
    %2 = tpu.matmul %0, %1, %cst {dimension_numbers = #tpu.dot_dimension_numbers<[1], [0], [0], [1], [0, 0, 1, 1], [], []>} : vector<256x512xbf16>, vector<512x128xbf16>, vector<256x128xf32> -> vector<256x128xf32>
    %c0_3 = arith.constant 0 : index
    %c0_4 = arith.constant 0 : index
    %3 = vector.load %arg3[%c0_3, %c0_4] : memref<1x128xf32, #tpu.memory_space<vmem>>, vector<1x128xf32>
    %4 = vector.broadcast %3 : vector<1x128xf32> to vector<256x128xf32>
    %5 = arith.addf %2, %4 : vector<256x128xf32>
    %c0_5 = arith.constant 0 : index
    %c0_6 = arith.constant 0 : index
    %6 = vector.load %arg4[%c0_5, %c0_6] : memref<256x128xbf16, #tpu.memory_space<vmem>>, vector<256x128xbf16>
    %7 = arith.extf %6 : vector<256x128xbf16> to vector<256x128xf32>
    %8 = arith.addf %5, %7 : vector<256x128xf32>
    %c0_7 = arith.constant 0 : index
    %c0_8 = arith.constant 0 : index
    %9 = vector.load %arg5[%c0_7, %c0_8] : memref<1x128xf32, #tpu.memory_space<vmem>>, vector<1x128xf32>
    %c0_9 = arith.constant 0 : index
    %c0_10 = arith.constant 0 : index
    %10 = vector.load %arg6[%c0_9, %c0_10] : memref<1x128xf32, #tpu.memory_space<vmem>>, vector<1x128xf32>
    %cst_11 = arith.constant dense<0.000000e+00> : vector<256xf32>
    %11 = vector.multi_reduction <add>, %8, %cst_11 [1] : vector<256x128xf32> to vector<256xf32>
    %12 = vector.shape_cast %11 : vector<256xf32> to vector<256x1xf32>
    %cst_12 = arith.constant 1.280000e+02 : f32
    %13 = vector.broadcast %cst_12 : f32 to vector<256x1xf32>
    %14 = arith.divf %12, %13 : vector<256x1xf32>
    %15 = vector.broadcast %14 : vector<256x1xf32> to vector<256x128xf32>
    %16 = arith.subf %8, %15 : vector<256x128xf32>
    %17 = arith.mulf %16, %16 : vector<256x128xf32>
    %cst_13 = arith.constant dense<0.000000e+00> : vector<256xf32>
    %18 = vector.multi_reduction <add>, %17, %cst_13 [1] : vector<256x128xf32> to vector<256xf32>
    %19 = vector.shape_cast %18 : vector<256xf32> to vector<256x1xf32>
    %cst_14 = arith.constant 1.280000e+02 : f32
    %20 = vector.broadcast %cst_14 : f32 to vector<256x1xf32>
    %21 = arith.divf %19, %20 : vector<256x1xf32>
    %cst_15 = arith.constant 9.99999996E-13 : f32
    %22 = vector.broadcast %cst_15 : f32 to vector<256x1xf32>
    %23 = arith.addf %21, %22 : vector<256x1xf32>
    %24 = math.rsqrt %23 : vector<256x1xf32>
    %25 = vector.broadcast %24 : vector<256x1xf32> to vector<256x128xf32>
    %26 = arith.mulf %16, %25 : vector<256x128xf32>
    %27 = vector.broadcast %9 : vector<1x128xf32> to vector<256x128xf32>
    %28 = arith.mulf %26, %27 : vector<256x128xf32>
    %29 = vector.broadcast %10 : vector<1x128xf32> to vector<256x128xf32>
    %30 = arith.addf %28, %29 : vector<256x128xf32>
    %31 = arith.truncf %30 : vector<256x128xf32> to vector<256x128xbf16>
    %c0_16 = arith.constant 0 : index
    %c0_17 = arith.constant 0 : index
    %32 = vector.load %arg7[%c0_16, %c0_17] : memref<256x128xbf16, #tpu.memory_space<vmem>>, vector<256x128xbf16>
    tpu.vector_store %arg7[%c0_16, %c0_17], %31 {strides = array<i32>} : memref<256x128xbf16, #tpu.memory_space<vmem>>, vector<256x128xbf16>,
    return
  }
  func.func @transform_0(%arg0: i32) -> (i32, i32) {
    %c0_i32 = arith.constant 0 : i32
    %c0_i32_0 = arith.constant 0 : i32
    return %arg0, %c0_i32 : i32, i32
  }
  func.func @transform_1(%arg0: i32) -> (i32, i32) {
    %c0_i32 = arith.constant 0 : i32
    %c0_i32_0 = arith.constant 0 : i32
    %c0_i32_1 = arith.constant 0 : i32
    return %c0_i32, %c0_i32_0 : i32, i32
  }
  func.func @transform_2(%arg0: i32) -> (i32, i32) {
    %c0_i32 = arith.constant 0 : i32
    %c0_i32_0 = arith.constant 0 : i32
    %c0_i32_1 = arith.constant 0 : i32
    return %c0_i32, %c0_i32_0 : i32, i32
  }
  func.func @transform_3(%arg0: i32) -> (i32, i32) {
    %c0_i32 = arith.constant 0 : i32
    %c0_i32_0 = arith.constant 0 : i32
    return %arg0, %c0_i32 : i32, i32
  }
  func.func @transform_4(%arg0: i32) -> (i32, i32) {
    %c0_i32 = arith.constant 0 : i32
    %c0_i32_0 = arith.constant 0 : i32
    %c0_i32_1 = arith.constant 0 : i32
    return %c0_i32, %c0_i32_0 : i32, i32
  }
  func.func @transform_5(%arg0: i32) -> (i32, i32) {
    %c0_i32 = arith.constant 0 : i32
    %c0_i32_0 = arith.constant 0 : i32
    %c0_i32_1 = arith.constant 0 : i32
    return %c0_i32, %c0_i32_0 : i32, i32
  }
  func.func @transform_6(%arg0: i32) -> (i32, i32) {
    %c0_i32 = arith.constant 0 : i32
    %c0_i32_0 = arith.constant 0 : i32
    return %arg0, %c0_i32 : i32, i32
  }
}

module attributes {stable_mosaic.version = 11 : i64} {
  func.func @_pool_cls_kernel(%arg0: i32, %arg1: memref<2x128xbf16, #tpu.memory_space<vmem>>, %arg2: memref<128x128xbf16, #tpu.memory_space<vmem>>, %arg3: memref<1x128xf32, #tpu.memory_space<vmem>>, %arg4: memref<128x8xbf16, #tpu.memory_space<vmem>>, %arg5: memref<1x8xf32, #tpu.memory_space<vmem>>, %arg6: memref<2x8xf32, #tpu.memory_space<vmem>>) attributes {dimension_semantics = [#tpu.dimension_semantics<arbitrary>], iteration_bounds = array<i64: 1>, scalar_prefetch = 0 : i64, scratch_operands = 0 : i64, tpu.core_type = #tpu.core_type<tc>, window_params = [{pipeline_mode = #tpu.pipeline_mode<synchronous>, transform_indices = @transform_0, window_bounds = array<i64: 2, 128>}, {pipeline_mode = #tpu.pipeline_mode<synchronous>, transform_indices = @transform_1, window_bounds = array<i64: 128, 128>}, {pipeline_mode = #tpu.pipeline_mode<synchronous>, transform_indices = @transform_2, window_bounds = array<i64: 1, 128>}, {pipeline_mode = #tpu.pipeline_mode<synchronous>, transform_indices = @transform_3, window_bounds = array<i64: 128, 8>}, {pipeline_mode = #tpu.pipeline_mode<synchronous>, transform_indices = @transform_4, window_bounds = array<i64: 1, 8>}, {pipeline_mode = #tpu.pipeline_mode<synchronous>, transform_indices = @transform_5, window_bounds = array<i64: 2, 8>}]} {
    %c0 = arith.constant 0 : index
    %c0_0 = arith.constant 0 : index
    %0 = vector.load %arg1[%c0, %c0_0] : memref<2x128xbf16, #tpu.memory_space<vmem>>, vector<2x128xbf16>
    %c0_1 = arith.constant 0 : index
    %c0_2 = arith.constant 0 : index
    %1 = vector.load %arg2[%c0_1, %c0_2] : memref<128x128xbf16, #tpu.memory_space<vmem>>, vector<128x128xbf16>
    %cst = arith.constant dense<0.000000e+00> : vector<2x128xf32>
    %2 = tpu.matmul %0, %1, %cst {dimension_numbers = #tpu.dot_dimension_numbers<[1], [0], [0], [1], [0, 0, 1, 1], [], []>} : vector<2x128xbf16>, vector<128x128xbf16>, vector<2x128xf32> -> vector<2x128xf32>
    %c0_3 = arith.constant 0 : index
    %c0_4 = arith.constant 0 : index
    %3 = vector.load %arg3[%c0_3, %c0_4] : memref<1x128xf32, #tpu.memory_space<vmem>>, vector<1x128xf32>
    %4 = vector.broadcast %3 : vector<1x128xf32> to vector<2x128xf32>
    %5 = arith.addf %2, %4 : vector<2x128xf32>
    %6 = math.tanh %5 : vector<2x128xf32>
    %7 = arith.truncf %6 : vector<2x128xf32> to vector<2x128xbf16>
    %c0_5 = arith.constant 0 : index
    %c0_6 = arith.constant 0 : index
    %8 = vector.load %arg4[%c0_5, %c0_6] : memref<128x8xbf16, #tpu.memory_space<vmem>>, vector<128x8xbf16>
    %cst_7 = arith.constant dense<0.000000e+00> : vector<2x8xf32>
    %9 = tpu.matmul %7, %8, %cst_7 {dimension_numbers = #tpu.dot_dimension_numbers<[1], [0], [0], [1], [0, 0, 1, 1], [], []>} : vector<2x128xbf16>, vector<128x8xbf16>, vector<2x8xf32> -> vector<2x8xf32>
    %c0_8 = arith.constant 0 : index
    %c0_9 = arith.constant 0 : index
    %10 = vector.load %arg5[%c0_8, %c0_9] : memref<1x8xf32, #tpu.memory_space<vmem>>, vector<1x8xf32>
    %11 = vector.broadcast %10 : vector<1x8xf32> to vector<2x8xf32>
    %12 = arith.addf %9, %11 : vector<2x8xf32>
    %c0_10 = arith.constant 0 : index
    %c0_11 = arith.constant 0 : index
    %13 = vector.load %arg6[%c0_10, %c0_11] : memref<2x8xf32, #tpu.memory_space<vmem>>, vector<2x8xf32>
    tpu.vector_store %arg6[%c0_10, %c0_11], %12 {strides = array<i32>} : memref<2x8xf32, #tpu.memory_space<vmem>>, vector<2x8xf32>,
    return
  }
  func.func @transform_0(%arg0: i32) -> (i32, i32) {
    %c0_i32 = arith.constant 0 : i32
    %c0_i32_0 = arith.constant 0 : i32
    %c0_i32_1 = arith.constant 0 : i32
    return %c0_i32, %c0_i32_0 : i32, i32
  }
  func.func @transform_1(%arg0: i32) -> (i32, i32) {
    %c0_i32 = arith.constant 0 : i32
    %c0_i32_0 = arith.constant 0 : i32
    %c0_i32_1 = arith.constant 0 : i32
    return %c0_i32, %c0_i32_0 : i32, i32
  }
  func.func @transform_2(%arg0: i32) -> (i32, i32) {
    %c0_i32 = arith.constant 0 : i32
    %c0_i32_0 = arith.constant 0 : i32
    %c0_i32_1 = arith.constant 0 : i32
    return %c0_i32, %c0_i32_0 : i32, i32
  }
  func.func @transform_3(%arg0: i32) -> (i32, i32) {
    %c0_i32 = arith.constant 0 : i32
    %c0_i32_0 = arith.constant 0 : i32
    %c0_i32_1 = arith.constant 0 : i32
    return %c0_i32, %c0_i32_0 : i32, i32
  }
  func.func @transform_4(%arg0: i32) -> (i32, i32) {
    %c0_i32 = arith.constant 0 : i32
    %c0_i32_0 = arith.constant 0 : i32
    %c0_i32_1 = arith.constant 0 : i32
    return %c0_i32, %c0_i32_0 : i32, i32
  }
  func.func @transform_5(%arg0: i32) -> (i32, i32) {
    %c0_i32 = arith.constant 0 : i32
    %c0_i32_0 = arith.constant 0 : i32
    %c0_i32_1 = arith.constant 0 : i32
    return %c0_i32, %c0_i32_0 : i32, i32
  }
}

</mosaic_0001>

<llo_original>
// kernel: bert_back_forward.9
$region0: #{bert_back_forward.9}
  #allocation0 [shape = 'u32[]', space=smem, size = 0x4, offset = 0x4, fixed_abs, tag = 'smem constant byte address 0x4 - core index']
  #allocation1 [shape = 'u32[144,128]{1,0:T(1,128)}', space=vmem, size = 0x12000, scoped, tag = 'internal scratch']
  %s0 = inlined_call_operand.vmem [shape: bf16[2,128,128], index: 0, kind: input, shape index: {}]
  %s1 = inlined_call_operand.vmem [shape: bf16[2,128,192], index: 1, kind: input, shape index: {}]
  %s2 = inlined_call_operand.vmem [shape: f32[2,1,192], index: 2, kind: input, shape index: {}]
  %s3 = inlined_call_operand.vmem [shape: f32[2,1,128], index: 3, kind: input, shape index: {}]
  %s4 = inlined_call_operand.vmem [shape: bf16[2,2,128,64], index: 4, kind: output, shape index: {}]
  %s5 = sld [smem:[#allocation0]]
  $region49: #{bert_back_forward.9} parent=0
    _
  %s7 = ssub.s32 1, %s5
  %s8 = scalar_select 0, %s7, %s5
  loop: start=0, step=1, limit=6
  $region2: #{bert_back_forward.9} parent=0 // loop_pre_header
    _
  $region3: #{bert_back_forward.9} parent=0 // loop_header
    %s10 = sphi 0, %s14
    %p11 = scmp.ge.s32.totalorder %s10, 6
    %s17 = sphi 0, %s29
    %s18 = sphi 0, %s25
    %s19 = sphi 0, %s17
    %s20 = sphi 0, %s18
    %s21 = sphi 0, %s19
    %s22 = sphi 0, %s20
    %s32 = sphi 0, %s34
    %s35 = sphi 0, %s32
    %s36 = sphi 0, %s35
    %s52 = sphi 0, %s36
    %s58 = sphi 0, %s60
    %s61 = sphi 0, %s58
    %s62 = sphi 0, %s61
    %s78 = sphi 0, %s62
    %s84 = sphi 0, %s86
    %s87 = sphi 0, %s84
    %s88 = sphi 0, %s87
    %s104 = sphi 0, %s88
    %s110 = sphi 0, %s112
    %s113 = sphi 0, %s110
    %s114 = sphi 0, %s113
    %s130 = sphi 0, %s114
    %s138 = sphi 0, %s140
    %s141 = sphi 0, %s138
    %s142 = sphi 0, %s141
    %s158 = sphi 0, %s142
  $region4: #{bert_back_forward.9} parent=0 // loop_header_branch
    %13 = sbr.rel (%p11) target = $region8
  $region5: #{bert_back_forward.9} parent=0 // loop_body
    %s15 = ssub.s32 %s10, 1
    %s16 = ssub.s32 %s10, 2
    %s23 = sadd.s32 1, %s18
    %p24 = scmp.ge.s32.totalorder %s23, 2
    %s25 = scalar_select %p24, 0, %s23
    %s26 = sadd.s32 1, %s17
    %s27 = scalar_select %p24, %s26, %s17
    %p28 = scmp.ge.s32.totalorder %s27, 2
    %s29 = scalar_select %p28, 0, %s27
    %s30 = ssub.s32 %s17, %s29
    %p31 = scmp.eq.s32.totalorder %s30, 0
    %s33 = sadd.s32 %s32, 1
    %s34 = scalar_select %p31, %s32, %s33
    %p37 = pneg %p31
    %p38 = scmp.eq.s32.totalorder %s10, 3
    %p39 = por %p37, %p38
    %p40 = scmp.ne.s32.totalorder %s32, %s35
    %p41 = scmp.eq.s32.totalorder %s10, 0
    %p42 = por %p40, %p41
    %p43 = scmp.ne.s32.totalorder %s32, %s35
    %p44 = scmp.eq.s32.totalorder %s15, 3
    %p45 = por %p43, %p44
    %p46 = scmp.ne.s32.totalorder %s35, %s36
    %p47 = scmp.eq.s32.totalorder %s15, 0
    %p48 = por %p46, %p47
    %p49 = scmp.ne.s32.totalorder %s35, %s36
    %p50 = scmp.eq.s32.totalorder %s16, 3
    %p51 = por %p49, %p50
    %p53 = scmp.ne.s32.totalorder %s36, %s52
    %p54 = scmp.eq.s32.totalorder %s16, 0
    %p55 = por %p53, %p54
    %s56 = ssub.s32 %s18, %s25
    %p57 = scmp.eq.s32.totalorder %s56, 0
    %s59 = sadd.s32 %s58, 1
    %s60 = scalar_select %p57, %s58, %s59
    %p63 = pneg %p57
    %p64 = scmp.eq.s32.totalorder %s10, 3
    %p65 = por %p63, %p64
    %p66 = scmp.ne.s32.totalorder %s58, %s61
    %p67 = scmp.eq.s32.totalorder %s10, 0
    %p68 = por %p66, %p67
    %p69 = scmp.ne.s32.totalorder %s58, %s61
    %p70 = scmp.eq.s32.totalorder %s15, 3
    %p71 = por %p69, %p70
    %p72 = scmp.ne.s32.totalorder %s61, %s62
    %p73 = scmp.eq.s32.totalorder %s15, 0
    %p74 = por %p72, %p73
    %p75 = scmp.ne.s32.totalorder %s61, %s62
    %p76 = scmp.eq.s32.totalorder %s16, 3
    %p77 = por %p75, %p76
    %p79 = scmp.ne.s32.totalorder %s62, %s78
    %p80 = scmp.eq.s32.totalorder %s16, 0
    %p81 = por %p79, %p80
    %s82 = ssub.s32 %s18, %s25
    %p83 = scmp.eq.s32.totalorder %s82, 0
    %s85 = sadd.s32 %s84, 1
    %s86 = scalar_select %p83, %s84, %s85
    %p89 = pneg %p83
    %p90 = scmp.eq.s32.totalorder %s10, 3
    %p91 = por %p89, %p90
    %p92 = scmp.ne.s32.totalorder %s84, %s87
    %p93 = scmp.eq.s32.totalorder %s10, 0
    %p94 = por %p92, %p93
    %p95 = scmp.ne.s32.totalorder %s84, %s87
    %p96 = scmp.eq.s32.totalorder %s15, 3
    %p97 = por %p95, %p96
    %p98 = scmp.ne.s32.totalorder %s87, %s88
    %p99 = scmp.eq.s32.totalorder %s15, 0
    %p100 = por %p98, %p99
    %p101 = scmp.ne.s32.totalorder %s87, %s88
    %p102 = scmp.eq.s32.totalorder %s16, 3
    %p103 = por %p101, %p102
    %p105 = scmp.ne.s32.totalorder %s88, %s104
    %p106 = scmp.eq.s32.totalorder %s16, 0
    %p107 = por %p105, %p106
    %s108 = ssub.s32 %s17, %s29
    %p109 = scmp.eq.s32.totalorder %s108, 0
    %s111 = sadd.s32 %s110, 1
    %s112 = scalar_select %p109, %s110, %s111
    %p115 = pneg %p109
    %p116 = scmp.eq.s32.totalorder %s10, 3
    %p117 = por %p115, %p116
    %p118 = scmp.ne.s32.totalorder %s110, %s113
    %p119 = scmp.eq.s32.totalorder %s10, 0
    %p120 = por %p118, %p119
    %p121 = scmp.ne.s32.totalorder %s110, %s113
    %p122 = scmp.eq.s32.totalorder %s15, 3
    %p123 = por %p121, %p122
    %p124 = scmp.ne.s32.totalorder %s113, %s114
    %p125 = scmp.eq.s32.totalorder %s15, 0
    %p126 = por %p124, %p125
    %p127 = scmp.ne.s32.totalorder %s113, %s114
    %p128 = scmp.eq.s32.totalorder %s16, 3
    %p129 = por %p127, %p128
    %p131 = scmp.ne.s32.totalorder %s114, %s130
    %p132 = scmp.eq.s32.totalorder %s16, 0
    %p133 = por %p131, %p132
    %s134 = ssub.s32 %s17, %s29
    %s135 = ssub.s32 %s18, %s25
    %s136 = sor.u32 %s134, %s135
    %p137 = scmp.eq.s32.totalorder %s136, 0
    %s139 = sadd.s32 %s138, 1
    %s140 = scalar_select %p137, %s138, %s139
    %p143 = pneg %p137
    %p144 = scmp.eq.s32.totalorder %s10, 3
    %p145 = por %p143, %p144
    %p146 = scmp.ne.s32.totalorder %s138, %s141
    %p147 = scmp.eq.s32.totalorder %s10, 0
    %p148 = por %p146, %p147
    %p149 = scmp.ne.s32.totalorder %s138, %s141
    %p150 = scmp.eq.s32.totalorder %s15, 3
    %p151 = por %p149, %p150
    %p152 = scmp.ne.s32.totalorder %s141, %s142
    %p153 = scmp.eq.s32.totalorder %s15, 0
    %p154 = por %p152, %p153
    %p155 = scmp.ne.s32.totalorder %s141, %s142
    %p156 = scmp.eq.s32.totalorder %s16, 3
    %p157 = por %p155, %p156
    %p159 = scmp.ne.s32.totalorder %s142, %s158
    %p160 = scmp.eq.s32.totalorder %s16, 0
    %p161 = por %p159, %p160
    %p162 = scmp.le.s32.totalorder 1, %s10
    %p163 = scmp.lt.s32.totalorder %s10, 5
    %p164 = pnand %p162, %p163
    %p165 = pneg %p164
    // Predicated region
    $region9: #{bert_back_forward.9} parent=5 // pred_check
      _
    $region10: #{bert_back_forward.9} parent=5 // pred_check_branch
      %167 = sbr.rel (%p164) target = $region12
    $region11: #{bert_back_forward.9} parent=5 // pred_region
      %s168 = ssub.s32 %s10, 1
    $region12: #{bert_back_forward.9} parent=5 // pred_fallthru
      _
    %p169 = scmp.lt.s32.totalorder %s10, 4
    // Predicated region
    $region13: #{bert_back_forward.9} parent=5 // pred_check
      %p170 = pneg %p169
    $region14: #{bert_back_forward.9} parent=5 // pred_check_branch
      %172 = sbr.rel (%p170) target = $region16
    $region15: #{bert_back_forward.9} parent=5 // pred_region
      // Predicated region
      $region17: #{bert_back_forward.9} parent=15 // pred_check
        %p173 = pneg %p42
      $region18: #{bert_back_forward.9} parent=15 // pred_check_branch
        %175 = sbr.rel (%p173) target = $region20
      $region19: #{bert_back_forward.9} parent=15 // pred_region
        %p176 = scmp.lt.s32.totalorder %s17, 1
        %s177 = scalar_select %p176, %s17, 1
        %s178 = smul.addr %s177, 16
        %s179 = smul.addr %s178, 4
        %s180 = scalar_lea.vmem %s0, %s179
      $region20: #{bert_back_forward.9} parent=15 // pred_fallthru
        _
      // Predicated region
      $region21: #{bert_back_forward.9} parent=15 // pred_check
        %p181 = pneg %p68
      $region22: #{bert_back_forward.9} parent=15 // pred_check_branch
        %183 = sbr.rel (%p181) target = $region24
      $region23: #{bert_back_forward.9} parent=15 // pred_region
        %p184 = scmp.lt.s32.totalorder %s18, 1
        %s185 = scalar_select %p184, %s18, 1
        %s186 = smul.addr %s185, 32
        %s187 = smul.addr %s186, 4
        %s188 = scalar_lea.vmem %s1, %s187
      $region24: #{bert_back_forward.9} parent=15 // pred_fallthru
        _
      // Predicated region
      $region25: #{bert_back_forward.9} parent=15 // pred_check
        %p189 = pneg %p94
      $region26: #{bert_back_forward.9} parent=15 // pred_check_branch
        %191 = sbr.rel (%p189) target = $region28
      $region27: #{bert_back_forward.9} parent=15 // pred_region
        %p192 = scmp.lt.s32.totalorder %s18, 1
        %s193 = scalar_select %p192, %s18, 1
        %s194 = smul.addr %s193, 2
        %s195 = scalar_lea.vmem %s2, %s194
      $region28: #{bert_back_forward.9} parent=15 // pred_fallthru
        _
      // Predicated region
      $region29: #{bert_back_forward.9} parent=15 // pred_check
        %p196 = pneg %p120
      $region30: #{bert_back_forward.9} parent=15 // pred_check_branch
        %198 = sbr.rel (%p196) target = $region32
      $region31: #{bert_back_forward.9} parent=15 // pred_region
        %p199 = scmp.lt.s32.totalorder %s17, 1
        %s200 = scalar_select %p199, %s17, 1
        %s201 = scalar_lea.vmem %s3, %s200
      $region32: #{bert_back_forward.9} parent=15 // pred_fallthru
        _
    $region16: #{bert_back_forward.9} parent=5 // pred_fallthru
      _
    %p202 = scmp.le.s32.totalorder 1, %s10
    %p203 = scmp.lt.s32.totalorder %s10, 5
    %p204 = pnand %p202, %p203
    %p205 = pneg %p204
    // Predicated region
    $region33: #{bert_back_forward.9} parent=5 // pred_check
      _
    $region34: #{bert_back_forward.9} parent=5 // pred_check_branch
      %207 = sbr.rel (%p204) target = $region36
    $region35: #{bert_back_forward.9} parent=5 // pred_region
      %s208 = ssub.s32 %s10, 1
      %p209 = scmp.lt.s32.totalorder %s19, 1
      %s210 = scalar_select %p209, %s19, 1
      %s211 = smul.addr %s210, 16
      %s212 = smul.addr %s211, 4
      %s213 = scalar_lea.vmem %s0, %s212
      %p214 = pneg %p48
      %p215 = pneg %p45
      %p216 = scmp.lt.s32.totalorder %s20, 1
      %s217 = scalar_select %p216, %s20, 1
      %s218 = smul.addr %s217, 32
      %s219 = smul.addr %s218, 4
      %s220 = scalar_lea.vmem %s1, %s219
      %p221 = pneg %p74
      %p222 = pneg %p71
      %p223 = scmp.lt.s32.totalorder %s20, 1
      %s224 = scalar_select %p223, %s20, 1
      %s225 = smul.addr %s224, 2
      %s226 = scalar_lea.vmem %s2, %s225
      %p227 = pneg %p100
      %p228 = pneg %p97
      %p229 = scmp.lt.s32.totalorder %s19, 1
      %s230 = scalar_select %p229, %s19, 1
      %s231 = scalar_lea.vmem %s3, %s230
      %p232 = pneg %p126
      %p233 = pneg %p123
      %p234 = pneg %p154
      %p235 = pneg %p151
      %p236 = scmp.lt.s32.totalorder %s19, 1
      %s237 = scalar_select %p236, %s19, 1
      %p238 = scmp.lt.s32.totalorder %s20, 1
      %s239 = scalar_select %p238, %s20, 1
      %s240 = smul.addr %s239, 16
      %s241 = smul.addr %s237, 32
      %s242 = sadd.s32 %s240, %s241
      %s243 = smul.addr %s242, 4
      %s244 = scalar_lea.vmem %s4, %s243
      %p245 = scmp.lt.s32.totalorder %s19, 1
      %s246 = scalar_select %p245, %s19, 1
      %s247 = smul.addr %s246, 16
      %s248 = smul.addr %s247, 4
      %s249 = scalar_lea.vmem %s0, %s248
      %p250 = scmp.lt.s32.totalorder %s20, 1
      %s251 = scalar_select %p250, %s20, 1
      %s252 = smul.addr %s251, 32
      %s253 = smul.addr %s252, 4
      %s254 = scalar_lea.vmem %s1, %s253
      %p255 = scmp.lt.s32.totalorder %s20, 1
      %s256 = scalar_select %p255, %s20, 1
      %s257 = smul.addr %s256, 2
      %s258 = scalar_lea.vmem %s2, %s257
      %p259 = scmp.lt.s32.totalorder %s19, 1
      %s260 = scalar_select %p259, %s19, 1
      %s261 = scalar_lea.vmem %s3, %s260
      %p262 = scmp.lt.s32.totalorder %s19, 1
      %s263 = scalar_select %p262, %s19, 1
      %p264 = scmp.lt.s32.totalorder %s20, 1
      %s265 = scalar_select %p264, %s20, 1
      %s266 = smul.addr %s265, 16
      %s267 = smul.addr %s263, 32
      %s268 = sadd.s32 %s266, %s267
      %s269 = smul.addr %s268, 4
      %s270 = scalar_lea.vmem %s4, %s269
      %v272 = vld [vmem:[%s249] sm:$0xf]
      %v273 = vld [vmem:[%s249 + $0x4] sm:$0xf]
      %v274 = vld [vmem:[%s249 + $0x8] sm:$0xf]
      %v275 = vld [vmem:[%s249 + $0xc] sm:$0xf]
      %v276 = vld [vmem:[%s249 + $0x10] sm:$0xf]
      %v277 = vld [vmem:[%s249 + $0x14] sm:$0xf]
      %v278 = vld [vmem:[%s249 + $0x18] sm:$0xf]
      %v279 = vld [vmem:[%s249 + $0x1c] sm:$0xf]
      %v280 = vld [vmem:[%s249 + $0x20] sm:$0xf]
      %v281 = vld [vmem:[%s249 + $0x24] sm:$0xf]
      %v282 = vld [vmem:[%s249 + $0x28] sm:$0xf]
      %v283 = vld [vmem:[%s249 + $0x2c] sm:$0xf]
      %v284 = vld [vmem:[%s249 + $0x30] sm:$0xf]
      %v285 = vld [vmem:[%s249 + $0x34] sm:$0xf]
      %v286 = vld [vmem:[%s249 + $0x38] sm:$0xf]
      %v287 = vld [vmem:[%s249 + $0x3c] sm:$0xf]
      %v288 = vld [vmem:[%s254] sm:$0xff]
      %v289 = vld [vmem:[%s254 + $0x8] sm:$0xff]
      %v290 = vld [vmem:[%s254 + $0x10] sm:$0xff]
      %v291 = vld [vmem:[%s254 + $0x18] sm:$0xff]
      %v292 = vld [vmem:[%s254 + $0x20] sm:$0xff]
      %v293 = vld [vmem:[%s254 + $0x28] sm:$0xff]
      %v294 = vld [vmem:[%s254 + $0x30] sm:$0xff]
      %v295 = vld [vmem:[%s254 + $0x38] sm:$0xff]
      %v296 = vld [vmem:[%s254 + $0x40] sm:$0xff]
      %v297 = vld [vmem:[%s254 + $0x48] sm:$0xff]
      %v298 = vld [vmem:[%s254 + $0x50] sm:$0xff]
      %v299 = vld [vmem:[%s254 + $0x58] sm:$0xff]
      %v300 = vld [vmem:[%s254 + $0x60] sm:$0xff]
      %v301 = vld [vmem:[%s254 + $0x68] sm:$0xff]
      %v302 = vld [vmem:[%s254 + $0x70] sm:$0xff]
      %v303 = vld [vmem:[%s254 + $0x78] sm:$0xff]
      %v304 = vld [vmem:[%s258] sm:$0x3]
      %v306 = vlaneseq
      %v307 = vshrl.u32 %v306, 7
      %v308 = vsub.s32 0, %v307
      %v309 = vrot.slane %v304, %v308
      %v310 = vlaneseq
      %v311 = vshrl.u32 %v310, 7
      %v312 = vsub.s32 1, %v311
      %v313 = vrot.slane %v304, %v312
      %v332 = vunpack.c.l.b16 %v272
      %v333 = vunpack.c.l.b16 %v273
      %v334 = vunpack.c.l.b16 %v274
      %v335 = vunpack.c.l.b16 %v275
      %v336 = vunpack.c.l.b16 %v276
      %v337 = vunpack.c.l.b16 %v277
      %v338 = vunpack.c.l.b16 %v278
      %v339 = vunpack.c.l.b16 %v279
      %v340 = vunpack.c.l.b16 %v280
      %v341 = vunpack.c.l.b16 %v281
      %v342 = vunpack.c.l.b16 %v282
      %v343 = vunpack.c.l.b16 %v283
      %v344 = vunpack.c.l.b16 %v284
      %v345 = vunpack.c.l.b16 %v285
      %v346 = vunpack.c.l.b16 %v286
      %v347 = vunpack.c.l.b16 %v287
      %v348 = vpack.c.b16 %v333, %v332
      %v349 = vpack.c.b16 %v335, %v334
      %v350 = vpack.c.b16 %v337, %v336
      %v351 = vpack.c.b16 %v339, %v338
      %v352 = vpack.c.b16 %v341, %v340
      %v353 = vpack.c.b16 %v343, %v342
      %v354 = vpack.c.b16 %v345, %v344
      %v355 = vpack.c.b16 %v347, %v346
      %v380 = vunpack.c.l.b16 %v288
      %v381 = vunpack.c.h.b16 %v288
      %v382 = vunpack.c.l.b16 %v289
      %v383 = vunpack.c.h.b16 %v289
      %v384 = vunpack.c.l.b16 %v290
      %v385 = vunpack.c.h.b16 %v290
      %v386 = vunpack.c.l.b16 %v291
      %v387 = vunpack.c.h.b16 %v291
      %v388 = vunpack.c.l.b16 %v292
      %v389 = vunpack.c.h.b16 %v292
      %v390 = vunpack.c.l.b16 %v293
      %v391 = vunpack.c.h.b16 %v293
      %v392 = vunpack.c.l.b16 %v294
      %v393 = vunpack.c.h.b16 %v294
      %v394 = vunpack.c.l.b16 %v295
      %v395 = vunpack.c.h.b16 %v295
      %v396 = vunpack.c.l.b16 %v296
      %v397 = vunpack.c.h.b16 %v296
      %v398 = vunpack.c.l.b16 %v297
      %v399 = vunpack.c.h.b16 %v297
      %v400 = vunpack.c.l.b16 %v298
      %v401 = vunpack.c.h.b16 %v298
      %v402 = vunpack.c.l.b16 %v299
      %v403 = vunpack.c.h.b16 %v299
      %v404 = vunpack.c.l.b16 %v300
      %v405 = vunpack.c.h.b16 %v300
      %v406 = vunpack.c.l.b16 %v301
      %v407 = vunpack.c.h.b16 %v301
      %v408 = vunpack.c.l.b16 %v302
      %v409 = vunpack.c.h.b16 %v302
      %v410 = vunpack.c.l.b16 %v303
      %v411 = vunpack.c.h.b16 %v303
      %v412 = vpack.c.b16 %v382, %v380
      %v413 = vpack.c.b16 %v383, %v381
      %v414 = vpack.c.b16 %v386, %v384
      %v415 = vpack.c.b16 %v387, %v385
      %v416 = vpack.c.b16 %v390, %v388
      %v417 = vpack.c.b16 %v391, %v389
      %v418 = vpack.c.b16 %v394, %v392
      %v419 = vpack.c.b16 %v395, %v393
      %v420 = vpack.c.b16 %v398, %v396
      %v421 = vpack.c.b16 %v399, %v397
      %v422 = vpack.c.b16 %v402, %v400
      %v423 = vpack.c.b16 %v403, %v401
      %v424 = vpack.c.b16 %v406, %v404
      %v425 = vpack.c.b16 %v407, %v405
      %v426 = vpack.c.b16 %v410, %v408
      %v427 = vpack.c.b16 %v411, %v409
      %444 = vmatprep.subr.bf16.mxu0 %v413
      %445 = vmatpush1.bf16.msra.mxu0 %v412
      %446 = vmatprep.subr.bf16.mxu0 %v415
      %447 = vmatpush1.bf16.msra.mxu0 %v414
      %448 = vmatprep.subr.bf16.mxu0 %v417
      %449 = vmatpush1.bf16.msra.mxu0 %v416
      %450 = vmatprep.subr.bf16.mxu0 %v419
      %451 = vmatpush1.bf16.msra.mxu0 %v418
      %452 = vmatprep.subr.bf16.mxu0 %v421
      %453 = vmatpush1.bf16.msra.mxu0 %v420
      %454 = vmatprep.subr.bf16.mxu0 %v423
      %455 = vmatpush1.bf16.msra.mxu0 %v422
      %456 = vmatprep.subr.bf16.mxu0 %v425
      %457 = vmatpush1.bf16.msra.mxu0 %v424
      %458 = vmatprep.subr.bf16.mxu0 %v427
      %459 = vmatpush1.bf16.msra.mxu0 %v426
      %460 = vmatprep.subr.bf16.mxu0 0
      %461 = vmatpush1.bf16.msra.mxu0 0
      %462 = vmatprep.subr.bf16.mxu0 0
      %463 = vmatpush1.bf16.msra.mxu0 0
      %464 = vmatprep.subr.bf16.mxu0 0
      %465 = vmatpush1.bf16.msra.mxu0 0
      %466 = vmatprep.subr.bf16.mxu0 0
      %467 = vmatpush1.bf16.msra.mxu0 0
      %468 = vmatprep.subr.bf16.mxu0 0
      %469 = vmatpush1.bf16.msra.mxu0 0
      %470 = vmatprep.subr.bf16.mxu0 0
      %471 = vmatpush1.bf16.msra.mxu0 0
      %472 = vmatprep.subr.bf16.mxu0 0
      %473 = vmatpush1.bf16.msra.mxu0 0
      %474 = vmatprep.subr.bf16.mxu0 0
      %475 = vmatpush1.bf16.msra.mxu0 0
      %476 = vmatprep.mubr.bf16.mxu0 0
      %477 = vmatmul.mubr.bf16.gmra.mrb[0].mxu0 %v348
      %v478 = vpop.f32.mrb[0].mxu0
      %v479 = vadd.f32 %v309, %v478
      %v480 = vpop.f32.mrb[0].mxu0
      %v481 = vadd.f32 %v313, %v480
      %v482 = vpop.f32.mrb[0].mxu0
      %v483 = vadd.f32 %v309, %v482
      %v484 = vpop.f32.mrb[0].mxu0
      %v485 = vadd.f32 %v313, %v484
      %486 = vmatprep.mubr.bf16.mxu0 0
      %487 = vmatmul.mubr.bf16.gmra.mrb[0].mxu0 %v349
      %v488 = vpop.f32.mrb[0].mxu0
      %v489 = vadd.f32 %v309, %v488
      %v490 = vpop.f32.mrb[0].mxu0
      %v491 = vadd.f32 %v313, %v490
      %v492 = vpop.f32.mrb[0].mxu0
      %v493 = vadd.f32 %v309, %v492
      %v494 = vpop.f32.mrb[0].mxu0
      %v495 = vadd.f32 %v313, %v494
      %496 = vmatprep.mubr.bf16.mxu0 0
      %497 = vmatmul.mubr.bf16.gmra.mrb[0].mxu0 %v350
      %v498 = vpop.f32.mrb[0].mxu0
      %v499 = vadd.f32 %v309, %v498
      %v500 = vpop.f32.mrb[0].mxu0
      %v501 = vadd.f32 %v313, %v500
      %v502 = vpop.f32.mrb[0].mxu0
      %v503 = vadd.f32 %v309, %v502
      %v504 = vpop.f32.mrb[0].mxu0
      %v505 = vadd.f32 %v313, %v504
      %506 = vmatprep.mubr.bf16.mxu0 0
      %507 = vmatmul.mubr.bf16.gmra.mrb[0].mxu0 %v351
      %v508 = vpop.f32.mrb[0].mxu0
      %v509 = vadd.f32 %v309, %v508
      %v510 = vpop.f32.mrb[0].mxu0
      %v511 = vadd.f32 %v313, %v510
      %v512 = vpop.f32.mrb[0].mxu0
      %v513 = vadd.f32 %v309, %v512
      %v514 = vpop.f32.mrb[0].mxu0
      %v515 = vadd.f32 %v313, %v514
      %516 = vmatprep.mubr.bf16.mxu0 0
      %517 = vmatmul.mubr.bf16.gmra.mrb[0].mxu0 %v352
      %v518 = vpop.f32.mrb[0].mxu0
      %v519 = vadd.f32 %v309, %v518
      %v520 = vpop.f32.mrb[0].mxu0
      %v521 = vadd.f32 %v313, %v520
      %v522 = vpop.f32.mrb[0].mxu0
      %v523 = vadd.f32 %v309, %v522
      %v524 = vpop.f32.mrb[0].mxu0
      %v525 = vadd.f32 %v313, %v524
      %526 = vmatprep.mubr.bf16.mxu0 0
      %527 = vmatmul.mubr.bf16.gmra.mrb[0].mxu0 %v353
      %v528 = vpop.f32.mrb[0].mxu0
      %v529 = vadd.f32 %v309, %v528
      %v530 = vpop.f32.mrb[0].mxu0
      %v531 = vadd.f32 %v313, %v530
      %v532 = vpop.f32.mrb[0].mxu0
      %v533 = vadd.f32 %v309, %v532
      %v534 = vpop.f32.mrb[0].mxu0
      %v535 = vadd.f32 %v313, %v534
      %536 = vmatprep.mubr.bf16.mxu0 0
      %537 = vmatmul.mubr.bf16.gmra.mrb[0].mxu0 %v354
      %v538 = vpop.f32.mrb[0].mxu0
      %v539 = vadd.f32 %v309, %v538
      %v540 = vpop.f32.mrb[0].mxu0
      %v541 = vadd.f32 %v313, %v540
      %v542 = vpop.f32.mrb[0].mxu0
      %v543 = vadd.f32 %v309, %v542
      %v544 = vpop.f32.mrb[0].mxu0
      %v545 = vadd.f32 %v313, %v544
      %546 = vmatprep.mubr.bf16.mxu0 0
      %547 = vmatmul.mubr.bf16.gmra.mrb[0].mxu0 %v355
      %v548 = vpop.f32.mrb[0].mxu0
      %v549 = vadd.f32 %v309, %v548
      %v550 = vpop.f32.mrb[0].mxu0
      %v551 = vadd.f32 %v313, %v550
      %v552 = vpop.f32.mrb[0].mxu0
      %v553 = vadd.f32 %v309, %v552
      %v554 = vpop.f32.mrb[0].mxu0
      %v555 = vadd.f32 %v313, %v554
      %556 = vdwg.mxu0
      %v557 = vmul.f32 %v479, 0.125
      %v558 = vmul.f32 %v483, 0.125
      %v559 = vmul.f32 %v489, 0.125
      %v560 = vmul.f32 %v493, 0.125
      %v561 = vmul.f32 %v499, 0.125
      %v562 = vmul.f32 %v503, 0.125
      %v563 = vmul.f32 %v509, 0.125
      %v564 = vmul.f32 %v513, 0.125
      %v565 = vmul.f32 %v519, 0.125
      %v566 = vmul.f32 %v523, 0.125
      %v567 = vmul.f32 %v529, 0.125
      %v568 = vmul.f32 %v533, 0.125
      %v569 = vmul.f32 %v539, 0.125
      %v570 = vmul.f32 %v543, 0.125
      %v571 = vmul.f32 %v549, 0.125
      %v572 = vmul.f32 %v553, 0.125
      %v573 = vpack.c.bf16 %v558, %v557
      %v574 = vpack.c.bf16 %v560, %v559
      %v575 = vpack.c.bf16 %v562, %v561
      %v576 = vpack.c.bf16 %v564, %v563
      %v577 = vpack.c.bf16 %v566, %v565
      %v578 = vpack.c.bf16 %v568, %v567
      %v579 = vpack.c.bf16 %v570, %v569
      %v580 = vpack.c.bf16 %v572, %v571
      %v581 = vpack.c.bf16 %v483, %v479
      %v582 = vpack.c.bf16 %v493, %v489
      %v583 = vpack.c.bf16 %v503, %v499
      %v584 = vpack.c.bf16 %v513, %v509
      %v585 = vpack.c.bf16 %v523, %v519
      %v586 = vpack.c.bf16 %v533, %v529
      %v587 = vpack.c.bf16 %v543, %v539
      %v588 = vpack.c.bf16 %v553, %v549
      %v589 = vpack.c.bf16 %v485, %v481
      %v590 = vpack.c.bf16 %v495, %v491
      %v591 = vpack.c.bf16 %v505, %v501
      %v592 = vpack.c.bf16 %v515, %v511
      %v593 = vpack.c.bf16 %v525, %v521
      %v594 = vpack.c.bf16 %v535, %v531
      %v595 = vpack.c.bf16 %v545, %v541
      %v596 = vpack.c.bf16 %v555, %v551
      %v597 = vld [vmem:[%s261] sm:$0x1]
      %v599 = vlaneseq
      %v600 = vshrl.u32 %v599, 7
      %v601 = vsub.s32 0, %v600
      %v602 = vrot.slane %v597, %v601
      %612 = vrot.lane.b32.xlu0 %v581, 64
      %v613 = vpop.permute.xlu0 %612
      %614 = vrot.lane.b32.xlu0 %v582, 64
      %v615 = vpop.permute.xlu0 %614
      %616 = vrot.lane.b32.xlu0 %v583, 64
      %v617 = vpop.permute.xlu0 %616
      %618 = vrot.lane.b32.xlu0 %v584, 64
      %v619 = vpop.permute.xlu0 %618
      %620 = vrot.lane.b32.xlu0 %v585, 64
      %v621 = vpop.permute.xlu0 %620
      %622 = vrot.lane.b32.xlu0 %v586, 64
      %v623 = vpop.permute.xlu0 %622
      %624 = vrot.lane.b32.xlu0 %v587, 64
      %v625 = vpop.permute.xlu0 %624
      %626 = vrot.lane.b32.xlu0 %v588, 64
      %v627 = vpop.permute.xlu0 %626
      %vm628 = vcmask 523264
      %v630 = vsel %vm628, %v573, 0
      %v633 = vsel %vm628, %v574, 0
      %v636 = vsel %vm628, %v575, 0
      %v639 = vsel %vm628, %v576, 0
      %v642 = vsel %vm628, %v577, 0
      %v645 = vsel %vm628, %v578, 0
      %v648 = vsel %vm628, %v579, 0
      %v651 = vsel %vm628, %v580, 0
      %v654 = vsel %vm628, %v613, 0
      %v657 = vsel %vm628, %v615, 0
      %v660 = vsel %vm628, %v617, 0
      %v663 = vsel %vm628, %v619, 0
      %v666 = vsel %vm628, %v621, 0
      %v669 = vsel %vm628, %v623, 0
      %v672 = vsel %vm628, %v625, 0
      %v675 = vsel %vm628, %v627, 0
      %677 = vmatprep.subr.bf16.mxu0 0
      %678 = vmatpush1.bf16.xpose.msra.mxu0 %v654
      %679 = vmatprep.subr.bf16.mxu0 0
      %680 = vmatpush1.bf16.xpose.msra.mxu0 %v657
      %681 = vmatprep.subr.bf16.mxu0 0
      %682 = vmatpush1.bf16.xpose.msra.mxu0 %v660
      %683 = vmatprep.subr.bf16.mxu0 0
      %684 = vmatpush1.bf16.xpose.msra.mxu0 %v663
      %685 = vmatprep.subr.bf16.mxu0 0
      %686 = vmatpush1.bf16.xpose.msra.mxu0 %v666
      %687 = vmatprep.subr.bf16.mxu0 0
      %688 = vmatpush1.bf16.xpose.msra.mxu0 %v669
      %689 = vmatprep.subr.bf16.mxu0 0
      %690 = vmatpush1.bf16.xpose.msra.mxu0 %v672
      %691 = vmatprep.subr.bf16.mxu0 0
      %692 = vmatpush1.bf16.xpose.msra.mxu0 %v675
      %693 = vmatprep.subr.bf16.mxu0 0
      %694 = vmatpush1.bf16.xpose.msra.mxu0 0
      %695 = vmatprep.subr.bf16.mxu0 0
      %696 = vmatpush1.bf16.xpose.msra.mxu0 0
      %697 = vmatprep.subr.bf16.mxu0 0
      %698 = vmatpush1.bf16.xpose.msra.mxu0 0
      %699 = vmatprep.subr.bf16.mxu0 0
      %700 = vmatpush1.bf16.xpose.msra.mxu0 0
      %701 = vmatprep.subr.bf16.mxu0 0
      %702 = vmatpush1.bf16.xpose.msra.mxu0 0
      %703 = vmatprep.subr.bf16.mxu0 0
      %704 = vmatpush1.bf16.xpose.msra.mxu0 0
      %705 = vmatprep.subr.bf16.mxu0 0
      %706 = vmatpush1.bf16.xpose.msra.mxu0 0
      %707 = vmatprep.subr.bf16.mxu0 0
      %708 = vmatpush1.bf16.xpose.msra.mxu0 0
      %709 = vmatprep.mubr.bf16.mxu0 0
      %710 = vmatmul.mubr.bf16.gmra.mrb[0].mxu0 %v630
      %v711 = vpop.f32.mrb[0].mxu0
      %v712 = vadd.f32 %v602, %v711
      %v713 = vpop.f32.mrb[0].mxu0
      %v714 = vpop.f32.mrb[0].mxu0
      %v715 = vadd.f32 %v602, %v714
      %v716 = vpop.f32.mrb[0].mxu0
      %717 = vmatprep.mubr.bf16.mxu0 0
      %718 = vmatmul.mubr.bf16.gmra.mrb[0].mxu0 %v633
      %v719 = vpop.f32.mrb[0].mxu0
      %v720 = vadd.f32 %v602, %v719
      %v721 = vpop.f32.mrb[0].mxu0
      %v722 = vpop.f32.mrb[0].mxu0
      %v723 = vadd.f32 %v602, %v722
      %v724 = vpop.f32.mrb[0].mxu0
      %725 = vmatprep.mubr.bf16.mxu0 0
      %726 = vmatmul.mubr.bf16.gmra.mrb[0].mxu0 %v636
      %v727 = vpop.f32.mrb[0].mxu0
      %v728 = vadd.f32 %v602, %v727
      %v729 = vpop.f32.mrb[0].mxu0
      %v730 = vpop.f32.mrb[0].mxu0
      %v731 = vadd.f32 %v602, %v730
      %v732 = vpop.f32.mrb[0].mxu0
      %733 = vmatprep.mubr.bf16.mxu0 0
      %734 = vmatmul.mubr.bf16.gmra.mrb[0].mxu0 %v639
      %v735 = vpop.f32.mrb[0].mxu0
      %v736 = vadd.f32 %v602, %v735
      %v737 = vpop.f32.mrb[0].mxu0
      %v738 = vpop.f32.mrb[0].mxu0
      %v739 = vadd.f32 %v602, %v738
      %v740 = vpop.f32.mrb[0].mxu0
      %741 = vmatprep.mubr.bf16.mxu0 0
      %742 = vmatmul.mubr.bf16.gmra.mrb[0].mxu0 %v642
      %v743 = vpop.f32.mrb[0].mxu0
      %v744 = vadd.f32 %v602, %v743
      %v745 = vpop.f32.mrb[0].mxu0
      %v746 = vpop.f32.mrb[0].mxu0
      %v747 = vadd.f32 %v602, %v746
      %v748 = vpop.f32.mrb[0].mxu0
      %749 = vmatprep.mubr.bf16.mxu0 0
      %750 = vmatmul.mubr.bf16.gmra.mrb[0].mxu0 %v645
      %v751 = vpop.f32.mrb[0].mxu0
      %v752 = vadd.f32 %v602, %v751
      %v753 = vpop.f32.mrb[0].mxu0
      %v754 = vpop.f32.mrb[0].mxu0
      %v755 = vadd.f32 %v602, %v754
      %v756 = vpop.f32.mrb[0].mxu0
      %757 = vmatprep.mubr.bf16.mxu0 0
      %758 = vmatmul.mubr.bf16.gmra.mrb[0].mxu0 %v648
      %v759 = vpop.f32.mrb[0].mxu0
      %v760 = vadd.f32 %v602, %v759
      %v761 = vpop.f32.mrb[0].mxu0
      %v762 = vpop.f32.mrb[0].mxu0
      %v763 = vadd.f32 %v602, %v762
      %v764 = vpop.f32.mrb[0].mxu0
      %765 = vmatprep.mubr.bf16.mxu0 0
      %766 = vmatmul.mubr.bf16.gmra.mrb[0].mxu0 %v651
      %v767 = vpop.f32.mrb[0].mxu0
      %v768 = vadd.f32 %v602, %v767
      %v769 = vpop.f32.mrb[0].mxu0
      %v770 = vpop.f32.mrb[0].mxu0
      %v771 = vadd.f32 %v602, %v770
      %v772 = vpop.f32.mrb[0].mxu0
      %773 = vdwg.mxu0
      %774 = vmax.xlane.f32.xlu0 %v712
      %v775 = vpop.xlane.xlu0 %774
      %776 = vmax.xlane.f32.xlu0 %v715
      %v777 = vpop.xlane.xlu0 %776
      %778 = vmax.xlane.f32.xlu0 %v720
      %v779 = vpop.xlane.xlu0 %778
      %780 = vmax.xlane.f32.xlu0 %v723
      %v781 = vpop.xlane.xlu0 %780
      %782 = vmax.xlane.f32.xlu0 %v728
      %v783 = vpop.xlane.xlu0 %782
      %784 = vmax.xlane.f32.xlu0 %v731
      %v785 = vpop.xlane.xlu0 %784
      %786 = vmax.xlane.f32.xlu0 %v736
      %v787 = vpop.xlane.xlu0 %786
      %788 = vmax.xlane.f32.xlu0 %v739
      %v789 = vpop.xlane.xlu0 %788
      %790 = vmax.xlane.f32.xlu0 %v744
      %v791 = vpop.xlane.xlu0 %790
      %792 = vmax.xlane.f32.xlu0 %v747
      %v793 = vpop.xlane.xlu0 %792
      %794 = vmax.xlane.f32.xlu0 %v752
      %v795 = vpop.xlane.xlu0 %794
      %796 = vmax.xlane.f32.xlu0 %v755
      %v797 = vpop.xlane.xlu0 %796
      %798 = vmax.xlane.f32.xlu0 %v760
      %v799 = vpop.xlane.xlu0 %798
      %800 = vmax.xlane.f32.xlu0 %v763
      %v801 = vpop.xlane.xlu0 %800
      %802 = vmax.xlane.f32.xlu0 %v768
      %v803 = vpop.xlane.xlu0 %802
      %804 = vmax.xlane.f32.xlu0 %v771
      %v805 = vpop.xlane.xlu0 %804
      %v806 = vsub.f32 %v712, %v775
      %v807 = vsub.f32 %v715, %v777
      %v808 = vsub.f32 %v720, %v779
      %v809 = vsub.f32 %v723, %v781
      %v810 = vsub.f32 %v728, %v783
      %v811 = vsub.f32 %v731, %v785
      %v812 = vsub.f32 %v736, %v787
      %v813 = vsub.f32 %v739, %v789
      %v814 = vsub.f32 %v744, %v791
      %v815 = vsub.f32 %v747, %v793
      %v816 = vsub.f32 %v752, %v795
      %v817 = vsub.f32 %v755, %v797
      %v818 = vsub.f32 %v760, %v799
      %v819 = vsub.f32 %v763, %v801
      %v820 = vsub.f32 %v768, %v803
      %v821 = vsub.f32 %v771, %v805
      %v822 = vmul.f32 %v806, 1.442695
      %v823 = vpow.pop %v822
      %v824 = vmul.f32 %v807, 1.442695
      %v825 = vpow.pop %v824
      %v826 = vmul.f32 %v808, 1.442695
      %v827 = vpow.pop %v826
      %v828 = vmul.f32 %v809, 1.442695
      %v829 = vpow.pop %v828
      %v830 = vmul.f32 %v810, 1.442695
      %v831 = vpow.pop %v830
      %v832 = vmul.f32 %v811, 1.442695
      %v833 = vpow.pop %v832
      %v834 = vmul.f32 %v812, 1.442695
      %v835 = vpow.pop %v834
      %v836 = vmul.f32 %v813, 1.442695
      %v837 = vpow.pop %v836
      %v838 = vmul.f32 %v814, 1.442695
      %v839 = vpow.pop %v838
      %v840 = vmul.f32 %v815, 1.442695
      %v841 = vpow.pop %v840
      %v842 = vmul.f32 %v816, 1.442695
      %v843 = vpow.pop %v842
      %v844 = vmul.f32 %v817, 1.442695
      %v845 = vpow.pop %v844
      %v846 = vmul.f32 %v818, 1.442695
      %v847 = vpow.pop %v846
      %v848 = vmul.f32 %v819, 1.442695
      %v849 = vpow.pop %v848
      %v850 = vmul.f32 %v820, 1.442695
      %v851 = vpow.pop %v850
      %v852 = vmul.f32 %v821, 1.442695
      %v853 = vpow.pop %v852
      %854 = vadd.xlane.f32.xlu0 %v823
      %v855 = vpop.xlane.xlu0 %854
      %856 = vadd.xlane.f32.xlu0 %v825
      %v857 = vpop.xlane.xlu0 %856
      %858 = vadd.xlane.f32.xlu0 %v827
      %v859 = vpop.xlane.xlu0 %858
      %860 = vadd.xlane.f32.xlu0 %v829
      %v861 = vpop.xlane.xlu0 %860
      %862 = vadd.xlane.f32.xlu0 %v831
      %v863 = vpop.xlane.xlu0 %862
      %864 = vadd.xlane.f32.xlu0 %v833
      %v865 = vpop.xlane.xlu0 %864
      %866 = vadd.xlane.f32.xlu0 %v835
      %v867 = vpop.xlane.xlu0 %866
      %868 = vadd.xlane.f32.xlu0 %v837
      %v869 = vpop.xlane.xlu0 %868
      %870 = vadd.xlane.f32.xlu0 %v839
      %v871 = vpop.xlane.xlu0 %870
      %872 = vadd.xlane.f32.xlu0 %v841
      %v873 = vpop.xlane.xlu0 %872
      %874 = vadd.xlane.f32.xlu0 %v843
      %v875 = vpop.xlane.xlu0 %874
      %876 = vadd.xlane.f32.xlu0 %v845
      %v877 = vpop.xlane.xlu0 %876
      %878 = vadd.xlane.f32.xlu0 %v847
      %v879 = vpop.xlane.xlu0 %878
      %880 = vadd.xlane.f32.xlu0 %v849
      %v881 = vpop.xlane.xlu0 %880
      %882 = vadd.xlane.f32.xlu0 %v851
      %v883 = vpop.xlane.xlu0 %882
      %884 = vadd.xlane.f32.xlu0 %v853
      %v885 = vpop.xlane.xlu0 %884
      %v886 = vrcp.pop %v855
      %v887 = vrcp.pop %v857
      %v888 = vrcp.pop %v859
      %v889 = vrcp.pop %v861
      %v890 = vrcp.pop %v863
      %v891 = vrcp.pop %v865
      %v892 = vrcp.pop %v867
      %v893 = vrcp.pop %v869
      %v894 = vrcp.pop %v871
      %v895 = vrcp.pop %v873
      %v896 = vrcp.pop %v875
      %v897 = vrcp.pop %v877
      %v898 = vrcp.pop %v879
      %v899 = vrcp.pop %v881
      %v900 = vrcp.pop %v883
      %v901 = vrcp.pop %v885
      %v902 = vmul.f32 %v823, %v886
      %v903 = vmul.f32 %v825, %v887
      %v904 = vmul.f32 %v827, %v888
      %v905 = vmul.f32 %v829, %v889
      %v906 = vmul.f32 %v831, %v890
      %v907 = vmul.f32 %v833, %v891
      %v908 = vmul.f32 %v835, %v892
      %v909 = vmul.f32 %v837, %v893
      %v910 = vmul.f32 %v839, %v894
      %v911 = vmul.f32 %v841, %v895
      %v912 = vmul.f32 %v843, %v896
      %v913 = vmul.f32 %v845, %v897
      %v914 = vmul.f32 %v847, %v898
      %v915 = vmul.f32 %v849, %v899
      %v916 = vmul.f32 %v851, %v900
      %v917 = vmul.f32 %v853, %v901
      %v918 = vpack.c.bf16 %v903, %v902
      %v919 = vpack.c.bf16 %v905, %v904
      %v920 = vpack.c.bf16 %v907, %v906
      %v921 = vpack.c.bf16 %v909, %v908
      %v922 = vpack.c.bf16 %v911, %v910
      %v923 = vpack.c.bf16 %v913, %v912
      %v924 = vpack.c.bf16 %v915, %v914
      %v925 = vpack.c.bf16 %v917, %v916
      %926 = vmatprep.subr.bf16.mxu0 0
      %927 = vmatpush1.bf16.msra.mxu0 %v589
      %928 = vmatprep.subr.bf16.mxu0 0
      %929 = vmatpush1.bf16.msra.mxu0 %v590
      %930 = vmatprep.subr.bf16.mxu0 0
      %931 = vmatpush1.bf16.msra.mxu0 %v591
      %932 = vmatprep.subr.bf16.mxu0 0
      %933 = vmatpush1.bf16.msra.mxu0 %v592
      %934 = vmatprep.subr.bf16.mxu0 0
      %935 = vmatpush1.bf16.msra.mxu0 %v593
      %936 = vmatprep.subr.bf16.mxu0 0
      %937 = vmatpush1.bf16.msra.mxu0 %v594
      %938 = vmatprep.subr.bf16.mxu0 0
      %939 = vmatpush1.bf16.msra.mxu0 %v595
      %940 = vmatprep.subr.bf16.mxu0 0
      %941 = vmatpush1.bf16.msra.mxu0 %v596
      %942 = vmatprep.subr.bf16.mxu0 0
      %943 = vmatpush1.bf16.msra.mxu0 0
      %944 = vmatprep.subr.bf16.mxu0 0
      %945 = vmatpush1.bf16.msra.mxu0 0
      %946 = vmatprep.subr.bf16.mxu0 0
      %947 = vmatpush1.bf16.msra.mxu0 0
      %948 = vmatprep.subr.bf16.mxu0 0
      %949 = vmatpush1.bf16.msra.mxu0 0
      %950 = vmatprep.subr.bf16.mxu0 0
      %951 = vmatpush1.bf16.msra.mxu0 0
      %952 = vmatprep.subr.bf16.mxu0 0
      %953 = vmatpush1.bf16.msra.mxu0 0
      %954 = vmatprep.subr.bf16.mxu0 0
      %955 = vmatpush1.bf16.msra.mxu0 0
      %956 = vmatprep.subr.bf16.mxu0 0
      %957 = vmatpush1.bf16.msra.mxu0 0
      %958 = vmatprep.mubr.bf16.mxu0 0
      %959 = vmatmul.mubr.bf16.gmra.mrb[0].mxu0 %v918
      %v960 = vpop.f32.mrb[0].mxu0
      %v961 = vadd.f32 0.0, %v960
      %v962 = vpop.f32.mrb[0].mxu0
      %v963 = vpop.f32.mrb[0].mxu0
      %v964 = vadd.f32 0.0, %v963
      %v965 = vpop.f32.mrb[0].mxu0
      %966 = vmatprep.mubr.bf16.mxu0 0
      %967 = vmatmul.mubr.bf16.gmra.mrb[0].mxu0 %v919
      %v968 = vpop.f32.mrb[0].mxu0
      %v969 = vadd.f32 0.0, %v968
      %v970 = vpop.f32.mrb[0].mxu0
      %v971 = vpop.f32.mrb[0].mxu0
      %v972 = vadd.f32 0.0, %v971
      %v973 = vpop.f32.mrb[0].mxu0
      %974 = vmatprep.mubr.bf16.mxu0 0
      %975 = vmatmul.mubr.bf16.gmra.mrb[0].mxu0 %v920
      %v976 = vpop.f32.mrb[0].mxu0
      %v977 = vadd.f32 0.0, %v976
      %v978 = vpop.f32.mrb[0].mxu0
      %v979 = vpop.f32.mrb[0].mxu0
      %v980 = vadd.f32 0.0, %v979
      %v981 = vpop.f32.mrb[0].mxu0
      %982 = vmatprep.mubr.bf16.mxu0 0
      %983 = vmatmul.mubr.bf16.gmra.mrb[0].mxu0 %v921
      %v984 = vpop.f32.mrb[0].mxu0
      %v985 = vadd.f32 0.0, %v984
      %v986 = vpop.f32.mrb[0].mxu0
      %v987 = vpop.f32.mrb[0].mxu0
      %v988 = vadd.f32 0.0, %v987
      %v989 = vpop.f32.mrb[0].mxu0
      %990 = vmatprep.mubr.bf16.mxu0 0
      %991 = vmatmul.mubr.bf16.gmra.mrb[0].mxu0 %v922
      %v992 = vpop.f32.mrb[0].mxu0
      %v993 = vadd.f32 0.0, %v992
      %v994 = vpop.f32.mrb[0].mxu0
      %v995 = vpop.f32.mrb[0].mxu0
      %v996 = vadd.f32 0.0, %v995
      %v997 = vpop.f32.mrb[0].mxu0
      %998 = vmatprep.mubr.bf16.mxu0 0
      %999 = vmatmul.mubr.bf16.gmra.mrb[0].mxu0 %v923
      %v1000 = vpop.f32.mrb[0].mxu0
      %v1001 = vadd.f32 0.0, %v1000
      %v1002 = vpop.f32.mrb[0].mxu0
      %v1003 = vpop.f32.mrb[0].mxu0
      %v1004 = vadd.f32 0.0, %v1003
      %v1005 = vpop.f32.mrb[0].mxu0
      %1006 = vmatprep.mubr.bf16.mxu0 0
      %1007 = vmatmul.mubr.bf16.gmra.mrb[0].mxu0 %v924
      %v1008 = vpop.f32.mrb[0].mxu0
      %v1009 = vadd.f32 0.0, %v1008
      %v1010 = vpop.f32.mrb[0].mxu0
      %v1011 = vpop.f32.mrb[0].mxu0
      %v1012 = vadd.f32 0.0, %v1011
      %v1013 = vpop.f32.mrb[0].mxu0
      %1014 = vmatprep.mubr.bf16.mxu0 0
      %1015 = vmatmul.mubr.bf16.gmra.mrb[0].mxu0 %v925
      %v1016 = vpop.f32.mrb[0].mxu0
      %v1017 = vadd.f32 0.0, %v1016
      %v1018 = vpop.f32.mrb[0].mxu0
      %v1019 = vpop.f32.mrb[0].mxu0
      %v1020 = vadd.f32 0.0, %v1019
      %v1021 = vpop.f32.mrb[0].mxu0
      %1022 = vdwg.mxu0
      %v1023 = vpack.c.bf16 %v964, %v961
      %v1024 = vpack.c.bf16 %v972, %v969
      %v1025 = vpack.c.bf16 %v980, %v977
      %v1026 = vpack.c.bf16 %v988, %v985
      %v1027 = vpack.c.bf16 %v996, %v993
      %v1028 = vpack.c.bf16 %v1004, %v1001
      %v1029 = vpack.c.bf16 %v1012, %v1009
      %v1030 = vpack.c.bf16 %v1020, %v1017
      %v1039 = vunpack.c.l.b16 %v1023
      %v1040 = vunpack.c.h.b16 %v1023
      %v1041 = vunpack.c.l.b16 %v1024
      %v1042 = vunpack.c.h.b16 %v1024
      %v1043 = vunpack.c.l.b16 %v1025
      %v1044 = vunpack.c.h.b16 %v1025
      %v1045 = vunpack.c.l.b16 %v1026
      %v1046 = vunpack.c.h.b16 %v1026
      %v1047 = vunpack.c.l.b16 %v1027
      %v1048 = vunpack.c.h.b16 %v1027
      %v1049 = vunpack.c.l.b16 %v1028
      %v1050 = vunpack.c.h.b16 %v1028
      %v1051 = vunpack.c.l.b16 %v1029
      %v1052 = vunpack.c.h.b16 %v1029
      %v1053 = vunpack.c.l.b16 %v1030
      %v1054 = vunpack.c.h.b16 %v1030
      %v1055 = vpack.c.b16 %v1039, %v1039
      %v1056 = vpack.c.b16 %v1040, %v1040
      %v1057 = vpack.c.b16 %v1041, %v1041
      %v1058 = vpack.c.b16 %v1042, %v1042
      %v1059 = vpack.c.b16 %v1043, %v1043
      %v1060 = vpack.c.b16 %v1044, %v1044
      %v1061 = vpack.c.b16 %v1045, %v1045
      %v1062 = vpack.c.b16 %v1046, %v1046
      %v1063 = vpack.c.b16 %v1047, %v1047
      %v1064 = vpack.c.b16 %v1048, %v1048
      %v1065 = vpack.c.b16 %v1049, %v1049
      %v1066 = vpack.c.b16 %v1050, %v1050
      %v1067 = vpack.c.b16 %v1051, %v1051
      %v1068 = vpack.c.b16 %v1052, %v1052
      %v1069 = vpack.c.b16 %v1053, %v1053
      %v1070 = vpack.c.b16 %v1054, %v1054
      %vm1087 = vcmask 519168
      %1088 = vst.msk [vmem:[%s270] sm:$0xf] %vm1087, %v1055
      %1089 = vst.msk [vmem:[%s270 + $0x4] sm:$0xf] %vm1087, %v1056
      %1090 = vst.msk [vmem:[%s270 + $0x8] sm:$0xf] %vm1087, %v1057
      %1091 = vst.msk [vmem:[%s270 + $0xc] sm:$0xf] %vm1087, %v1058
      %1092 = vst.msk [vmem:[%s270 + $0x10] sm:$0xf] %vm1087, %v1059
      %1093 = vst.msk [vmem:[%s270 + $0x14] sm:$0xf] %vm1087, %v1060
      %1094 = vst.msk [vmem:[%s270 + $0x18] sm:$0xf] %vm1087, %v1061
      %1095 = vst.msk [vmem:[%s270 + $0x1c] sm:$0xf] %vm1087, %v1062
      %1096 = vst.msk [vmem:[%s270 + $0x20] sm:$0xf] %vm1087, %v1063
      %1097 = vst.msk [vmem:[%s270 + $0x24] sm:$0xf] %vm1087, %v1064
      %1098 = vst.msk [vmem:[%s270 + $0x28] sm:$0xf] %vm1087, %v1065
      %1099 = vst.msk [vmem:[%s270 + $0x2c] sm:$0xf] %vm1087, %v1066
      %1100 = vst.msk [vmem:[%s270 + $0x30] sm:$0xf] %vm1087, %v1067
      %1101 = vst.msk [vmem:[%s270 + $0x34] sm:$0xf] %vm1087, %v1068
      %1102 = vst.msk [vmem:[%s270 + $0x38] sm:$0xf] %vm1087, %v1069
      %1103 = vst.msk [vmem:[%s270 + $0x3c] sm:$0xf] %vm1087, %v1070
      %p1104 = scmp.lt.s32.totalorder %s19, 1
      %s1105 = scalar_select %p1104, %s19, 1
      %p1106 = scmp.lt.s32.totalorder %s20, 1
      %s1107 = scalar_select %p1106, %s20, 1
      %s1108 = smul.addr %s1107, 16
      %s1109 = smul.addr %s1105, 32
      %s1110 = sadd.s32 %s1108, %s1109
      %s1111 = smul.addr %s1110, 4
      %s1112 = scalar_lea.vmem %s4, %s1111
      // Predicated region
      $region37: #{bert_back_forward.9} parent=35 // pred_check
        %p1113 = pneg %p151
      $region38: #{bert_back_forward.9} parent=35 // pred_check_branch
        %1115 = sbr.rel (%p1113) target = $region40
      $region39: #{bert_back_forward.9} parent=35 // pred_region
        _
      $region40: #{bert_back_forward.9} parent=35 // pred_fallthru
        _
    $region36: #{bert_back_forward.9} parent=5 // pred_fallthru
      _
    %p1116 = scmp.le.s32.totalorder 2, %s10
    // Predicated region
    $region41: #{bert_back_forward.9} parent=5 // pred_check
      %p1117 = pneg %p1116
    $region42: #{bert_back_forward.9} parent=5 // pred_check_branch
      %1119 = sbr.rel (%p1117) target = $region44
    $region43: #{bert_back_forward.9} parent=5 // pred_region
      %s1120 = ssub.s32 %s10, 2
      // Predicated region
      $region45: #{bert_back_forward.9} parent=43 // pred_check
        %p1121 = pneg %p157
      $region46: #{bert_back_forward.9} parent=43 // pred_check_branch
        %1123 = sbr.rel (%p1121) target = $region48
      $region47: #{bert_back_forward.9} parent=43 // pred_region
        %p1124 = scmp.lt.s32.totalorder %s21, 1
        %s1125 = scalar_select %p1124, %s21, 1
        %p1126 = scmp.lt.s32.totalorder %s22, 1
        %s1127 = scalar_select %p1126, %s22, 1
        %s1128 = smul.addr %s1127, 16
        %s1129 = smul.addr %s1125, 32
        %s1130 = sadd.s32 %s1128, %s1129
        %s1131 = smul.addr %s1130, 4
        %s1132 = scalar_lea.vmem %s4, %s1131
      $region48: #{bert_back_forward.9} parent=43 // pred_fallthru
        _
    $region44: #{bert_back_forward.9} parent=5 // pred_fallthru
      _
  $region6: #{bert_back_forward.9} parent=0 // loop_footer
    %s14 = sadd.s32 1, %s10
  $region7: #{bert_back_forward.9} parent=0 // loop_footer_branch
    %9 = sbr.rel target = $region3
  $region8: #{bert_back_forward.9} parent=0 // loop_exit
    _

// kernel: bert_back_forward.10
$region0: #{bert_back_forward.10}
  #allocation0 [shape = 'u32[]', space=smem, size = 0x4, offset = 0x4, fixed_abs, tag = 'smem constant byte address 0x4 - core index']
  #allocation1 [shape = 'u32[144,128]{1,0:T(1,128)}', space=vmem, size = 0x12000, scoped, tag = 'internal scratch']
  %s0 = inlined_call_operand.vmem [shape: bf16[256,128], index: 0, kind: input, shape index: {}]
  %s1 = inlined_call_operand.vmem [shape: bf16[128,128], index: 1, kind: input, shape index: {}]
  %s2 = inlined_call_operand.vmem [shape: f32[1,128], index: 2, kind: input, shape index: {}]
  %s3 = inlined_call_operand.vmem [shape: bf16[256,128], index: 3, kind: input, shape index: {}]
  %s4 = inlined_call_operand.vmem [shape: f32[1,128], index: 4, kind: input, shape index: {}]
  %s5 = inlined_call_operand.vmem [shape: f32[1,128], index: 5, kind: input, shape index: {}]
  %s6 = inlined_call_operand.vmem [shape: bf16[256,128], index: 6, kind: output, shape index: {}]
  %s7 = sld [smem:[#allocation0]]
  $region34: #{bert_back_forward.10} parent=0
    _
  %s9 = ssub.s32 1, %s7
  %s10 = scalar_select 0, %s9, %s7
  // Predicated region
  $region2: #{bert_back_forward.10} parent=0 // pred_check
    _
  $region3: #{bert_back_forward.10} parent=0 // pred_check_branch
    %12 = sbr.rel (0) target = $region5
  $region4: #{bert_back_forward.10} parent=0 // pred_region
    _
  $region5: #{bert_back_forward.10} parent=0 // pred_fallthru
    _
  // Predicated region
  $region6: #{bert_back_forward.10} parent=0 // pred_check
    _
  $region7: #{bert_back_forward.10} parent=0 // pred_check_branch
    %14 = sbr.rel (0) target = $region9
  $region8: #{bert_back_forward.10} parent=0 // pred_region
    _
  $region9: #{bert_back_forward.10} parent=0 // pred_fallthru
    _
  // Predicated region
  $region10: #{bert_back_forward.10} parent=0 // pred_check
    _
  $region11: #{bert_back_forward.10} parent=0 // pred_check_branch
    %16 = sbr.rel (0) target = $region13
  $region12: #{bert_back_forward.10} parent=0 // pred_region
    _
  $region13: #{bert_back_forward.10} parent=0 // pred_fallthru
    _
  // Predicated region
  $region14: #{bert_back_forward.10} parent=0 // pred_check
    _
  $region15: #{bert_back_forward.10} parent=0 // pred_check_branch
    %18 = sbr.rel (0) target = $region17
  $region16: #{bert_back_forward.10} parent=0 // pred_region
    _
  $region17: #{bert_back_forward.10} parent=0 // pred_fallthru
    _
  // Predicated region
  $region18: #{bert_back_forward.10} parent=0 // pred_check
    _
  $region19: #{bert_back_forward.10} parent=0 // pred_check_branch
    %20 = sbr.rel (0) target = $region21
  $region20: #{bert_back_forward.10} parent=0 // pred_region
    _
  $region21: #{bert_back_forward.10} parent=0 // pred_fallthru
    _
  // Predicated region
  $region22: #{bert_back_forward.10} parent=0 // pred_check
    _
  $region23: #{bert_back_forward.10} parent=0 // pred_check_branch
    %22 = sbr.rel (0) target = $region25
  $region24: #{bert_back_forward.10} parent=0 // pred_region
    _
  $region25: #{bert_back_forward.10} parent=0 // pred_fallthru
    _
  %v24 = vld [vmem:[%s0] sm:$0xf]
  %v25 = vld [vmem:[%s0 + $0x4] sm:$0xf]
  %v26 = vld [vmem:[%s0 + $0x8] sm:$0xf]
  %v27 = vld [vmem:[%s0 + $0xc] sm:$0xf]
  %v28 = vld [vmem:[%s0 + $0x10] sm:$0xf]
  %v29 = vld [vmem:[%s0 + $0x14] sm:$0xf]
  %v30 = vld [vmem:[%s0 + $0x18] sm:$0xf]
  %v31 = vld [vmem:[%s0 + $0x1c] sm:$0xf]
  %v32 = vld [vmem:[%s0 + $0x20] sm:$0xf]
  %v33 = vld [vmem:[%s0 + $0x24] sm:$0xf]
  %v34 = vld [vmem:[%s0 + $0x28] sm:$0xf]
  %v35 = vld [vmem:[%s0 + $0x2c] sm:$0xf]
  %v36 = vld [vmem:[%s0 + $0x30] sm:$0xf]
  %v37 = vld [vmem:[%s0 + $0x34] sm:$0xf]
  %v38 = vld [vmem:[%s0 + $0x38] sm:$0xf]
  %v39 = vld [vmem:[%s0 + $0x3c] sm:$0xf]
  %v40 = vld [vmem:[%s0 + $0x40] sm:$0xf]
  %v41 = vld [vmem:[%s0 + $0x44] sm:$0xf]
  %v42 = vld [vmem:[%s0 + $0x48] sm:$0xf]
  %v43 = vld [vmem:[%s0 + $0x4c] sm:$0xf]
  %v44 = vld [vmem:[%s0 + $0x50] sm:$0xf]
  %v45 = vld [vmem:[%s0 + $0x54] sm:$0xf]
  %v46 = vld [vmem:[%s0 + $0x58] sm:$0xf]
  %v47 = vld [vmem:[%s0 + $0x5c] sm:$0xf]
  %v48 = vld [vmem:[%s0 + $0x60] sm:$0xf]
  %v49 = vld [vmem:[%s0 + $0x64] sm:$0xf]
  %v50 = vld [vmem:[%s0 + $0x68] sm:$0xf]
  %v51 = vld [vmem:[%s0 + $0x6c] sm:$0xf]
  %v52 = vld [vmem:[%s0 + $0x70] sm:$0xf]
  %v53 = vld [vmem:[%s0 + $0x74] sm:$0xf]
  %v54 = vld [vmem:[%s0 + $0x78] sm:$0xf]
  %v55 = vld [vmem:[%s0 + $0x7c] sm:$0xf]
  %v56 = vld [vmem:[%s1] sm:$0xf]
  %v57 = vld [vmem:[%s1 + $0x4] sm:$0xf]
  %v58 = vld [vmem:[%s1 + $0x8] sm:$0xf]
  %v59 = vld [vmem:[%s1 + $0xc] sm:$0xf]
  %v60 = vld [vmem:[%s1 + $0x10] sm:$0xf]
  %v61 = vld [vmem:[%s1 + $0x14] sm:$0xf]
  %v62 = vld [vmem:[%s1 + $0x18] sm:$0xf]
  %v63 = vld [vmem:[%s1 + $0x1c] sm:$0xf]
  %v64 = vld [vmem:[%s1 + $0x20] sm:$0xf]
  %v65 = vld [vmem:[%s1 + $0x24] sm:$0xf]
  %v66 = vld [vmem:[%s1 + $0x28] sm:$0xf]
  %v67 = vld [vmem:[%s1 + $0x2c] sm:$0xf]
  %v68 = vld [vmem:[%s1 + $0x30] sm:$0xf]
  %v69 = vld [vmem:[%s1 + $0x34] sm:$0xf]
  %v70 = vld [vmem:[%s1 + $0x38] sm:$0xf]
  %v71 = vld [vmem:[%s1 + $0x3c] sm:$0xf]
  %v72 = vld [vmem:[%s2] sm:$0x1]
  %v74 = vlaneseq
  %v75 = vshrl.u32 %v74, 7
  %v76 = vsub.s32 0, %v75
  %v77 = vrot.slane %v72, %v76
  %v111 = vunpack.c.l.b16 %v24
  %v112 = vunpack.c.l.b16 %v25
  %v113 = vunpack.c.l.b16 %v26
  %v114 = vunpack.c.l.b16 %v27
  %v115 = vunpack.c.l.b16 %v28
  %v116 = vunpack.c.l.b16 %v29
  %v117 = vunpack.c.l.b16 %v30
  %v118 = vunpack.c.l.b16 %v31
  %v119 = vunpack.c.l.b16 %v32
  %v120 = vunpack.c.l.b16 %v33
  %v121 = vunpack.c.l.b16 %v34
  %v122 = vunpack.c.l.b16 %v35
  %v123 = vunpack.c.l.b16 %v36
  %v124 = vunpack.c.l.b16 %v37
  %v125 = vunpack.c.l.b16 %v38
  %v126 = vunpack.c.l.b16 %v39
  %v127 = vunpack.c.l.b16 %v40
  %v128 = vunpack.c.l.b16 %v41
  %v129 = vunpack.c.l.b16 %v42
  %v130 = vunpack.c.l.b16 %v43
  %v131 = vunpack.c.l.b16 %v44
  %v132 = vunpack.c.l.b16 %v45
  %v133 = vunpack.c.l.b16 %v46
  %v134 = vunpack.c.l.b16 %v47
  %v135 = vunpack.c.l.b16 %v48
  %v136 = vunpack.c.l.b16 %v49
  %v137 = vunpack.c.l.b16 %v50
  %v138 = vunpack.c.l.b16 %v51
  %v139 = vunpack.c.l.b16 %v52
  %v140 = vunpack.c.l.b16 %v53
  %v141 = vunpack.c.l.b16 %v54
  %v142 = vunpack.c.l.b16 %v55
  %v143 = vpack.c.b16 %v112, %v111
  %v144 = vpack.c.b16 %v114, %v113
  %v145 = vpack.c.b16 %v116, %v115
  %v146 = vpack.c.b16 %v118, %v117
  %v147 = vpack.c.b16 %v120, %v119
  %v148 = vpack.c.b16 %v122, %v121
  %v149 = vpack.c.b16 %v124, %v123
  %v150 = vpack.c.b16 %v126, %v125
  %v151 = vpack.c.b16 %v128, %v127
  %v152 = vpack.c.b16 %v130, %v129
  %v153 = vpack.c.b16 %v132, %v131
  %v154 = vpack.c.b16 %v134, %v133
  %v155 = vpack.c.b16 %v136, %v135
  %v156 = vpack.c.b16 %v138, %v137
  %v157 = vpack.c.b16 %v140, %v139
  %v158 = vpack.c.b16 %v142, %v141
  %v191 = vunpack.c.l.b16 %v56
  %v192 = vunpack.c.l.b16 %v57
  %v193 = vunpack.c.l.b16 %v58
  %v194 = vunpack.c.l.b16 %v59
  %v195 = vunpack.c.l.b16 %v60
  %v196 = vunpack.c.l.b16 %v61
  %v197 = vunpack.c.l.b16 %v62
  %v198 = vunpack.c.l.b16 %v63
  %v199 = vunpack.c.l.b16 %v64
  %v200 = vunpack.c.l.b16 %v65
  %v201 = vunpack.c.l.b16 %v66
  %v202 = vunpack.c.l.b16 %v67
  %v203 = vunpack.c.l.b16 %v68
  %v204 = vunpack.c.l.b16 %v69
  %v205 = vunpack.c.l.b16 %v70
  %v206 = vunpack.c.l.b16 %v71
  %v207 = vpack.c.b16 %v192, %v191
  %v208 = vpack.c.b16 %v194, %v193
  %v209 = vpack.c.b16 %v196, %v195
  %v210 = vpack.c.b16 %v198, %v197
  %v211 = vpack.c.b16 %v200, %v199
  %v212 = vpack.c.b16 %v202, %v201
  %v213 = vpack.c.b16 %v204, %v203
  %v214 = vpack.c.b16 %v206, %v205
  %223 = vmatprep.subr.bf16.mxu0 0
  %224 = vmatpush1.bf16.msra.mxu0 %v207
  %225 = vmatprep.subr.bf16.mxu0 0
  %226 = vmatpush1.bf16.msra.mxu0 %v208
  %227 = vmatprep.subr.bf16.mxu0 0
  %228 = vmatpush1.bf16.msra.mxu0 %v209
  %229 = vmatprep.subr.bf16.mxu0 0
  %230 = vmatpush1.bf16.msra.mxu0 %v210
  %231 = vmatprep.subr.bf16.mxu0 0
  %232 = vmatpush1.bf16.msra.mxu0 %v211
  %233 = vmatprep.subr.bf16.mxu0 0
  %234 = vmatpush1.bf16.msra.mxu0 %v212
  %235 = vmatprep.subr.bf16.mxu0 0
  %236 = vmatpush1.bf16.msra.mxu0 %v213
  %237 = vmatprep.subr.bf16.mxu0 0
  %238 = vmatpush1.bf16.msra.mxu0 %v214
  %239 = vmatprep.subr.bf16.mxu0 0
  %240 = vmatpush1.bf16.msra.mxu0 0
  %241 = vmatprep.subr.bf16.mxu0 0
  %242 = vmatpush1.bf16.msra.mxu0 0
  %243 = vmatprep.subr.bf16.mxu0 0
  %244 = vmatpush1.bf16.msra.mxu0 0
  %245 = vmatprep.subr.bf16.mxu0 0
  %246 = vmatpush1.bf16.msra.mxu0 0
  %247 = vmatprep.subr.bf16.mxu0 0
  %248 = vmatpush1.bf16.msra.mxu0 0
  %249 = vmatprep.subr.bf16.mxu0 0
  %250 = vmatpush1.bf16.msra.mxu0 0
  %251 = vmatprep.subr.bf16.mxu0 0
  %252 = vmatpush1.bf16.msra.mxu0 0
  %253 = vmatprep.subr.bf16.mxu0 0
  %254 = vmatpush1.bf16.msra.mxu0 0
  %255 = vmatprep.mubr.bf16.mxu0 0
  %256 = vmatmul.mubr.bf16.gmra.mrb[0].mxu0 %v143
  %v257 = vpop.f32.mrb[0].mxu0
  %v258 = vadd.f32 %v77, %v257
  %v259 = vpop.f32.mrb[0].mxu0
  %v260 = vpop.f32.mrb[0].mxu0
  %v261 = vadd.f32 %v77, %v260
  %v262 = vpop.f32.mrb[0].mxu0
  %263 = vmatprep.mubr.bf16.mxu0 0
  %264 = vmatmul.mubr.bf16.gmra.mrb[0].mxu0 %v144
  %v265 = vpop.f32.mrb[0].mxu0
  %v266 = vadd.f32 %v77, %v265
  %v267 = vpop.f32.mrb[0].mxu0
  %v268 = vpop.f32.mrb[0].mxu0
  %v269 = vadd.f32 %v77, %v268
  %v270 = vpop.f32.mrb[0].mxu0
  %271 = vmatprep.mubr.bf16.mxu0 0
  %272 = vmatmul.mubr.bf16.gmra.mrb[0].mxu0 %v145
  %v273 = vpop.f32.mrb[0].mxu0
  %v274 = vadd.f32 %v77, %v273
  %v275 = vpop.f32.mrb[0].mxu0
  %v276 = vpop.f32.mrb[0].mxu0
  %v277 = vadd.f32 %v77, %v276
  %v278 = vpop.f32.mrb[0].mxu0
  %279 = vmatprep.mubr.bf16.mxu0 0
  %280 = vmatmul.mubr.bf16.gmra.mrb[0].mxu0 %v146
  %v281 = vpop.f32.mrb[0].mxu0
  %v282 = vadd.f32 %v77, %v281
  %v283 = vpop.f32.mrb[0].mxu0
  %v284 = vpop.f32.mrb[0].mxu0
  %v285 = vadd.f32 %v77, %v284
  %v286 = vpop.f32.mrb[0].mxu0
  %287 = vmatprep.mubr.bf16.mxu0 0
  %288 = vmatmul.mubr.bf16.gmra.mrb[0].mxu0 %v147
  %v289 = vpop.f32.mrb[0].mxu0
  %v290 = vadd.f32 %v77, %v289
  %v291 = vpop.f32.mrb[0].mxu0
  %v292 = vpop.f32.mrb[0].mxu0
  %v293 = vadd.f32 %v77, %v292
  %v294 = vpop.f32.mrb[0].mxu0
  %295 = vmatprep.mubr.bf16.mxu0 0
  %296 = vmatmul.mubr.bf16.gmra.mrb[0].mxu0 %v148
  %v297 = vpop.f32.mrb[0].mxu0
  %v298 = vadd.f32 %v77, %v297
  %v299 = vpop.f32.mrb[0].mxu0
  %v300 = vpop.f32.mrb[0].mxu0
  %v301 = vadd.f32 %v77, %v300
  %v302 = vpop.f32.mrb[0].mxu0
  %303 = vmatprep.mubr.bf16.mxu0 0
  %304 = vmatmul.mubr.bf16.gmra.mrb[0].mxu0 %v149
  %v305 = vpop.f32.mrb[0].mxu0
  %v306 = vadd.f32 %v77, %v305
  %v307 = vpop.f32.mrb[0].mxu0
  %v308 = vpop.f32.mrb[0].mxu0
  %v309 = vadd.f32 %v77, %v308
  %v310 = vpop.f32.mrb[0].mxu0
  %311 = vmatprep.mubr.bf16.mxu0 0
  %312 = vmatmul.mubr.bf16.gmra.mrb[0].mxu0 %v150
  %v313 = vpop.f32.mrb[0].mxu0
  %v314 = vadd.f32 %v77, %v313
  %v315 = vpop.f32.mrb[0].mxu0
  %v316 = vpop.f32.mrb[0].mxu0
  %v317 = vadd.f32 %v77, %v316
  %v318 = vpop.f32.mrb[0].mxu0
  %319 = vmatprep.mubr.bf16.mxu0 0
  %320 = vmatmul.mubr.bf16.gmra.mrb[0].mxu0 %v151
  %v321 = vpop.f32.mrb[0].mxu0
  %v322 = vadd.f32 %v77, %v321
  %v323 = vpop.f32.mrb[0].mxu0
  %v324 = vpop.f32.mrb[0].mxu0
  %v325 = vadd.f32 %v77, %v324
  %v326 = vpop.f32.mrb[0].mxu0
  %327 = vmatprep.mubr.bf16.mxu0 0
  %328 = vmatmul.mubr.bf16.gmra.mrb[0].mxu0 %v152
  %v329 = vpop.f32.mrb[0].mxu0
  %v330 = vadd.f32 %v77, %v329
  %v331 = vpop.f32.mrb[0].mxu0
  %v332 = vpop.f32.mrb[0].mxu0
  %v333 = vadd.f32 %v77, %v332
  %v334 = vpop.f32.mrb[0].mxu0
  %335 = vmatprep.mubr.bf16.mxu0 0
  %336 = vmatmul.mubr.bf16.gmra.mrb[0].mxu0 %v153
  %v337 = vpop.f32.mrb[0].mxu0
  %v338 = vadd.f32 %v77, %v337
  %v339 = vpop.f32.mrb[0].mxu0
  %v340 = vpop.f32.mrb[0].mxu0
  %v341 = vadd.f32 %v77, %v340
  %v342 = vpop.f32.mrb[0].mxu0
  %343 = vmatprep.mubr.bf16.mxu0 0
  %344 = vmatmul.mubr.bf16.gmra.mrb[0].mxu0 %v154
  %v345 = vpop.f32.mrb[0].mxu0
  %v346 = vadd.f32 %v77, %v345
  %v347 = vpop.f32.mrb[0].mxu0
  %v348 = vpop.f32.mrb[0].mxu0
  %v349 = vadd.f32 %v77, %v348
  %v350 = vpop.f32.mrb[0].mxu0
  %351 = vmatprep.mubr.bf16.mxu0 0
  %352 = vmatmul.mubr.bf16.gmra.mrb[0].mxu0 %v155
  %v353 = vpop.f32.mrb[0].mxu0
  %v354 = vadd.f32 %v77, %v353
  %v355 = vpop.f32.mrb[0].mxu0
  %v356 = vpop.f32.mrb[0].mxu0
  %v357 = vadd.f32 %v77, %v356
  %v358 = vpop.f32.mrb[0].mxu0
  %359 = vmatprep.mubr.bf16.mxu0 0
  %360 = vmatmul.mubr.bf16.gmra.mrb[0].mxu0 %v156
  %v361 = vpop.f32.mrb[0].mxu0
  %v362 = vadd.f32 %v77, %v361
  %v363 = vpop.f32.mrb[0].mxu0
  %v364 = vpop.f32.mrb[0].mxu0
  %v365 = vadd.f32 %v77, %v364
  %v366 = vpop.f32.mrb[0].mxu0
  %367 = vmatprep.mubr.bf16.mxu0 0
  %368 = vmatmul.mubr.bf16.gmra.mrb[0].mxu0 %v157
  %v369 = vpop.f32.mrb[0].mxu0
  %v370 = vadd.f32 %v77, %v369
  %v371 = vpop.f32.mrb[0].mxu0
  %v372 = vpop.f32.mrb[0].mxu0
  %v373 = vadd.f32 %v77, %v372
  %v374 = vpop.f32.mrb[0].mxu0
  %375 = vmatprep.mubr.bf16.mxu0 0
  %376 = vmatmul.mubr.bf16.gmra.mrb[0].mxu0 %v158
  %v377 = vpop.f32.mrb[0].mxu0
  %v378 = vadd.f32 %v77, %v377
  %v379 = vpop.f32.mrb[0].mxu0
  %v380 = vpop.f32.mrb[0].mxu0
  %v381 = vadd.f32 %v77, %v380
  %v382 = vpop.f32.mrb[0].mxu0
  %383 = vdwg.mxu0
  %v384 = vld [vmem:[%s3] sm:$0xf]
  %v385 = vld [vmem:[%s3 + $0x4] sm:$0xf]
  %v386 = vld [vmem:[%s3 + $0x8] sm:$0xf]
  %v387 = vld [vmem:[%s3 + $0xc] sm:$0xf]
  %v388 = vld [vmem:[%s3 + $0x10] sm:$0xf]
  %v389 = vld [vmem:[%s3 + $0x14] sm:$0xf]
  %v390 = vld [vmem:[%s3 + $0x18] sm:$0xf]
  %v391 = vld [vmem:[%s3 + $0x1c] sm:$0xf]
  %v392 = vld [vmem:[%s3 + $0x20] sm:$0xf]
  %v393 = vld [vmem:[%s3 + $0x24] sm:$0xf]
  %v394 = vld [vmem:[%s3 + $0x28] sm:$0xf]
  %v395 = vld [vmem:[%s3 + $0x2c] sm:$0xf]
  %v396 = vld [vmem:[%s3 + $0x30] sm:$0xf]
  %v397 = vld [vmem:[%s3 + $0x34] sm:$0xf]
  %v398 = vld [vmem:[%s3 + $0x38] sm:$0xf]
  %v399 = vld [vmem:[%s3 + $0x3c] sm:$0xf]
  %v400 = vld [vmem:[%s3 + $0x40] sm:$0xf]
  %v401 = vld [vmem:[%s3 + $0x44] sm:$0xf]
  %v402 = vld [vmem:[%s3 + $0x48] sm:$0xf]
  %v403 = vld [vmem:[%s3 + $0x4c] sm:$0xf]
  %v404 = vld [vmem:[%s3 + $0x50] sm:$0xf]
  %v405 = vld [vmem:[%s3 + $0x54] sm:$0xf]
  %v406 = vld [vmem:[%s3 + $0x58] sm:$0xf]
  %v407 = vld [vmem:[%s3 + $0x5c] sm:$0xf]
  %v408 = vld [vmem:[%s3 + $0x60] sm:$0xf]
  %v409 = vld [vmem:[%s3 + $0x64] sm:$0xf]
  %v410 = vld [vmem:[%s3 + $0x68] sm:$0xf]
  %v411 = vld [vmem:[%s3 + $0x6c] sm:$0xf]
  %v412 = vld [vmem:[%s3 + $0x70] sm:$0xf]
  %v413 = vld [vmem:[%s3 + $0x74] sm:$0xf]
  %v414 = vld [vmem:[%s3 + $0x78] sm:$0xf]
  %v415 = vld [vmem:[%s3 + $0x7c] sm:$0xf]
  %v416 = vunpack.c.l.bf16 %v384
  %v417 = vunpack.c.l.bf16 %v385
  %v418 = vunpack.c.l.bf16 %v386
  %v419 = vunpack.c.l.bf16 %v387
  %v420 = vunpack.c.l.bf16 %v388
  %v421 = vunpack.c.l.bf16 %v389
  %v422 = vunpack.c.l.bf16 %v390
  %v423 = vunpack.c.l.bf16 %v391
  %v424 = vunpack.c.l.bf16 %v392
  %v425 = vunpack.c.l.bf16 %v393
  %v426 = vunpack.c.l.bf16 %v394
  %v427 = vunpack.c.l.bf16 %v395
  %v428 = vunpack.c.l.bf16 %v396
  %v429 = vunpack.c.l.bf16 %v397
  %v430 = vunpack.c.l.bf16 %v398
  %v431 = vunpack.c.l.bf16 %v399
  %v432 = vunpack.c.l.bf16 %v400
  %v433 = vunpack.c.l.bf16 %v401
  %v434 = vunpack.c.l.bf16 %v402
  %v435 = vunpack.c.l.bf16 %v403
  %v436 = vunpack.c.l.bf16 %v404
  %v437 = vunpack.c.l.bf16 %v405
  %v438 = vunpack.c.l.bf16 %v406
  %v439 = vunpack.c.l.bf16 %v407
  %v440 = vunpack.c.l.bf16 %v408
  %v441 = vunpack.c.l.bf16 %v409
  %v442 = vunpack.c.l.bf16 %v410
  %v443 = vunpack.c.l.bf16 %v411
  %v444 = vunpack.c.l.bf16 %v412
  %v445 = vunpack.c.l.bf16 %v413
  %v446 = vunpack.c.l.bf16 %v414
  %v447 = vunpack.c.l.bf16 %v415
  %v448 = vadd.f32 %v258, %v416
  %v449 = vadd.f32 %v261, %v417
  %v450 = vadd.f32 %v266, %v418
  %v451 = vadd.f32 %v269, %v419
  %v452 = vadd.f32 %v274, %v420
  %v453 = vadd.f32 %v277, %v421
  %v454 = vadd.f32 %v282, %v422
  %v455 = vadd.f32 %v285, %v423
  %v456 = vadd.f32 %v290, %v424
  %v457 = vadd.f32 %v293, %v425
  %v458 = vadd.f32 %v298, %v426
  %v459 = vadd.f32 %v301, %v427
  %v460 = vadd.f32 %v306, %v428
  %v461 = vadd.f32 %v309, %v429
  %v462 = vadd.f32 %v314, %v430
  %v463 = vadd.f32 %v317, %v431
  %v464 = vadd.f32 %v322, %v432
  %v465 = vadd.f32 %v325, %v433
  %v466 = vadd.f32 %v330, %v434
  %v467 = vadd.f32 %v333, %v435
  %v468 = vadd.f32 %v338, %v436
  %v469 = vadd.f32 %v341, %v437
  %v470 = vadd.f32 %v346, %v438
  %v471 = vadd.f32 %v349, %v439
  %v472 = vadd.f32 %v354, %v440
  %v473 = vadd.f32 %v357, %v441
  %v474 = vadd.f32 %v362, %v442
  %v475 = vadd.f32 %v365, %v443
  %v476 = vadd.f32 %v370, %v444
  %v477 = vadd.f32 %v373, %v445
  %v478 = vadd.f32 %v378, %v446
  %v479 = vadd.f32 %v381, %v447
  %v480 = vld [vmem:[%s4] sm:$0x1]
  %v481 = vld [vmem:[%s5] sm:$0x1]
  %482 = vadd.xlane.f32.xlu0 %v448
  %v483 = vpop.xlane.xlu0 %482
  %484 = vadd.xlane.f32.xlu0 %v449
  %v485 = vpop.xlane.xlu0 %484
  %486 = vadd.xlane.f32.xlu0 %v450
  %v487 = vpop.xlane.xlu0 %486
  %488 = vadd.xlane.f32.xlu0 %v451
  %v489 = vpop.xlane.xlu0 %488
  %490 = vadd.xlane.f32.xlu0 %v452
  %v491 = vpop.xlane.xlu0 %490
  %492 = vadd.xlane.f32.xlu0 %v453
  %v493 = vpop.xlane.xlu0 %492
  %494 = vadd.xlane.f32.xlu0 %v454
  %v495 = vpop.xlane.xlu0 %494
  %496 = vadd.xlane.f32.xlu0 %v455
  %v497 = vpop.xlane.xlu0 %496
  %498 = vadd.xlane.f32.xlu0 %v456
  %v499 = vpop.xlane.xlu0 %498
  %500 = vadd.xlane.f32.xlu0 %v457
  %v501 = vpop.xlane.xlu0 %500
  %502 = vadd.xlane.f32.xlu0 %v458
  %v503 = vpop.xlane.xlu0 %502
  %504 = vadd.xlane.f32.xlu0 %v459
  %v505 = vpop.xlane.xlu0 %504
  %506 = vadd.xlane.f32.xlu0 %v460
  %v507 = vpop.xlane.xlu0 %506
  %508 = vadd.xlane.f32.xlu0 %v461
  %v509 = vpop.xlane.xlu0 %508
  %510 = vadd.xlane.f32.xlu0 %v462
  %v511 = vpop.xlane.xlu0 %510
  %512 = vadd.xlane.f32.xlu0 %v463
  %v513 = vpop.xlane.xlu0 %512
  %514 = vadd.xlane.f32.xlu0 %v464
  %v515 = vpop.xlane.xlu0 %514
  %516 = vadd.xlane.f32.xlu0 %v465
  %v517 = vpop.xlane.xlu0 %516
  %518 = vadd.xlane.f32.xlu0 %v466
  %v519 = vpop.xlane.xlu0 %518
  %520 = vadd.xlane.f32.xlu0 %v467
  %v521 = vpop.xlane.xlu0 %520
  %522 = vadd.xlane.f32.xlu0 %v468
  %v523 = vpop.xlane.xlu0 %522
  %524 = vadd.xlane.f32.xlu0 %v469
  %v525 = vpop.xlane.xlu0 %524
  %526 = vadd.xlane.f32.xlu0 %v470
  %v527 = vpop.xlane.xlu0 %526
  %528 = vadd.xlane.f32.xlu0 %v471
  %v529 = vpop.xlane.xlu0 %528
  %530 = vadd.xlane.f32.xlu0 %v472
  %v531 = vpop.xlane.xlu0 %530
  %532 = vadd.xlane.f32.xlu0 %v473
  %v533 = vpop.xlane.xlu0 %532
  %534 = vadd.xlane.f32.xlu0 %v474
  %v535 = vpop.xlane.xlu0 %534
  %536 = vadd.xlane.f32.xlu0 %v475
  %v537 = vpop.xlane.xlu0 %536
  %538 = vadd.xlane.f32.xlu0 %v476
  %v539 = vpop.xlane.xlu0 %538
  %540 = vadd.xlane.f32.xlu0 %v477
  %v541 = vpop.xlane.xlu0 %540
  %542 = vadd.xlane.f32.xlu0 %v478
  %v543 = vpop.xlane.xlu0 %542
  %544 = vadd.xlane.f32.xlu0 %v479
  %v545 = vpop.xlane.xlu0 %544
  %v546 = vrcp.pop 128.0
  %v547 = vmul.f32 %v483, %v546
  %v548 = vmul.f32 %v485, %v546
  %v549 = vmul.f32 %v487, %v546
  %v550 = vmul.f32 %v489, %v546
  %v551 = vmul.f32 %v491, %v546
  %v552 = vmul.f32 %v493, %v546
  %v553 = vmul.f32 %v495, %v546
  %v554 = vmul.f32 %v497, %v546
  %v555 = vmul.f32 %v499, %v546
  %v556 = vmul.f32 %v501, %v546
  %v557 = vmul.f32 %v503, %v546
  %v558 = vmul.f32 %v505, %v546
  %v559 = vmul.f32 %v507, %v546
  %v560 = vmul.f32 %v509, %v546
  %v561 = vmul.f32 %v511, %v546
  %v562 = vmul.f32 %v513, %v546
  %v563 = vmul.f32 %v515, %v546
  %v564 = vmul.f32 %v517, %v546
  %v565 = vmul.f32 %v519, %v546
  %v566 = vmul.f32 %v521, %v546
  %v567 = vmul.f32 %v523, %v546
  %v568 = vmul.f32 %v525, %v546
  %v569 = vmul.f32 %v527, %v546
  %v570 = vmul.f32 %v529, %v546
  %v571 = vmul.f32 %v531, %v546
  %v572 = vmul.f32 %v533, %v546
  %v573 = vmul.f32 %v535, %v546
  %v574 = vmul.f32 %v537, %v546
  %v575 = vmul.f32 %v539, %v546
  %v576 = vmul.f32 %v541, %v546
  %v577 = vmul.f32 %v543, %v546
  %v578 = vmul.f32 %v545, %v546
  %v579 = vsub.f32 %v448, %v547
  %v580 = vsub.f32 %v449, %v548
  %v581 = vsub.f32 %v450, %v549
  %v582 = vsub.f32 %v451, %v550
  %v583 = vsub.f32 %v452, %v551
  %v584 = vsub.f32 %v453, %v552
  %v585 = vsub.f32 %v454, %v553
  %v586 = vsub.f32 %v455, %v554
  %v587 = vsub.f32 %v456, %v555
  %v588 = vsub.f32 %v457, %v556
  %v589 = vsub.f32 %v458, %v557
  %v590 = vsub.f32 %v459, %v558
  %v591 = vsub.f32 %v460, %v559
  %v592 = vsub.f32 %v461, %v560
  %v593 = vsub.f32 %v462, %v561
  %v594 = vsub.f32 %v463, %v562
  %v595 = vsub.f32 %v464, %v563
  %v596 = vsub.f32 %v465, %v564
  %v597 = vsub.f32 %v466, %v565
  %v598 = vsub.f32 %v467, %v566
  %v599 = vsub.f32 %v468, %v567
  %v600 = vsub.f32 %v469, %v568
  %v601 = vsub.f32 %v470, %v569
  %v602 = vsub.f32 %v471, %v570
  %v603 = vsub.f32 %v472, %v571
  %v604 = vsub.f32 %v473, %v572
  %v605 = vsub.f32 %v474, %v573
  %v606 = vsub.f32 %v475, %v574
  %v607 = vsub.f32 %v476, %v575
  %v608 = vsub.f32 %v477, %v576
  %v609 = vsub.f32 %v478, %v577
  %v610 = vsub.f32 %v479, %v578
  %v611 = vmul.f32 %v579, %v579
  %v612 = vmul.f32 %v580, %v580
  %v613 = vmul.f32 %v581, %v581
  %v614 = vmul.f32 %v582, %v582
  %v615 = vmul.f32 %v583, %v583
  %v616 = vmul.f32 %v584, %v584
  %v617 = vmul.f32 %v585, %v585
  %v618 = vmul.f32 %v586, %v586
  %v619 = vmul.f32 %v587, %v587
  %v620 = vmul.f32 %v588, %v588
  %v621 = vmul.f32 %v589, %v589
  %v622 = vmul.f32 %v590, %v590
  %v623 = vmul.f32 %v591, %v591
  %v624 = vmul.f32 %v592, %v592
  %v625 = vmul.f32 %v593, %v593
  %v626 = vmul.f32 %v594, %v594
  %v627 = vmul.f32 %v595, %v595
  %v628 = vmul.f32 %v596, %v596
  %v629 = vmul.f32 %v597, %v597
  %v630 = vmul.f32 %v598, %v598
  %v631 = vmul.f32 %v599, %v599
  %v632 = vmul.f32 %v600, %v600
  %v633 = vmul.f32 %v601, %v601
  %v634 = vmul.f32 %v602, %v602
  %v635 = vmul.f32 %v603, %v603
  %v636 = vmul.f32 %v604, %v604
  %v637 = vmul.f32 %v605, %v605
  %v638 = vmul.f32 %v606, %v606
  %v639 = vmul.f32 %v607, %v607
  %v640 = vmul.f32 %v608, %v608
  %v641 = vmul.f32 %v609, %v609
  %v642 = vmul.f32 %v610, %v610
  %643 = vadd.xlane.f32.xlu0 %v611
  %v644 = vpop.xlane.xlu0 %643
  %645 = vadd.xlane.f32.xlu0 %v612
  %v646 = vpop.xlane.xlu0 %645
  %647 = vadd.xlane.f32.xlu0 %v613
  %v648 = vpop.xlane.xlu0 %647
  %649 = vadd.xlane.f32.xlu0 %v614
  %v650 = vpop.xlane.xlu0 %649
  %651 = vadd.xlane.f32.xlu0 %v615
  %v652 = vpop.xlane.xlu0 %651
  %653 = vadd.xlane.f32.xlu0 %v616
  %v654 = vpop.xlane.xlu0 %653
  %655 = vadd.xlane.f32.xlu0 %v617
  %v656 = vpop.xlane.xlu0 %655
  %657 = vadd.xlane.f32.xlu0 %v618
  %v658 = vpop.xlane.xlu0 %657
  %659 = vadd.xlane.f32.xlu0 %v619
  %v660 = vpop.xlane.xlu0 %659
  %661 = vadd.xlane.f32.xlu0 %v620
  %v662 = vpop.xlane.xlu0 %661
  %663 = vadd.xlane.f32.xlu0 %v621
  %v664 = vpop.xlane.xlu0 %663
  %665 = vadd.xlane.f32.xlu0 %v622
  %v666 = vpop.xlane.xlu0 %665
  %667 = vadd.xlane.f32.xlu0 %v623
  %v668 = vpop.xlane.xlu0 %667
  %669 = vadd.xlane.f32.xlu0 %v624
  %v670 = vpop.xlane.xlu0 %669
  %671 = vadd.xlane.f32.xlu0 %v625
  %v672 = vpop.xlane.xlu0 %671
  %673 = vadd.xlane.f32.xlu0 %v626
  %v674 = vpop.xlane.xlu0 %673
  %675 = vadd.xlane.f32.xlu0 %v627
  %v676 = vpop.xlane.xlu0 %675
  %677 = vadd.xlane.f32.xlu0 %v628
  %v678 = vpop.xlane.xlu0 %677
  %679 = vadd.xlane.f32.xlu0 %v629
  %v680 = vpop.xlane.xlu0 %679
  %681 = vadd.xlane.f32.xlu0 %v630
  %v682 = vpop.xlane.xlu0 %681
  %683 = vadd.xlane.f32.xlu0 %v631
  %v684 = vpop.xlane.xlu0 %683
  %685 = vadd.xlane.f32.xlu0 %v632
  %v686 = vpop.xlane.xlu0 %685
  %687 = vadd.xlane.f32.xlu0 %v633
  %v688 = vpop.xlane.xlu0 %687
  %689 = vadd.xlane.f32.xlu0 %v634
  %v690 = vpop.xlane.xlu0 %689
  %691 = vadd.xlane.f32.xlu0 %v635
  %v692 = vpop.xlane.xlu0 %691
  %693 = vadd.xlane.f32.xlu0 %v636
  %v694 = vpop.xlane.xlu0 %693
  %695 = vadd.xlane.f32.xlu0 %v637
  %v696 = vpop.xlane.xlu0 %695
  %697 = vadd.xlane.f32.xlu0 %v638
  %v698 = vpop.xlane.xlu0 %697
  %699 = vadd.xlane.f32.xlu0 %v639
  %v700 = vpop.xlane.xlu0 %699
  %701 = vadd.xlane.f32.xlu0 %v640
  %v702 = vpop.xlane.xlu0 %701
  %703 = vadd.xlane.f32.xlu0 %v641
  %v704 = vpop.xlane.xlu0 %703
  %705 = vadd.xlane.f32.xlu0 %v642
  %v706 = vpop.xlane.xlu0 %705
  %v707 = vmul.f32 %v644, %v546
  %v708 = vmul.f32 %v646, %v546
  %v709 = vmul.f32 %v648, %v546
  %v710 = vmul.f32 %v650, %v546
  %v711 = vmul.f32 %v652, %v546
  %v712 = vmul.f32 %v654, %v546
  %v713 = vmul.f32 %v656, %v546
  %v714 = vmul.f32 %v658, %v546
  %v715 = vmul.f32 %v660, %v546
  %v716 = vmul.f32 %v662, %v546
  %v717 = vmul.f32 %v664, %v546
  %v718 = vmul.f32 %v666, %v546
  %v719 = vmul.f32 %v668, %v546
  %v720 = vmul.f32 %v670, %v546
  %v721 = vmul.f32 %v672, %v546
  %v722 = vmul.f32 %v674, %v546
  %v723 = vmul.f32 %v676, %v546
  %v724 = vmul.f32 %v678, %v546
  %v725 = vmul.f32 %v680, %v546
  %v726 = vmul.f32 %v682, %v546
  %v727 = vmul.f32 %v684, %v546
  %v728 = vmul.f32 %v686, %v546
  %v729 = vmul.f32 %v688, %v546
  %v730 = vmul.f32 %v690, %v546
  %v731 = vmul.f32 %v692, %v546
  %v732 = vmul.f32 %v694, %v546
  %v733 = vmul.f32 %v696, %v546
  %v734 = vmul.f32 %v698, %v546
  %v735 = vmul.f32 %v700, %v546
  %v736 = vmul.f32 %v702, %v546
  %v737 = vmul.f32 %v704, %v546
  %v738 = vmul.f32 %v706, %v546
  %v739 = vadd.f32 %v707, 1e-12
  %v740 = vadd.f32 %v708, 1e-12
  %v741 = vadd.f32 %v709, 1e-12
  %v742 = vadd.f32 %v710, 1e-12
  %v743 = vadd.f32 %v711, 1e-12
  %v744 = vadd.f32 %v712, 1e-12
  %v745 = vadd.f32 %v713, 1e-12
  %v746 = vadd.f32 %v714, 1e-12
  %v747 = vadd.f32 %v715, 1e-12
  %v748 = vadd.f32 %v716, 1e-12
  %v749 = vadd.f32 %v717, 1e-12
  %v750 = vadd.f32 %v718, 1e-12
  %v751 = vadd.f32 %v719, 1e-12
  %v752 = vadd.f32 %v720, 1e-12
  %v753 = vadd.f32 %v721, 1e-12
  %v754 = vadd.f32 %v722, 1e-12
  %v755 = vadd.f32 %v723, 1e-12
  %v756 = vadd.f32 %v724, 1e-12
  %v757 = vadd.f32 %v725, 1e-12
  %v758 = vadd.f32 %v726, 1e-12
  %v759 = vadd.f32 %v727, 1e-12
  %v760 = vadd.f32 %v728, 1e-12
  %v761 = vadd.f32 %v729, 1e-12
  %v762 = vadd.f32 %v730, 1e-12
  %v763 = vadd.f32 %v731, 1e-12
  %v764 = vadd.f32 %v732, 1e-12
  %v765 = vadd.f32 %v733, 1e-12
  %v766 = vadd.f32 %v734, 1e-12
  %v767 = vadd.f32 %v735, 1e-12
  %v768 = vadd.f32 %v736, 1e-12
  %v769 = vadd.f32 %v737, 1e-12
  %v770 = vadd.f32 %v738, 1e-12
  %v771 = vrsqrt.pop %v739
  %v772 = vrsqrt.pop %v740
  %v773 = vrsqrt.pop %v741
  %v774 = vrsqrt.pop %v742
  %v775 = vrsqrt.pop %v743
  %v776 = vrsqrt.pop %v744
  %v777 = vrsqrt.pop %v745
  %v778 = vrsqrt.pop %v746
  %v779 = vrsqrt.pop %v747
  %v780 = vrsqrt.pop %v748
  %v781 = vrsqrt.pop %v749
  %v782 = vrsqrt.pop %v750
  %v783 = vrsqrt.pop %v751
  %v784 = vrsqrt.pop %v752
  %v785 = vrsqrt.pop %v753
  %v786 = vrsqrt.pop %v754
  %v787 = vrsqrt.pop %v755
  %v788 = vrsqrt.pop %v756
  %v789 = vrsqrt.pop %v757
  %v790 = vrsqrt.pop %v758
  %v791 = vrsqrt.pop %v759
  %v792 = vrsqrt.pop %v760
  %v793 = vrsqrt.pop %v761
  %v794 = vrsqrt.pop %v762
  %v795 = vrsqrt.pop %v763
  %v796 = vrsqrt.pop %v764
  %v797 = vrsqrt.pop %v765
  %v798 = vrsqrt.pop %v766
  %v799 = vrsqrt.pop %v767
  %v800 = vrsqrt.pop %v768
  %v801 = vrsqrt.pop %v769
  %v802 = vrsqrt.pop %v770
  %v803 = vmul.f32 %v579, %v771
  %v804 = vmul.f32 %v580, %v772
  %v805 = vmul.f32 %v581, %v773
  %v806 = vmul.f32 %v582, %v774
  %v807 = vmul.f32 %v583, %v775
  %v808 = vmul.f32 %v584, %v776
  %v809 = vmul.f32 %v585, %v777
  %v810 = vmul.f32 %v586, %v778
  %v811 = vmul.f32 %v587, %v779
  %v812 = vmul.f32 %v588, %v780
  %v813 = vmul.f32 %v589, %v781
  %v814 = vmul.f32 %v590, %v782
  %v815 = vmul.f32 %v591, %v783
  %v816 = vmul.f32 %v592, %v784
  %v817 = vmul.f32 %v593, %v785
  %v818 = vmul.f32 %v594, %v786
  %v819 = vmul.f32 %v595, %v787
  %v820 = vmul.f32 %v596, %v788
  %v821 = vmul.f32 %v597, %v789
  %v822 = vmul.f32 %v598, %v790
  %v823 = vmul.f32 %v599, %v791
  %v824 = vmul.f32 %v600, %v792
  %v825 = vmul.f32 %v601, %v793
  %v826 = vmul.f32 %v602, %v794
  %v827 = vmul.f32 %v603, %v795
  %v828 = vmul.f32 %v604, %v796
  %v829 = vmul.f32 %v605, %v797
  %v830 = vmul.f32 %v606, %v798
  %v831 = vmul.f32 %v607, %v799
  %v832 = vmul.f32 %v608, %v800
  %v833 = vmul.f32 %v609, %v801
  %v834 = vmul.f32 %v610, %v802
  %v836 = vlaneseq
  %v837 = vshrl.u32 %v836, 7
  %v838 = vsub.s32 0, %v837
  %v839 = vrot.slane %v480, %v838
  %v841 = vmul.f32 %v803, %v839
  %v842 = vmul.f32 %v804, %v839
  %v843 = vmul.f32 %v805, %v839
  %v844 = vmul.f32 %v806, %v839
  %v845 = vmul.f32 %v807, %v839
  %v846 = vmul.f32 %v808, %v839
  %v847 = vmul.f32 %v809, %v839
  %v848 = vmul.f32 %v810, %v839
  %v849 = vmul.f32 %v811, %v839
  %v850 = vmul.f32 %v812, %v839
  %v851 = vmul.f32 %v813, %v839
  %v852 = vmul.f32 %v814, %v839
  %v853 = vmul.f32 %v815, %v839
  %v854 = vmul.f32 %v816, %v839
  %v855 = vmul.f32 %v817, %v839
  %v856 = vmul.f32 %v818, %v839
  %v857 = vmul.f32 %v819, %v839
  %v858 = vmul.f32 %v820, %v839
  %v859 = vmul.f32 %v821, %v839
  %v860 = vmul.f32 %v822, %v839
  %v861 = vmul.f32 %v823, %v839
  %v862 = vmul.f32 %v824, %v839
  %v863 = vmul.f32 %v825, %v839
  %v864 = vmul.f32 %v826, %v839
  %v865 = vmul.f32 %v827, %v839
  %v866 = vmul.f32 %v828, %v839
  %v867 = vmul.f32 %v829, %v839
  %v868 = vmul.f32 %v830, %v839
  %v869 = vmul.f32 %v831, %v839
  %v870 = vmul.f32 %v832, %v839
  %v871 = vmul.f32 %v833, %v839
  %v872 = vmul.f32 %v834, %v839
  %v874 = vlaneseq
  %v875 = vshrl.u32 %v874, 7
  %v876 = vsub.s32 0, %v875
  %v877 = vrot.slane %v481, %v876
  %v879 = vadd.f32 %v841, %v877
  %v880 = vadd.f32 %v842, %v877
  %v881 = vadd.f32 %v843, %v877
  %v882 = vadd.f32 %v844, %v877
  %v883 = vadd.f32 %v845, %v877
  %v884 = vadd.f32 %v846, %v877
  %v885 = vadd.f32 %v847, %v877
  %v886 = vadd.f32 %v848, %v877
  %v887 = vadd.f32 %v849, %v877
  %v888 = vadd.f32 %v850, %v877
  %v889 = vadd.f32 %v851, %v877
  %v890 = vadd.f32 %v852, %v877
  %v891 = vadd.f32 %v853, %v877
  %v892 = vadd.f32 %v854, %v877
  %v893 = vadd.f32 %v855, %v877
  %v894 = vadd.f32 %v856, %v877
  %v895 = vadd.f32 %v857, %v877
  %v896 = vadd.f32 %v858, %v877
  %v897 = vadd.f32 %v859, %v877
  %v898 = vadd.f32 %v860, %v877
  %v899 = vadd.f32 %v861, %v877
  %v900 = vadd.f32 %v862, %v877
  %v901 = vadd.f32 %v863, %v877
  %v902 = vadd.f32 %v864, %v877
  %v903 = vadd.f32 %v865, %v877
  %v904 = vadd.f32 %v866, %v877
  %v905 = vadd.f32 %v867, %v877
  %v906 = vadd.f32 %v868, %v877
  %v907 = vadd.f32 %v869, %v877
  %v908 = vadd.f32 %v870, %v877
  %v909 = vadd.f32 %v871, %v877
  %v910 = vadd.f32 %v872, %v877
  %v911 = vpack.c.bf16 %v880, %v879
  %v912 = vpack.c.bf16 %v882, %v881
  %v913 = vpack.c.bf16 %v884, %v883
  %v914 = vpack.c.bf16 %v886, %v885
  %v915 = vpack.c.bf16 %v888, %v887
  %v916 = vpack.c.bf16 %v890, %v889
  %v917 = vpack.c.bf16 %v892, %v891
  %v918 = vpack.c.bf16 %v894, %v893
  %v919 = vpack.c.bf16 %v896, %v895
  %v920 = vpack.c.bf16 %v898, %v897
  %v921 = vpack.c.bf16 %v900, %v899
  %v922 = vpack.c.bf16 %v902, %v901
  %v923 = vpack.c.bf16 %v904, %v903
  %v924 = vpack.c.bf16 %v906, %v905
  %v925 = vpack.c.bf16 %v908, %v907
  %v926 = vpack.c.bf16 %v910, %v909
  %v943 = vunpack.c.l.b16 %v911
  %v944 = vunpack.c.h.b16 %v911
  %v945 = vunpack.c.l.b16 %v912
  %v946 = vunpack.c.h.b16 %v912
  %v947 = vunpack.c.l.b16 %v913
  %v948 = vunpack.c.h.b16 %v913
  %v949 = vunpack.c.l.b16 %v914
  %v950 = vunpack.c.h.b16 %v914
  %v951 = vunpack.c.l.b16 %v915
  %v952 = vunpack.c.h.b16 %v915
  %v953 = vunpack.c.l.b16 %v916
  %v954 = vunpack.c.h.b16 %v916
  %v955 = vunpack.c.l.b16 %v917
  %v956 = vunpack.c.h.b16 %v917
  %v957 = vunpack.c.l.b16 %v918
  %v958 = vunpack.c.h.b16 %v918
  %v959 = vunpack.c.l.b16 %v919
  %v960 = vunpack.c.h.b16 %v919
  %v961 = vunpack.c.l.b16 %v920
  %v962 = vunpack.c.h.b16 %v920
  %v963 = vunpack.c.l.b16 %v921
  %v964 = vunpack.c.h.b16 %v921
  %v965 = vunpack.c.l.b16 %v922
  %v966 = vunpack.c.h.b16 %v922
  %v967 = vunpack.c.l.b16 %v923
  %v968 = vunpack.c.h.b16 %v923
  %v969 = vunpack.c.l.b16 %v924
  %v970 = vunpack.c.h.b16 %v924
  %v971 = vunpack.c.l.b16 %v925
  %v972 = vunpack.c.h.b16 %v925
  %v973 = vunpack.c.l.b16 %v926
  %v974 = vunpack.c.h.b16 %v926
  %v975 = vpack.c.b16 %v943, %v943
  %v976 = vpack.c.b16 %v944, %v944
  %v977 = vpack.c.b16 %v945, %v945
  %v978 = vpack.c.b16 %v946, %v946
  %v979 = vpack.c.b16 %v947, %v947
  %v980 = vpack.c.b16 %v948, %v948
  %v981 = vpack.c.b16 %v949, %v949
  %v982 = vpack.c.b16 %v950, %v950
  %v983 = vpack.c.b16 %v951, %v951
  %v984 = vpack.c.b16 %v952, %v952
  %v985 = vpack.c.b16 %v953, %v953
  %v986 = vpack.c.b16 %v954, %v954
  %v987 = vpack.c.b16 %v955, %v955
  %v988 = vpack.c.b16 %v956, %v956
  %v989 = vpack.c.b16 %v957, %v957
  %v990 = vpack.c.b16 %v958, %v958
  %v991 = vpack.c.b16 %v959, %v959
  %v992 = vpack.c.b16 %v960, %v960
  %v993 = vpack.c.b16 %v961, %v961
  %v994 = vpack.c.b16 %v962, %v962
  %v995 = vpack.c.b16 %v963, %v963
  %v996 = vpack.c.b16 %v964, %v964
  %v997 = vpack.c.b16 %v965, %v965
  %v998 = vpack.c.b16 %v966, %v966
  %v999 = vpack.c.b16 %v967, %v967
  %v1000 = vpack.c.b16 %v968, %v968
  %v1001 = vpack.c.b16 %v969, %v969
  %v1002 = vpack.c.b16 %v970, %v970
  %v1003 = vpack.c.b16 %v971, %v971
  %v1004 = vpack.c.b16 %v972, %v972
  %v1005 = vpack.c.b16 %v973, %v973
  %v1006 = vpack.c.b16 %v974, %v974
  %1039 = vst [vmem:[%s6] sm:$0xf] %v975
  %1040 = vst [vmem:[%s6 + $0x4] sm:$0xf] %v976
  %1041 = vst [vmem:[%s6 + $0x8] sm:$0xf] %v977
  %1042 = vst [vmem:[%s6 + $0xc] sm:$0xf] %v978
  %1043 = vst [vmem:[%s6 + $0x10] sm:$0xf] %v979
  %1044 = vst [vmem:[%s6 + $0x14] sm:$0xf] %v980
  %1045 = vst [vmem:[%s6 + $0x18] sm:$0xf] %v981
  %1046 = vst [vmem:[%s6 + $0x1c] sm:$0xf] %v982
  %1047 = vst [vmem:[%s6 + $0x20] sm:$0xf] %v983
  %1048 = vst [vmem:[%s6 + $0x24] sm:$0xf] %v984
  %1049 = vst [vmem:[%s6 + $0x28] sm:$0xf] %v985
  %1050 = vst [vmem:[%s6 + $0x2c] sm:$0xf] %v986
  %1051 = vst [vmem:[%s6 + $0x30] sm:$0xf] %v987
  %1052 = vst [vmem:[%s6 + $0x34] sm:$0xf] %v988
  %1053 = vst [vmem:[%s6 + $0x38] sm:$0xf] %v989
  %1054 = vst [vmem:[%s6 + $0x3c] sm:$0xf] %v990
  %1055 = vst [vmem:[%s6 + $0x40] sm:$0xf] %v991
  %1056 = vst [vmem:[%s6 + $0x44] sm:$0xf] %v992
  %1057 = vst [vmem:[%s6 + $0x48] sm:$0xf] %v993
  %1058 = vst [vmem:[%s6 + $0x4c] sm:$0xf] %v994
  %1059 = vst [vmem:[%s6 + $0x50] sm:$0xf] %v995
  %1060 = vst [vmem:[%s6 + $0x54] sm:$0xf] %v996
  %1061 = vst [vmem:[%s6 + $0x58] sm:$0xf] %v997
  %1062 = vst [vmem:[%s6 + $0x5c] sm:$0xf] %v998
  %1063 = vst [vmem:[%s6 + $0x60] sm:$0xf] %v999
  %1064 = vst [vmem:[%s6 + $0x64] sm:$0xf] %v1000
  %1065 = vst [vmem:[%s6 + $0x68] sm:$0xf] %v1001
  %1066 = vst [vmem:[%s6 + $0x6c] sm:$0xf] %v1002
  %1067 = vst [vmem:[%s6 + $0x70] sm:$0xf] %v1003
  %1068 = vst [vmem:[%s6 + $0x74] sm:$0xf] %v1004
  %1069 = vst [vmem:[%s6 + $0x78] sm:$0xf] %v1005
  %1070 = vst [vmem:[%s6 + $0x7c] sm:$0xf] %v1006
  // Predicated region
  $region26: #{bert_back_forward.10} parent=0 // pred_check
    _
  $region27: #{bert_back_forward.10} parent=0 // pred_check_branch
    %1072 = sbr.rel (0) target = $region29
  $region28: #{bert_back_forward.10} parent=0 // pred_region
    _
  $region29: #{bert_back_forward.10} parent=0 // pred_fallthru
    _
  // Predicated region
  $region30: #{bert_back_forward.10} parent=0 // pred_check
    _
  $region31: #{bert_back_forward.10} parent=0 // pred_check_branch
    %1074 = sbr.rel (0) target = $region33
  $region32: #{bert_back_forward.10} parent=0 // pred_region
    _
  $region33: #{bert_back_forward.10} parent=0 // pred_fallthru
    _

// kernel: bert_back_forward.17
$region0: #{bert_back_forward.17}
  #allocation0 [shape = 'u32[]', space=smem, size = 0x4, offset = 0x4, fixed_abs, tag = 'smem constant byte address 0x4 - core index']
  #allocation1 [shape = 'u32[144,128]{1,0:T(1,128)}', space=vmem, size = 0x12000, scoped, tag = 'internal scratch']
  %s0 = inlined_call_operand.vmem [shape: bf16[2,128], index: 0, kind: input, shape index: {}]
  %s1 = inlined_call_operand.vmem [shape: bf16[128,128], index: 1, kind: input, shape index: {}]
  %s2 = inlined_call_operand.vmem [shape: f32[1,128], index: 2, kind: input, shape index: {}]
  %s3 = inlined_call_operand.vmem [shape: bf16[128,8], index: 3, kind: input, shape index: {}]
  %s4 = inlined_call_operand.vmem [shape: f32[1,8], index: 4, kind: input, shape index: {}]
  %s5 = inlined_call_operand.hbm [shape: f32[2,8], index: 5, kind: output, shape index: {}]
  %s6 = sld [smem:[#allocation0]]
  $region30: #{bert_back_forward.17} parent=0
    _
  %s8 = ssub.s32 1, %s6
  %s9 = scalar_select 0, %s8, %s6
  $region1: #{bert_back_forward.17} parent=0
    #allocation2 [shape = 'u8[1024]{0}', space=vmem, size = 0x400, scoped, tag = 'output window, operand 0, single buffered']
    #allocation3 [shape = 's32[1]{0}', space=sflag, size = 0x4, scoped, tag = 'scoped memory for bert_back_forward.17']
    %10 = vsyncpa [#allocation3], 0
    // Predicated region
    $region2: #{bert_back_forward.17} parent=1 // pred_check
      _
    $region3: #{bert_back_forward.17} parent=1 // pred_check_branch
      %12 = sbr.rel (0) target = $region5
    $region4: #{bert_back_forward.17} parent=1 // pred_region
      _
    $region5: #{bert_back_forward.17} parent=1 // pred_fallthru
      _
    // Predicated region
    $region6: #{bert_back_forward.17} parent=1 // pred_check
      _
    $region7: #{bert_back_forward.17} parent=1 // pred_check_branch
      %14 = sbr.rel (0) target = $region9
    $region8: #{bert_back_forward.17} parent=1 // pred_region
      _
    $region9: #{bert_back_forward.17} parent=1 // pred_fallthru
      _
    // Predicated region
    $region10: #{bert_back_forward.17} parent=1 // pred_check
      _
    $region11: #{bert_back_forward.17} parent=1 // pred_check_branch
      %16 = sbr.rel (0) target = $region13
    $region12: #{bert_back_forward.17} parent=1 // pred_region
      _
    $region13: #{bert_back_forward.17} parent=1 // pred_fallthru
      _
    // Predicated region
    $region14: #{bert_back_forward.17} parent=1 // pred_check
      _
    $region15: #{bert_back_forward.17} parent=1 // pred_check_branch
      %18 = sbr.rel (0) target = $region17
    $region16: #{bert_back_forward.17} parent=1 // pred_region
      _
    $region17: #{bert_back_forward.17} parent=1 // pred_fallthru
      _
    // Predicated region
    $region18: #{bert_back_forward.17} parent=1 // pred_check
      _
    $region19: #{bert_back_forward.17} parent=1 // pred_check_branch
      %20 = sbr.rel (0) target = $region21
    $region20: #{bert_back_forward.17} parent=1 // pred_region
      _
    $region21: #{bert_back_forward.17} parent=1 // pred_fallthru
      _
    %v22 = vld [vmem:[%s0] sm:$0x1]
    %v23 = vld [vmem:[%s1] sm:$0xf]
    %v24 = vld [vmem:[%s1 + $0x4] sm:$0xf]
    %v25 = vld [vmem:[%s1 + $0x8] sm:$0xf]
    %v26 = vld [vmem:[%s1 + $0xc] sm:$0xf]
    %v27 = vld [vmem:[%s1 + $0x10] sm:$0xf]
    %v28 = vld [vmem:[%s1 + $0x14] sm:$0xf]
    %v29 = vld [vmem:[%s1 + $0x18] sm:$0xf]
    %v30 = vld [vmem:[%s1 + $0x1c] sm:$0xf]
    %v31 = vld [vmem:[%s1 + $0x20] sm:$0xf]
    %v32 = vld [vmem:[%s1 + $0x24] sm:$0xf]
    %v33 = vld [vmem:[%s1 + $0x28] sm:$0xf]
    %v34 = vld [vmem:[%s1 + $0x2c] sm:$0xf]
    %v35 = vld [vmem:[%s1 + $0x30] sm:$0xf]
    %v36 = vld [vmem:[%s1 + $0x34] sm:$0xf]
    %v37 = vld [vmem:[%s1 + $0x38] sm:$0xf]
    %v38 = vld [vmem:[%s1 + $0x3c] sm:$0xf]
    %v39 = vld [vmem:[%s2] sm:$0x1]
    %v41 = vlaneseq
    %v42 = vshrl.u32 %v41, 7
    %v43 = vsub.s32 0, %v42
    %v44 = vrot.slane %v39, %v43
    %v62 = vunpack.c.l.b16 %v23
    %v63 = vunpack.c.l.b16 %v24
    %v64 = vunpack.c.l.b16 %v25
    %v65 = vunpack.c.l.b16 %v26
    %v66 = vunpack.c.l.b16 %v27
    %v67 = vunpack.c.l.b16 %v28
    %v68 = vunpack.c.l.b16 %v29
    %v69 = vunpack.c.l.b16 %v30
    %v70 = vunpack.c.l.b16 %v31
    %v71 = vunpack.c.l.b16 %v32
    %v72 = vunpack.c.l.b16 %v33
    %v73 = vunpack.c.l.b16 %v34
    %v74 = vunpack.c.l.b16 %v35
    %v75 = vunpack.c.l.b16 %v36
    %v76 = vunpack.c.l.b16 %v37
    %v77 = vunpack.c.l.b16 %v38
    %v78 = vpack.c.b16 %v63, %v62
    %v79 = vpack.c.b16 %v65, %v64
    %v80 = vpack.c.b16 %v67, %v66
    %v81 = vpack.c.b16 %v69, %v68
    %v82 = vpack.c.b16 %v71, %v70
    %v83 = vpack.c.b16 %v73, %v72
    %v84 = vpack.c.b16 %v75, %v74
    %v85 = vpack.c.b16 %v77, %v76
    %94 = vmatprep.subr.bf16.mxu0 0
    %95 = vmatpush1.bf16.msra.mxu0 %v78
    %96 = vmatprep.subr.bf16.mxu0 0
    %97 = vmatpush1.bf16.msra.mxu0 %v79
    %98 = vmatprep.subr.bf16.mxu0 0
    %99 = vmatpush1.bf16.msra.mxu0 %v80
    %100 = vmatprep.subr.bf16.mxu0 0
    %101 = vmatpush1.bf16.msra.mxu0 %v81
    %102 = vmatprep.subr.bf16.mxu0 0
    %103 = vmatpush1.bf16.msra.mxu0 %v82
    %104 = vmatprep.subr.bf16.mxu0 0
    %105 = vmatpush1.bf16.msra.mxu0 %v83
    %106 = vmatprep.subr.bf16.mxu0 0
    %107 = vmatpush1.bf16.msra.mxu0 %v84
    %108 = vmatprep.subr.bf16.mxu0 0
    %109 = vmatpush1.bf16.msra.mxu0 %v85
    %110 = vmatprep.subr.bf16.mxu0 0
    %111 = vmatpush1.bf16.msra.mxu0 0
    %112 = vmatprep.subr.bf16.mxu0 0
    %113 = vmatpush1.bf16.msra.mxu0 0
    %114 = vmatprep.subr.bf16.mxu0 0
    %115 = vmatpush1.bf16.msra.mxu0 0
    %116 = vmatprep.subr.bf16.mxu0 0
    %117 = vmatpush1.bf16.msra.mxu0 0
    %118 = vmatprep.subr.bf16.mxu0 0
    %119 = vmatpush1.bf16.msra.mxu0 0
    %120 = vmatprep.subr.bf16.mxu0 0
    %121 = vmatpush1.bf16.msra.mxu0 0
    %122 = vmatprep.subr.bf16.mxu0 0
    %123 = vmatpush1.bf16.msra.mxu0 0
    %124 = vmatprep.subr.bf16.mxu0 0
    %125 = vmatpush1.bf16.msra.mxu0 0
    %126 = vmatprep.mubr.bf16.mxu0 0
    %127 = vmatmul.mubr.bf16.gmra.mrb[0].mxu0 %v22
    %v128 = vpop.f32.mrb[0].mxu0
    %v129 = vadd.f32 %v44, %v128
    %v130 = vpop.f32.mrb[0].mxu0
    %v131 = vpop.f32.mrb[0].mxu0
    %v132 = vpop.f32.mrb[0].mxu0
    %133 = vdwg.mxu0
    %v134 = vtanh.pop %v129
    %v135 = vpack.c.bf16 %v134, %v134
    %v136 = vld [vmem:[%s3] sm:$0xf]
    %v137 = vld [vmem:[%s3 + $0x4] sm:$0xf]
    %v138 = vld [vmem:[%s3 + $0x8] sm:$0xf]
    %v139 = vld [vmem:[%s3 + $0xc] sm:$0xf]
    %v140 = vld [vmem:[%s3 + $0x10] sm:$0xf]
    %v141 = vld [vmem:[%s3 + $0x14] sm:$0xf]
    %v142 = vld [vmem:[%s3 + $0x18] sm:$0xf]
    %v143 = vld [vmem:[%s3 + $0x1c] sm:$0xf]
    %v144 = vld [vmem:[%s3 + $0x20] sm:$0xf]
    %v145 = vld [vmem:[%s3 + $0x24] sm:$0xf]
    %v146 = vld [vmem:[%s3 + $0x28] sm:$0xf]
    %v147 = vld [vmem:[%s3 + $0x2c] sm:$0xf]
    %v148 = vld [vmem:[%s3 + $0x30] sm:$0xf]
    %v149 = vld [vmem:[%s3 + $0x34] sm:$0xf]
    %v150 = vld [vmem:[%s3 + $0x38] sm:$0xf]
    %v151 = vld [vmem:[%s3 + $0x3c] sm:$0xf]
    %v152 = vld [vmem:[%s4] sm:$0x1]
    %v154 = vlaneseq
    %v155 = vshrl.u32 %v154, 7
    %v156 = vsub.s32 0, %v155
    %v157 = vrot.slane %v152, %v156
    %v175 = vunpack.c.l.b16 %v136
    %v176 = vunpack.c.l.b16 %v137
    %v177 = vunpack.c.l.b16 %v138
    %v178 = vunpack.c.l.b16 %v139
    %v179 = vunpack.c.l.b16 %v140
    %v180 = vunpack.c.l.b16 %v141
    %v181 = vunpack.c.l.b16 %v142
    %v182 = vunpack.c.l.b16 %v143
    %v183 = vunpack.c.l.b16 %v144
    %v184 = vunpack.c.l.b16 %v145
    %v185 = vunpack.c.l.b16 %v146
    %v186 = vunpack.c.l.b16 %v147
    %v187 = vunpack.c.l.b16 %v148
    %v188 = vunpack.c.l.b16 %v149
    %v189 = vunpack.c.l.b16 %v150
    %v190 = vunpack.c.l.b16 %v151
    %v191 = vpack.c.b16 %v176, %v175
    %v192 = vpack.c.b16 %v178, %v177
    %v193 = vpack.c.b16 %v180, %v179
    %v194 = vpack.c.b16 %v182, %v181
    %v195 = vpack.c.b16 %v184, %v183
    %v196 = vpack.c.b16 %v186, %v185
    %v197 = vpack.c.b16 %v188, %v187
    %v198 = vpack.c.b16 %v190, %v189
    %207 = vmatprep.subr.bf16.mxu0 0
    %208 = vmatpush1.bf16.msra.mxu0 %v191
    %209 = vmatprep.subr.bf16.mxu0 0
    %210 = vmatpush1.bf16.msra.mxu0 %v192
    %211 = vmatprep.subr.bf16.mxu0 0
    %212 = vmatpush1.bf16.msra.mxu0 %v193
    %213 = vmatprep.subr.bf16.mxu0 0
    %214 = vmatpush1.bf16.msra.mxu0 %v194
    %215 = vmatprep.subr.bf16.mxu0 0
    %216 = vmatpush1.bf16.msra.mxu0 %v195
    %217 = vmatprep.subr.bf16.mxu0 0
    %218 = vmatpush1.bf16.msra.mxu0 %v196
    %219 = vmatprep.subr.bf16.mxu0 0
    %220 = vmatpush1.bf16.msra.mxu0 %v197
    %221 = vmatprep.subr.bf16.mxu0 0
    %222 = vmatpush1.bf16.msra.mxu0 %v198
    %223 = vmatprep.subr.bf16.mxu0 0
    %224 = vmatpush1.bf16.msra.mxu0 0
    %225 = vmatprep.subr.bf16.mxu0 0
    %226 = vmatpush1.bf16.msra.mxu0 0
    %227 = vmatprep.subr.bf16.mxu0 0
    %228 = vmatpush1.bf16.msra.mxu0 0
    %229 = vmatprep.subr.bf16.mxu0 0
    %230 = vmatpush1.bf16.msra.mxu0 0
    %231 = vmatprep.subr.bf16.mxu0 0
    %232 = vmatpush1.bf16.msra.mxu0 0
    %233 = vmatprep.subr.bf16.mxu0 0
    %234 = vmatpush1.bf16.msra.mxu0 0
    %235 = vmatprep.subr.bf16.mxu0 0
    %236 = vmatpush1.bf16.msra.mxu0 0
    %237 = vmatprep.subr.bf16.mxu0 0
    %238 = vmatpush1.bf16.msra.mxu0 0
    %239 = vmatprep.mubr.bf16.mxu0 0
    %240 = vmatmul.mubr.bf16.gmra.mrb[0].mxu0 %v135
    %v241 = vpop.f32.mrb[0].mxu0
    %v242 = vadd.f32 %v157, %v241
    %v243 = vpop.f32.mrb[0].mxu0
    %v244 = vpop.f32.mrb[0].mxu0
    %v245 = vpop.f32.mrb[0].mxu0
    %246 = vdwg.mxu0
    %vm247 = vcmask 58368
    %248 = vst.msk [vmem:[#allocation2] sm:$0x3] %vm247, %v242
    // Predicated region
    $region22: #{bert_back_forward.17} parent=1 // pred_check
      _
    $region23: #{bert_back_forward.17} parent=1 // pred_check_branch
      %250 = sbr.rel (0) target = $region25
    $region24: #{bert_back_forward.17} parent=1 // pred_region
      %s252 = ssub.s32 32, 32
      %253 = vsyncadd [#allocation3], %s252
      %s255 = sshll.u32 [#allocation2], 4
      %s256 = int_to_ptr.vmem [resolvable:$true] %s255
      %258 = dma.vmem_to_hbm [thread:$0]  %s256, 32, %s5, [#allocation3]
    $region25: #{bert_back_forward.17} parent=1 // pred_fallthru
      _
    // Predicated region
    $region26: #{bert_back_forward.17} parent=1 // pred_check
      _
    $region27: #{bert_back_forward.17} parent=1 // pred_check_branch
      %260 = sbr.rel (0) target = $region29
    $region28: #{bert_back_forward.17} parent=1 // pred_region
      %261 = dma.done [#allocation3], 32
    $region29: #{bert_back_forward.17} parent=1 // pred_fallthru
      _
    %262 = vsyncpa [#allocation3], 1

// kernel: bert_back_forward.11
$region0: #{bert_back_forward.11}
  #allocation0 [shape = 'u32[]', space=smem, size = 0x4, offset = 0x4, fixed_abs, tag = 'smem constant byte address 0x4 - core index']
  #allocation1 [shape = 'u32[144,128]{1,0:T(1,128)}', space=vmem, size = 0x12000, scoped, tag = 'internal scratch']
  %s0 = inlined_call_operand.vmem [shape: bf16[256,128], index: 0, kind: input, shape index: {}]
  %s1 = inlined_call_operand.vmem [shape: bf16[128,512], index: 1, kind: input, shape index: {}]
  %s2 = inlined_call_operand.vmem [shape: f32[1,512], index: 2, kind: input, shape index: {}]
  %s3 = inlined_call_operand.vmem [shape: bf16[256,512], index: 3, kind: output, shape index: {}]
  %s4 = sld [smem:[#allocation0]]
  $region22: #{bert_back_forward.11} parent=0
    _
  %s6 = ssub.s32 1, %s4
  %s7 = scalar_select 0, %s6, %s4
  // Predicated region
  $region2: #{bert_back_forward.11} parent=0 // pred_check
    _
  $region3: #{bert_back_forward.11} parent=0 // pred_check_branch
    %9 = sbr.rel (0) target = $region5
  $region4: #{bert_back_forward.11} parent=0 // pred_region
    _
  $region5: #{bert_back_forward.11} parent=0 // pred_fallthru
    _
  // Predicated region
  $region6: #{bert_back_forward.11} parent=0 // pred_check
    _
  $region7: #{bert_back_forward.11} parent=0 // pred_check_branch
    %11 = sbr.rel (0) target = $region9
  $region8: #{bert_back_forward.11} parent=0 // pred_region
    _
  $region9: #{bert_back_forward.11} parent=0 // pred_fallthru
    _
  // Predicated region
  $region10: #{bert_back_forward.11} parent=0 // pred_check
    _
  $region11: #{bert_back_forward.11} parent=0 // pred_check_branch
    %13 = sbr.rel (0) target = $region13
  $region12: #{bert_back_forward.11} parent=0 // pred_region
    _
  $region13: #{bert_back_forward.11} parent=0 // pred_fallthru
    _
  %v15 = vld [vmem:[%s0] sm:$0xf]
  %v16 = vld [vmem:[%s0 + $0x4] sm:$0xf]
  %v17 = vld [vmem:[%s0 + $0x8] sm:$0xf]
  %v18 = vld [vmem:[%s0 + $0xc] sm:$0xf]
  %v19 = vld [vmem:[%s0 + $0x10] sm:$0xf]
  %v20 = vld [vmem:[%s0 + $0x14] sm:$0xf]
  %v21 = vld [vmem:[%s0 + $0x18] sm:$0xf]
  %v22 = vld [vmem:[%s0 + $0x1c] sm:$0xf]
  %v23 = vld [vmem:[%s0 + $0x20] sm:$0xf]
  %v24 = vld [vmem:[%s0 + $0x24] sm:$0xf]
  %v25 = vld [vmem:[%s0 + $0x28] sm:$0xf]
  %v26 = vld [vmem:[%s0 + $0x2c] sm:$0xf]
  %v27 = vld [vmem:[%s0 + $0x30] sm:$0xf]
  %v28 = vld [vmem:[%s0 + $0x34] sm:$0xf]
  %v29 = vld [vmem:[%s0 + $0x38] sm:$0xf]
  %v30 = vld [vmem:[%s0 + $0x3c] sm:$0xf]
  %v31 = vld [vmem:[%s0 + $0x40] sm:$0xf]
  %v32 = vld [vmem:[%s0 + $0x44] sm:$0xf]
  %v33 = vld [vmem:[%s0 + $0x48] sm:$0xf]
  %v34 = vld [vmem:[%s0 + $0x4c] sm:$0xf]
  %v35 = vld [vmem:[%s0 + $0x50] sm:$0xf]
  %v36 = vld [vmem:[%s0 + $0x54] sm:$0xf]
  %v37 = vld [vmem:[%s0 + $0x58] sm:$0xf]
  %v38 = vld [vmem:[%s0 + $0x5c] sm:$0xf]
  %v39 = vld [vmem:[%s0 + $0x60] sm:$0xf]
  %v40 = vld [vmem:[%s0 + $0x64] sm:$0xf]
  %v41 = vld [vmem:[%s0 + $0x68] sm:$0xf]
  %v42 = vld [vmem:[%s0 + $0x6c] sm:$0xf]
  %v43 = vld [vmem:[%s0 + $0x70] sm:$0xf]
  %v44 = vld [vmem:[%s0 + $0x74] sm:$0xf]
  %v45 = vld [vmem:[%s0 + $0x78] sm:$0xf]
  %v46 = vld [vmem:[%s0 + $0x7c] sm:$0xf]
  %v47 = vld [vmem:[%s1] sm:$0xff]
  %v48 = vld [vmem:[%s1 + $0x8] sm:$0xff]
  %v49 = vld [vmem:[%s1 + $0x10] sm:$0xff]
  %v50 = vld [vmem:[%s1 + $0x18] sm:$0xff]
  %v51 = vld [vmem:[%s1 + $0x20] sm:$0xff]
  %v52 = vld [vmem:[%s1 + $0x28] sm:$0xff]
  %v53 = vld [vmem:[%s1 + $0x30] sm:$0xff]
  %v54 = vld [vmem:[%s1 + $0x38] sm:$0xff]
  %v55 = vld [vmem:[%s1 + $0x40] sm:$0xff]
  %v56 = vld [vmem:[%s1 + $0x48] sm:$0xff]
  %v57 = vld [vmem:[%s1 + $0x50] sm:$0xff]
  %v58 = vld [vmem:[%s1 + $0x58] sm:$0xff]
  %v59 = vld [vmem:[%s1 + $0x60] sm:$0xff]
  %v60 = vld [vmem:[%s1 + $0x68] sm:$0xff]
  %v61 = vld [vmem:[%s1 + $0x70] sm:$0xff]
  %v62 = vld [vmem:[%s1 + $0x78] sm:$0xff]
  %v63 = vld [vmem:[%s1 + $0x80] sm:$0xff]
  %v64 = vld [vmem:[%s1 + $0x88] sm:$0xff]
  %v65 = vld [vmem:[%s1 + $0x90] sm:$0xff]
  %v66 = vld [vmem:[%s1 + $0x98] sm:$0xff]
  %v67 = vld [vmem:[%s1 + $0xa0] sm:$0xff]
  %v68 = vld [vmem:[%s1 + $0xa8] sm:$0xff]
  %v69 = vld [vmem:[%s1 + $0xb0] sm:$0xff]
  %v70 = vld [vmem:[%s1 + $0xb8] sm:$0xff]
  %v71 = vld [vmem:[%s1 + $0xc0] sm:$0xff]
  %v72 = vld [vmem:[%s1 + $0xc8] sm:$0xff]
  %v73 = vld [vmem:[%s1 + $0xd0] sm:$0xff]
  %v74 = vld [vmem:[%s1 + $0xd8] sm:$0xff]
  %v75 = vld [vmem:[%s1 + $0xe0] sm:$0xff]
  %v76 = vld [vmem:[%s1 + $0xe8] sm:$0xff]
  %v77 = vld [vmem:[%s1 + $0xf0] sm:$0xff]
  %v78 = vld [vmem:[%s1 + $0xf8] sm:$0xff]
  %v79 = vld [vmem:[%s2] sm:$0xf]
  %v81 = vlaneseq
  %v82 = vshrl.u32 %v81, 7
  %v83 = vsub.s32 0, %v82
  %v84 = vrot.slane %v79, %v83
  %v85 = vlaneseq
  %v86 = vshrl.u32 %v85, 7
  %v87 = vsub.s32 1, %v86
  %v88 = vrot.slane %v79, %v87
  %v89 = vlaneseq
  %v90 = vshrl.u32 %v89, 7
  %v91 = vsub.s32 2, %v90
  %v92 = vrot.slane %v79, %v91
  %v93 = vlaneseq
  %v94 = vshrl.u32 %v93, 7
  %v95 = vsub.s32 3, %v94
  %v96 = vrot.slane %v79, %v95
  %v133 = vunpack.c.l.b16 %v15
  %v134 = vunpack.c.l.b16 %v16
  %v135 = vunpack.c.l.b16 %v17
  %v136 = vunpack.c.l.b16 %v18
  %v137 = vunpack.c.l.b16 %v19
  %v138 = vunpack.c.l.b16 %v20
  %v139 = vunpack.c.l.b16 %v21
  %v140 = vunpack.c.l.b16 %v22
  %v141 = vunpack.c.l.b16 %v23
  %v142 = vunpack.c.l.b16 %v24
  %v143 = vunpack.c.l.b16 %v25
  %v144 = vunpack.c.l.b16 %v26
  %v145 = vunpack.c.l.b16 %v27
  %v146 = vunpack.c.l.b16 %v28
  %v147 = vunpack.c.l.b16 %v29
  %v148 = vunpack.c.l.b16 %v30
  %v149 = vunpack.c.l.b16 %v31
  %v150 = vunpack.c.l.b16 %v32
  %v151 = vunpack.c.l.b16 %v33
  %v152 = vunpack.c.l.b16 %v34
  %v153 = vunpack.c.l.b16 %v35
  %v154 = vunpack.c.l.b16 %v36
  %v155 = vunpack.c.l.b16 %v37
  %v156 = vunpack.c.l.b16 %v38
  %v157 = vunpack.c.l.b16 %v39
  %v158 = vunpack.c.l.b16 %v40
  %v159 = vunpack.c.l.b16 %v41
  %v160 = vunpack.c.l.b16 %v42
  %v161 = vunpack.c.l.b16 %v43
  %v162 = vunpack.c.l.b16 %v44
  %v163 = vunpack.c.l.b16 %v45
  %v164 = vunpack.c.l.b16 %v46
  %v165 = vpack.c.b16 %v134, %v133
  %v166 = vpack.c.b16 %v136, %v135
  %v167 = vpack.c.b16 %v138, %v137
  %v168 = vpack.c.b16 %v140, %v139
  %v169 = vpack.c.b16 %v142, %v141
  %v170 = vpack.c.b16 %v144, %v143
  %v171 = vpack.c.b16 %v146, %v145
  %v172 = vpack.c.b16 %v148, %v147
  %v173 = vpack.c.b16 %v150, %v149
  %v174 = vpack.c.b16 %v152, %v151
  %v175 = vpack.c.b16 %v154, %v153
  %v176 = vpack.c.b16 %v156, %v155
  %v177 = vpack.c.b16 %v158, %v157
  %v178 = vpack.c.b16 %v160, %v159
  %v179 = vpack.c.b16 %v162, %v161
  %v180 = vpack.c.b16 %v164, %v163
  %v229 = vunpack.c.l.b16 %v47
  %v230 = vunpack.c.h.b16 %v47
  %v231 = vunpack.c.l.b16 %v48
  %v232 = vunpack.c.h.b16 %v48
  %v233 = vunpack.c.l.b16 %v49
  %v234 = vunpack.c.h.b16 %v49
  %v235 = vunpack.c.l.b16 %v50
  %v236 = vunpack.c.h.b16 %v50
  %v237 = vunpack.c.l.b16 %v51
  %v238 = vunpack.c.h.b16 %v51
  %v239 = vunpack.c.l.b16 %v52
  %v240 = vunpack.c.h.b16 %v52
  %v241 = vunpack.c.l.b16 %v53
  %v242 = vunpack.c.h.b16 %v53
  %v243 = vunpack.c.l.b16 %v54
  %v244 = vunpack.c.h.b16 %v54
  %v245 = vunpack.c.l.b16 %v55
  %v246 = vunpack.c.h.b16 %v55
  %v247 = vunpack.c.l.b16 %v56
  %v248 = vunpack.c.h.b16 %v56
  %v249 = vunpack.c.l.b16 %v57
  %v250 = vunpack.c.h.b16 %v57
  %v251 = vunpack.c.l.b16 %v58
  %v252 = vunpack.c.h.b16 %v58
  %v253 = vunpack.c.l.b16 %v59
  %v254 = vunpack.c.h.b16 %v59
  %v255 = vunpack.c.l.b16 %v60
  %v256 = vunpack.c.h.b16 %v60
  %v257 = vunpack.c.l.b16 %v61
  %v258 = vunpack.c.h.b16 %v61
  %v259 = vunpack.c.l.b16 %v62
  %v260 = vunpack.c.h.b16 %v62
  %v261 = vunpack.c.l.b16 %v63
  %v262 = vunpack.c.h.b16 %v63
  %v263 = vunpack.c.l.b16 %v64
  %v264 = vunpack.c.h.b16 %v64
  %v265 = vunpack.c.l.b16 %v65
  %v266 = vunpack.c.h.b16 %v65
  %v267 = vunpack.c.l.b16 %v66
  %v268 = vunpack.c.h.b16 %v66
  %v269 = vunpack.c.l.b16 %v67
  %v270 = vunpack.c.h.b16 %v67
  %v271 = vunpack.c.l.b16 %v68
  %v272 = vunpack.c.h.b16 %v68
  %v273 = vunpack.c.l.b16 %v69
  %v274 = vunpack.c.h.b16 %v69
  %v275 = vunpack.c.l.b16 %v70
  %v276 = vunpack.c.h.b16 %v70
  %v277 = vunpack.c.l.b16 %v71
  %v278 = vunpack.c.h.b16 %v71
  %v279 = vunpack.c.l.b16 %v72
  %v280 = vunpack.c.h.b16 %v72
  %v281 = vunpack.c.l.b16 %v73
  %v282 = vunpack.c.h.b16 %v73
  %v283 = vunpack.c.l.b16 %v74
  %v284 = vunpack.c.h.b16 %v74
  %v285 = vunpack.c.l.b16 %v75
  %v286 = vunpack.c.h.b16 %v75
  %v287 = vunpack.c.l.b16 %v76
  %v288 = vunpack.c.h.b16 %v76
  %v289 = vunpack.c.l.b16 %v77
  %v290 = vunpack.c.h.b16 %v77
  %v291 = vunpack.c.l.b16 %v78
  %v292 = vunpack.c.h.b16 %v78
  %v293 = vpack.c.b16 %v233, %v229
  %v294 = vpack.c.b16 %v234, %v230
  %v295 = vpack.c.b16 %v235, %v231
  %v296 = vpack.c.b16 %v236, %v232
  %v297 = vpack.c.b16 %v241, %v237
  %v298 = vpack.c.b16 %v242, %v238
  %v299 = vpack.c.b16 %v243, %v239
  %v300 = vpack.c.b16 %v244, %v240
  %v301 = vpack.c.b16 %v249, %v245
  %v302 = vpack.c.b16 %v250, %v246
  %v303 = vpack.c.b16 %v251, %v247
  %v304 = vpack.c.b16 %v252, %v248
  %v305 = vpack.c.b16 %v257, %v253
  %v306 = vpack.c.b16 %v258, %v254
  %v307 = vpack.c.b16 %v259, %v255
  %v308 = vpack.c.b16 %v260, %v256
  %v309 = vpack.c.b16 %v265, %v261
  %v310 = vpack.c.b16 %v266, %v262
  %v311 = vpack.c.b16 %v267, %v263
  %v312 = vpack.c.b16 %v268, %v264
  %v313 = vpack.c.b16 %v273, %v269
  %v314 = vpack.c.b16 %v274, %v270
  %v315 = vpack.c.b16 %v275, %v271
  %v316 = vpack.c.b16 %v276, %v272
  %v317 = vpack.c.b16 %v281, %v277
  %v318 = vpack.c.b16 %v282, %v278
  %v319 = vpack.c.b16 %v283, %v279
  %v320 = vpack.c.b16 %v284, %v280
  %v321 = vpack.c.b16 %v289, %v285
  %v322 = vpack.c.b16 %v290, %v286
  %v323 = vpack.c.b16 %v291, %v287
  %v324 = vpack.c.b16 %v292, %v288
  %357 = vmatprep.subr.bf16.mxu0 %v294
  %358 = vmatpush1.bf16.msra.mxu0 %v293
  %359 = vmatprep.subr.bf16.mxu0 %v298
  %360 = vmatpush1.bf16.msra.mxu0 %v297
  %361 = vmatprep.subr.bf16.mxu0 %v302
  %362 = vmatpush1.bf16.msra.mxu0 %v301
  %363 = vmatprep.subr.bf16.mxu0 %v306
  %364 = vmatpush1.bf16.msra.mxu0 %v305
  %365 = vmatprep.subr.bf16.mxu0 %v310
  %366 = vmatpush1.bf16.msra.mxu0 %v309
  %367 = vmatprep.subr.bf16.mxu0 %v314
  %368 = vmatpush1.bf16.msra.mxu0 %v313
  %369 = vmatprep.subr.bf16.mxu0 %v318
  %370 = vmatpush1.bf16.msra.mxu0 %v317
  %371 = vmatprep.subr.bf16.mxu0 %v322
  %372 = vmatpush1.bf16.msra.mxu0 %v321
  %373 = vmatprep.subr.bf16.mxu0 0
  %374 = vmatpush1.bf16.msra.mxu0 0
  %375 = vmatprep.subr.bf16.mxu0 0
  %376 = vmatpush1.bf16.msra.mxu0 0
  %377 = vmatprep.subr.bf16.mxu0 0
  %378 = vmatpush1.bf16.msra.mxu0 0
  %379 = vmatprep.subr.bf16.mxu0 0
  %380 = vmatpush1.bf16.msra.mxu0 0
  %381 = vmatprep.subr.bf16.mxu0 0
  %382 = vmatpush1.bf16.msra.mxu0 0
  %383 = vmatprep.subr.bf16.mxu0 0
  %384 = vmatpush1.bf16.msra.mxu0 0
  %385 = vmatprep.subr.bf16.mxu0 0
  %386 = vmatpush1.bf16.msra.mxu0 0
  %387 = vmatprep.subr.bf16.mxu0 0
  %388 = vmatpush1.bf16.msra.mxu0 0
  %389 = vmatprep.mubr.bf16.mxu0 0
  %390 = vmatmul.mubr.bf16.gmra.mrb[0].mxu0 %v165
  %v391 = vpop.f32.mrb[0].mxu0
  %v392 = vadd.f32 %v84, %v391
  %v393 = vpop.f32.mrb[0].mxu0
  %v394 = vadd.f32 %v88, %v393
  %v395 = vpop.f32.mrb[0].mxu0
  %v396 = vadd.f32 %v84, %v395
  %v397 = vpop.f32.mrb[0].mxu0
  %v398 = vadd.f32 %v88, %v397
  %399 = vmatprep.mubr.bf16.mxu0 0
  %400 = vmatmul.mubr.bf16.gmra.mrb[0].mxu0 %v166
  %v401 = vpop.f32.mrb[0].mxu0
  %v402 = vadd.f32 %v84, %v401
  %v403 = vpop.f32.mrb[0].mxu0
  %v404 = vadd.f32 %v88, %v403
  %v405 = vpop.f32.mrb[0].mxu0
  %v406 = vadd.f32 %v84, %v405
  %v407 = vpop.f32.mrb[0].mxu0
  %v408 = vadd.f32 %v88, %v407
  %409 = vmatprep.mubr.bf16.mxu0 0
  %410 = vmatmul.mubr.bf16.gmra.mrb[0].mxu0 %v167
  %v411 = vpop.f32.mrb[0].mxu0
  %v412 = vadd.f32 %v84, %v411
  %v413 = vpop.f32.mrb[0].mxu0
  %v414 = vadd.f32 %v88, %v413
  %v415 = vpop.f32.mrb[0].mxu0
  %v416 = vadd.f32 %v84, %v415
  %v417 = vpop.f32.mrb[0].mxu0
  %v418 = vadd.f32 %v88, %v417
  %419 = vmatprep.mubr.bf16.mxu0 0
  %420 = vmatmul.mubr.bf16.gmra.mrb[0].mxu0 %v168
  %v421 = vpop.f32.mrb[0].mxu0
  %v422 = vadd.f32 %v84, %v421
  %v423 = vpop.f32.mrb[0].mxu0
  %v424 = vadd.f32 %v88, %v423
  %v425 = vpop.f32.mrb[0].mxu0
  %v426 = vadd.f32 %v84, %v425
  %v427 = vpop.f32.mrb[0].mxu0
  %v428 = vadd.f32 %v88, %v427
  %429 = vmatprep.mubr.bf16.mxu0 0
  %430 = vmatmul.mubr.bf16.gmra.mrb[0].mxu0 %v169
  %v431 = vpop.f32.mrb[0].mxu0
  %v432 = vadd.f32 %v84, %v431
  %v433 = vpop.f32.mrb[0].mxu0
  %v434 = vadd.f32 %v88, %v433
  %v435 = vpop.f32.mrb[0].mxu0
  %v436 = vadd.f32 %v84, %v435
  %v437 = vpop.f32.mrb[0].mxu0
  %v438 = vadd.f32 %v88, %v437
  %439 = vmatprep.mubr.bf16.mxu0 0
  %440 = vmatmul.mubr.bf16.gmra.mrb[0].mxu0 %v170
  %v441 = vpop.f32.mrb[0].mxu0
  %v442 = vadd.f32 %v84, %v441
  %v443 = vpop.f32.mrb[0].mxu0
  %v444 = vadd.f32 %v88, %v443
  %v445 = vpop.f32.mrb[0].mxu0
  %v446 = vadd.f32 %v84, %v445
  %v447 = vpop.f32.mrb[0].mxu0
  %v448 = vadd.f32 %v88, %v447
  %449 = vmatprep.mubr.bf16.mxu0 0
  %450 = vmatmul.mubr.bf16.gmra.mrb[0].mxu0 %v171
  %v451 = vpop.f32.mrb[0].mxu0
  %v452 = vadd.f32 %v84, %v451
  %v453 = vpop.f32.mrb[0].mxu0
  %v454 = vadd.f32 %v88, %v453
  %v455 = vpop.f32.mrb[0].mxu0
  %v456 = vadd.f32 %v84, %v455
  %v457 = vpop.f32.mrb[0].mxu0
  %v458 = vadd.f32 %v88, %v457
  %459 = vmatprep.mubr.bf16.mxu0 0
  %460 = vmatmul.mubr.bf16.gmra.mrb[0].mxu0 %v172
  %v461 = vpop.f32.mrb[0].mxu0
  %v462 = vadd.f32 %v84, %v461
  %v463 = vpop.f32.mrb[0].mxu0
  %v464 = vadd.f32 %v88, %v463
  %v465 = vpop.f32.mrb[0].mxu0
  %v466 = vadd.f32 %v84, %v465
  %v467 = vpop.f32.mrb[0].mxu0
  %v468 = vadd.f32 %v88, %v467
  %469 = vmatprep.mubr.bf16.mxu0 0
  %470 = vmatmul.mubr.bf16.gmra.mrb[0].mxu0 %v173
  %v471 = vpop.f32.mrb[0].mxu0
  %v472 = vadd.f32 %v84, %v471
  %v473 = vpop.f32.mrb[0].mxu0
  %v474 = vadd.f32 %v88, %v473
  %v475 = vpop.f32.mrb[0].mxu0
  %v476 = vadd.f32 %v84, %v475
  %v477 = vpop.f32.mrb[0].mxu0
  %v478 = vadd.f32 %v88, %v477
  %479 = vmatprep.mubr.bf16.mxu0 0
  %480 = vmatmul.mubr.bf16.gmra.mrb[0].mxu0 %v174
  %v481 = vpop.f32.mrb[0].mxu0
  %v482 = vadd.f32 %v84, %v481
  %v483 = vpop.f32.mrb[0].mxu0
  %v484 = vadd.f32 %v88, %v483
  %v485 = vpop.f32.mrb[0].mxu0
  %v486 = vadd.f32 %v84, %v485
  %v487 = vpop.f32.mrb[0].mxu0
  %v488 = vadd.f32 %v88, %v487
  %489 = vmatprep.mubr.bf16.mxu0 0
  %490 = vmatmul.mubr.bf16.gmra.mrb[0].mxu0 %v175
  %v491 = vpop.f32.mrb[0].mxu0
  %v492 = vadd.f32 %v84, %v491
  %v493 = vpop.f32.mrb[0].mxu0
  %v494 = vadd.f32 %v88, %v493
  %v495 = vpop.f32.mrb[0].mxu0
  %v496 = vadd.f32 %v84, %v495
  %v497 = vpop.f32.mrb[0].mxu0
  %v498 = vadd.f32 %v88, %v497
  %499 = vmatprep.mubr.bf16.mxu0 0
  %500 = vmatmul.mubr.bf16.gmra.mrb[0].mxu0 %v176
  %v501 = vpop.f32.mrb[0].mxu0
  %v502 = vadd.f32 %v84, %v501
  %v503 = vpop.f32.mrb[0].mxu0
  %v504 = vadd.f32 %v88, %v503
  %v505 = vpop.f32.mrb[0].mxu0
  %v506 = vadd.f32 %v84, %v505
  %v507 = vpop.f32.mrb[0].mxu0
  %v508 = vadd.f32 %v88, %v507
  %509 = vmatprep.mubr.bf16.mxu0 0
  %510 = vmatmul.mubr.bf16.gmra.mrb[0].mxu0 %v177
  %v511 = vpop.f32.mrb[0].mxu0
  %v512 = vadd.f32 %v84, %v511
  %v513 = vpop.f32.mrb[0].mxu0
  %v514 = vadd.f32 %v88, %v513
  %v515 = vpop.f32.mrb[0].mxu0
  %v516 = vadd.f32 %v84, %v515
  %v517 = vpop.f32.mrb[0].mxu0
  %v518 = vadd.f32 %v88, %v517
  %519 = vmatprep.mubr.bf16.mxu0 0
  %520 = vmatmul.mubr.bf16.gmra.mrb[0].mxu0 %v178
  %v521 = vpop.f32.mrb[0].mxu0
  %v522 = vadd.f32 %v84, %v521
  %v523 = vpop.f32.mrb[0].mxu0
  %v524 = vadd.f32 %v88, %v523
  %v525 = vpop.f32.mrb[0].mxu0
  %v526 = vadd.f32 %v84, %v525
  %v527 = vpop.f32.mrb[0].mxu0
  %v528 = vadd.f32 %v88, %v527
  %529 = vmatprep.mubr.bf16.mxu0 0
  %530 = vmatmul.mubr.bf16.gmra.mrb[0].mxu0 %v179
  %v531 = vpop.f32.mrb[0].mxu0
  %v532 = vadd.f32 %v84, %v531
  %v533 = vpop.f32.mrb[0].mxu0
  %v534 = vadd.f32 %v88, %v533
  %v535 = vpop.f32.mrb[0].mxu0
  %v536 = vadd.f32 %v84, %v535
  %v537 = vpop.f32.mrb[0].mxu0
  %v538 = vadd.f32 %v88, %v537
  %539 = vmatprep.mubr.bf16.mxu0 0
  %540 = vmatmul.mubr.bf16.gmra.mrb[0].mxu0 %v180
  %v541 = vpop.f32.mrb[0].mxu0
  %v542 = vadd.f32 %v84, %v541
  %v543 = vpop.f32.mrb[0].mxu0
  %v544 = vadd.f32 %v88, %v543
  %v545 = vpop.f32.mrb[0].mxu0
  %v546 = vadd.f32 %v84, %v545
  %v547 = vpop.f32.mrb[0].mxu0
  %v548 = vadd.f32 %v88, %v547
  %549 = vdwg.mxu0
  %550 = vmatprep.subr.bf16.mxu0 %v296
  %551 = vmatpush1.bf16.msra.mxu0 %v295
  %552 = vmatprep.subr.bf16.mxu0 %v300
  %553 = vmatpush1.bf16.msra.mxu0 %v299
  %554 = vmatprep.subr.bf16.mxu0 %v304
  %555 = vmatpush1.bf16.msra.mxu0 %v303
  %556 = vmatprep.subr.bf16.mxu0 %v308
  %557 = vmatpush1.bf16.msra.mxu0 %v307
  %558 = vmatprep.subr.bf16.mxu0 %v312
  %559 = vmatpush1.bf16.msra.mxu0 %v311
  %560 = vmatprep.subr.bf16.mxu0 %v316
  %561 = vmatpush1.bf16.msra.mxu0 %v315
  %562 = vmatprep.subr.bf16.mxu0 %v320
  %563 = vmatpush1.bf16.msra.mxu0 %v319
  %564 = vmatprep.subr.bf16.mxu0 %v324
  %565 = vmatpush1.bf16.msra.mxu0 %v323
  %566 = vmatprep.subr.bf16.mxu0 0
  %567 = vmatpush1.bf16.msra.mxu0 0
  %568 = vmatprep.subr.bf16.mxu0 0
  %569 = vmatpush1.bf16.msra.mxu0 0
  %570 = vmatprep.subr.bf16.mxu0 0
  %571 = vmatpush1.bf16.msra.mxu0 0
  %572 = vmatprep.subr.bf16.mxu0 0
  %573 = vmatpush1.bf16.msra.mxu0 0
  %574 = vmatprep.subr.bf16.mxu0 0
  %575 = vmatpush1.bf16.msra.mxu0 0
  %576 = vmatprep.subr.bf16.mxu0 0
  %577 = vmatpush1.bf16.msra.mxu0 0
  %578 = vmatprep.subr.bf16.mxu0 0
  %579 = vmatpush1.bf16.msra.mxu0 0
  %580 = vmatprep.subr.bf16.mxu0 0
  %581 = vmatpush1.bf16.msra.mxu0 0
  %582 = vmatprep.mubr.bf16.mxu0 0
  %583 = vmatmul.mubr.bf16.gmra.mrb[0].mxu0 %v165
  %v584 = vpop.f32.mrb[0].mxu0
  %v585 = vadd.f32 %v92, %v584
  %v586 = vpop.f32.mrb[0].mxu0
  %v587 = vadd.f32 %v96, %v586
  %v588 = vpop.f32.mrb[0].mxu0
  %v589 = vadd.f32 %v92, %v588
  %v590 = vpop.f32.mrb[0].mxu0
  %v591 = vadd.f32 %v96, %v590
  %592 = vmatprep.mubr.bf16.mxu0 0
  %593 = vmatmul.mubr.bf16.gmra.mrb[0].mxu0 %v166
  %v594 = vpop.f32.mrb[0].mxu0
  %v595 = vadd.f32 %v92, %v594
  %v596 = vpop.f32.mrb[0].mxu0
  %v597 = vadd.f32 %v96, %v596
  %v598 = vpop.f32.mrb[0].mxu0
  %v599 = vadd.f32 %v92, %v598
  %v600 = vpop.f32.mrb[0].mxu0
  %v601 = vadd.f32 %v96, %v600
  %602 = vmatprep.mubr.bf16.mxu0 0
  %603 = vmatmul.mubr.bf16.gmra.mrb[0].mxu0 %v167
  %v604 = vpop.f32.mrb[0].mxu0
  %v605 = vadd.f32 %v92, %v604
  %v606 = vpop.f32.mrb[0].mxu0
  %v607 = vadd.f32 %v96, %v606
  %v608 = vpop.f32.mrb[0].mxu0
  %v609 = vadd.f32 %v92, %v608
  %v610 = vpop.f32.mrb[0].mxu0
  %v611 = vadd.f32 %v96, %v610
  %612 = vmatprep.mubr.bf16.mxu0 0
  %613 = vmatmul.mubr.bf16.gmra.mrb[0].mxu0 %v168
  %v614 = vpop.f32.mrb[0].mxu0
  %v615 = vadd.f32 %v92, %v614
  %v616 = vpop.f32.mrb[0].mxu0
  %v617 = vadd.f32 %v96, %v616
  %v618 = vpop.f32.mrb[0].mxu0
  %v619 = vadd.f32 %v92, %v618
  %v620 = vpop.f32.mrb[0].mxu0
  %v621 = vadd.f32 %v96, %v620
  %622 = vmatprep.mubr.bf16.mxu0 0
  %623 = vmatmul.mubr.bf16.gmra.mrb[0].mxu0 %v169
  %v624 = vpop.f32.mrb[0].mxu0
  %v625 = vadd.f32 %v92, %v624
  %v626 = vpop.f32.mrb[0].mxu0
  %v627 = vadd.f32 %v96, %v626
  %v628 = vpop.f32.mrb[0].mxu0
  %v629 = vadd.f32 %v92, %v628
  %v630 = vpop.f32.mrb[0].mxu0
  %v631 = vadd.f32 %v96, %v630
  %632 = vmatprep.mubr.bf16.mxu0 0
  %633 = vmatmul.mubr.bf16.gmra.mrb[0].mxu0 %v170
  %v634 = vpop.f32.mrb[0].mxu0
  %v635 = vadd.f32 %v92, %v634
  %v636 = vpop.f32.mrb[0].mxu0
  %v637 = vadd.f32 %v96, %v636
  %v638 = vpop.f32.mrb[0].mxu0
  %v639 = vadd.f32 %v92, %v638
  %v640 = vpop.f32.mrb[0].mxu0
  %v641 = vadd.f32 %v96, %v640
  %642 = vmatprep.mubr.bf16.mxu0 0
  %643 = vmatmul.mubr.bf16.gmra.mrb[0].mxu0 %v171
  %v644 = vpop.f32.mrb[0].mxu0
  %v645 = vadd.f32 %v92, %v644
  %v646 = vpop.f32.mrb[0].mxu0
  %v647 = vadd.f32 %v96, %v646
  %v648 = vpop.f32.mrb[0].mxu0
  %v649 = vadd.f32 %v92, %v648
  %v650 = vpop.f32.mrb[0].mxu0
  %v651 = vadd.f32 %v96, %v650
  %652 = vmatprep.mubr.bf16.mxu0 0
  %653 = vmatmul.mubr.bf16.gmra.mrb[0].mxu0 %v172
  %v654 = vpop.f32.mrb[0].mxu0
  %v655 = vadd.f32 %v92, %v654
  %v656 = vpop.f32.mrb[0].mxu0
  %v657 = vadd.f32 %v96, %v656
  %v658 = vpop.f32.mrb[0].mxu0
  %v659 = vadd.f32 %v92, %v658
  %v660 = vpop.f32.mrb[0].mxu0
  %v661 = vadd.f32 %v96, %v660
  %662 = vmatprep.mubr.bf16.mxu0 0
  %663 = vmatmul.mubr.bf16.gmra.mrb[0].mxu0 %v173
  %v664 = vpop.f32.mrb[0].mxu0
  %v665 = vadd.f32 %v92, %v664
  %v666 = vpop.f32.mrb[0].mxu0
  %v667 = vadd.f32 %v96, %v666
  %v668 = vpop.f32.mrb[0].mxu0
  %v669 = vadd.f32 %v92, %v668
  %v670 = vpop.f32.mrb[0].mxu0
  %v671 = vadd.f32 %v96, %v670
  %672 = vmatprep.mubr.bf16.mxu0 0
  %673 = vmatmul.mubr.bf16.gmra.mrb[0].mxu0 %v174
  %v674 = vpop.f32.mrb[0].mxu0
  %v675 = vadd.f32 %v92, %v674
  %v676 = vpop.f32.mrb[0].mxu0
  %v677 = vadd.f32 %v96, %v676
  %v678 = vpop.f32.mrb[0].mxu0
  %v679 = vadd.f32 %v92, %v678
  %v680 = vpop.f32.mrb[0].mxu0
  %v681 = vadd.f32 %v96, %v680
  %682 = vmatprep.mubr.bf16.mxu0 0
  %683 = vmatmul.mubr.bf16.gmra.mrb[0].mxu0 %v175
  %v684 = vpop.f32.mrb[0].mxu0
  %v685 = vadd.f32 %v92, %v684
  %v686 = vpop.f32.mrb[0].mxu0
  %v687 = vadd.f32 %v96, %v686
  %v688 = vpop.f32.mrb[0].mxu0
  %v689 = vadd.f32 %v92, %v688
  %v690 = vpop.f32.mrb[0].mxu0
  %v691 = vadd.f32 %v96, %v690
  %692 = vmatprep.mubr.bf16.mxu0 0
  %693 = vmatmul.mubr.bf16.gmra.mrb[0].mxu0 %v176
  %v694 = vpop.f32.mrb[0].mxu0
  %v695 = vadd.f32 %v92, %v694
  %v696 = vpop.f32.mrb[0].mxu0
  %v697 = vadd.f32 %v96, %v696
  %v698 = vpop.f32.mrb[0].mxu0
  %v699 = vadd.f32 %v92, %v698
  %v700 = vpop.f32.mrb[0].mxu0
  %v701 = vadd.f32 %v96, %v700
  %702 = vmatprep.mubr.bf16.mxu0 0
  %703 = vmatmul.mubr.bf16.gmra.mrb[0].mxu0 %v177
  %v704 = vpop.f32.mrb[0].mxu0
  %v705 = vadd.f32 %v92, %v704
  %v706 = vpop.f32.mrb[0].mxu0
  %v707 = vadd.f32 %v96, %v706
  %v708 = vpop.f32.mrb[0].mxu0
  %v709 = vadd.f32 %v92, %v708
  %v710 = vpop.f32.mrb[0].mxu0
  %v711 = vadd.f32 %v96, %v710
  %712 = vmatprep.mubr.bf16.mxu0 0
  %713 = vmatmul.mubr.bf16.gmra.mrb[0].mxu0 %v178
  %v714 = vpop.f32.mrb[0].mxu0
  %v715 = vadd.f32 %v92, %v714
  %v716 = vpop.f32.mrb[0].mxu0
  %v717 = vadd.f32 %v96, %v716
  %v718 = vpop.f32.mrb[0].mxu0
  %v719 = vadd.f32 %v92, %v718
  %v720 = vpop.f32.mrb[0].mxu0
  %v721 = vadd.f32 %v96, %v720
  %722 = vmatprep.mubr.bf16.mxu0 0
  %723 = vmatmul.mubr.bf16.gmra.mrb[0].mxu0 %v179
  %v724 = vpop.f32.mrb[0].mxu0
  %v725 = vadd.f32 %v92, %v724
  %v726 = vpop.f32.mrb[0].mxu0
  %v727 = vadd.f32 %v96, %v726
  %v728 = vpop.f32.mrb[0].mxu0
  %v729 = vadd.f32 %v92, %v728
  %v730 = vpop.f32.mrb[0].mxu0
  %v731 = vadd.f32 %v96, %v730
  %732 = vmatprep.mubr.bf16.mxu0 0
  %733 = vmatmul.mubr.bf16.gmra.mrb[0].mxu0 %v180
  %v734 = vpop.f32.mrb[0].mxu0
  %v735 = vadd.f32 %v92, %v734
  %v736 = vpop.f32.mrb[0].mxu0
  %v737 = vadd.f32 %v96, %v736
  %v738 = vpop.f32.mrb[0].mxu0
  %v739 = vadd.f32 %v92, %v738
  %v740 = vpop.f32.mrb[0].mxu0
  %v741 = vadd.f32 %v96, %v740
  %742 = vdwg.mxu0
  %v743 = vmul.f32 %v392, 0.5
  %v744 = vmul.f32 %v394, 0.5
  %v745 = vmul.f32 %v585, 0.5
  %v746 = vmul.f32 %v587, 0.5
  %v747 = vmul.f32 %v396, 0.5
  %v748 = vmul.f32 %v398, 0.5
  %v749 = vmul.f32 %v589, 0.5
  %v750 = vmul.f32 %v591, 0.5
  %v751 = vmul.f32 %v402, 0.5
  %v752 = vmul.f32 %v404, 0.5
  %v753 = vmul.f32 %v595, 0.5
  %v754 = vmul.f32 %v597, 0.5
  %v755 = vmul.f32 %v406, 0.5
  %v756 = vmul.f32 %v408, 0.5
  %v757 = vmul.f32 %v599, 0.5
  %v758 = vmul.f32 %v601, 0.5
  %v759 = vmul.f32 %v412, 0.5
  %v760 = vmul.f32 %v414, 0.5
  %v761 = vmul.f32 %v605, 0.5
  %v762 = vmul.f32 %v607, 0.5
  %v763 = vmul.f32 %v416, 0.5
  %v764 = vmul.f32 %v418, 0.5
  %v765 = vmul.f32 %v609, 0.5
  %v766 = vmul.f32 %v611, 0.5
  %v767 = vmul.f32 %v422, 0.5
  %v768 = vmul.f32 %v424, 0.5
  %v769 = vmul.f32 %v615, 0.5
  %v770 = vmul.f32 %v617, 0.5
  %v771 = vmul.f32 %v426, 0.5
  %v772 = vmul.f32 %v428, 0.5
  %v773 = vmul.f32 %v619, 0.5
  %v774 = vmul.f32 %v621, 0.5
  %v775 = vmul.f32 %v432, 0.5
  %v776 = vmul.f32 %v434, 0.5
  %v777 = vmul.f32 %v625, 0.5
  %v778 = vmul.f32 %v627, 0.5
  %v779 = vmul.f32 %v436, 0.5
  %v780 = vmul.f32 %v438, 0.5
  %v781 = vmul.f32 %v629, 0.5
  %v782 = vmul.f32 %v631, 0.5
  %v783 = vmul.f32 %v442, 0.5
  %v784 = vmul.f32 %v444, 0.5
  %v785 = vmul.f32 %v635, 0.5
  %v786 = vmul.f32 %v637, 0.5
  %v787 = vmul.f32 %v446, 0.5
  %v788 = vmul.f32 %v448, 0.5
  %v789 = vmul.f32 %v639, 0.5
  %v790 = vmul.f32 %v641, 0.5
  %v791 = vmul.f32 %v452, 0.5
  %v792 = vmul.f32 %v454, 0.5
  %v793 = vmul.f32 %v645, 0.5
  %v794 = vmul.f32 %v647, 0.5
  %v795 = vmul.f32 %v456, 0.5
  %v796 = vmul.f32 %v458, 0.5
  %v797 = vmul.f32 %v649, 0.5
  %v798 = vmul.f32 %v651, 0.5
  %v799 = vmul.f32 %v462, 0.5
  %v800 = vmul.f32 %v464, 0.5
  %v801 = vmul.f32 %v655, 0.5
  %v802 = vmul.f32 %v657, 0.5
  %v803 = vmul.f32 %v466, 0.5
  %v804 = vmul.f32 %v468, 0.5
  %v805 = vmul.f32 %v659, 0.5
  %v806 = vmul.f32 %v661, 0.5
  %v807 = vmul.f32 %v472, 0.5
  %v808 = vmul.f32 %v474, 0.5
  %v809 = vmul.f32 %v665, 0.5
  %v810 = vmul.f32 %v667, 0.5
  %v811 = vmul.f32 %v476, 0.5
  %v812 = vmul.f32 %v478, 0.5
  %v813 = vmul.f32 %v669, 0.5
  %v814 = vmul.f32 %v671, 0.5
  %v815 = vmul.f32 %v482, 0.5
  %v816 = vmul.f32 %v484, 0.5
  %v817 = vmul.f32 %v675, 0.5
  %v818 = vmul.f32 %v677, 0.5
  %v819 = vmul.f32 %v486, 0.5
  %v820 = vmul.f32 %v488, 0.5
  %v821 = vmul.f32 %v679, 0.5
  %v822 = vmul.f32 %v681, 0.5
  %v823 = vmul.f32 %v492, 0.5
  %v824 = vmul.f32 %v494, 0.5
  %v825 = vmul.f32 %v685, 0.5
  %v826 = vmul.f32 %v687, 0.5
  %v827 = vmul.f32 %v496, 0.5
  %v828 = vmul.f32 %v498, 0.5
  %v829 = vmul.f32 %v689, 0.5
  %v830 = vmul.f32 %v691, 0.5
  %v831 = vmul.f32 %v502, 0.5
  %v832 = vmul.f32 %v504, 0.5
  %v833 = vmul.f32 %v695, 0.5
  %v834 = vmul.f32 %v697, 0.5
  %v835 = vmul.f32 %v506, 0.5
  %v836 = vmul.f32 %v508, 0.5
  %v837 = vmul.f32 %v699, 0.5
  %v838 = vmul.f32 %v701, 0.5
  %v839 = vmul.f32 %v512, 0.5
  %v840 = vmul.f32 %v514, 0.5
  %v841 = vmul.f32 %v705, 0.5
  %v842 = vmul.f32 %v707, 0.5
  %v843 = vmul.f32 %v516, 0.5
  %v844 = vmul.f32 %v518, 0.5
  %v845 = vmul.f32 %v709, 0.5
  %v846 = vmul.f32 %v711, 0.5
  %v847 = vmul.f32 %v522, 0.5
  %v848 = vmul.f32 %v524, 0.5
  %v849 = vmul.f32 %v715, 0.5
  %v850 = vmul.f32 %v717, 0.5
  %v851 = vmul.f32 %v526, 0.5
  %v852 = vmul.f32 %v528, 0.5
  %v853 = vmul.f32 %v719, 0.5
  %v854 = vmul.f32 %v721, 0.5
  %v855 = vmul.f32 %v532, 0.5
  %v856 = vmul.f32 %v534, 0.5
  %v857 = vmul.f32 %v725, 0.5
  %v858 = vmul.f32 %v727, 0.5
  %v859 = vmul.f32 %v536, 0.5
  %v860 = vmul.f32 %v538, 0.5
  %v861 = vmul.f32 %v729, 0.5
  %v862 = vmul.f32 %v731, 0.5
  %v863 = vmul.f32 %v542, 0.5
  %v864 = vmul.f32 %v544, 0.5
  %v865 = vmul.f32 %v735, 0.5
  %v866 = vmul.f32 %v737, 0.5
  %v867 = vmul.f32 %v546, 0.5
  %v868 = vmul.f32 %v548, 0.5
  %v869 = vmul.f32 %v739, 0.5
  %v870 = vmul.f32 %v741, 0.5
  %v871 = vmul.f32 %v392, 0.044715
  %v872 = vmul.f32 %v394, 0.044715
  %v873 = vmul.f32 %v585, 0.044715
  %v874 = vmul.f32 %v587, 0.044715
  %v875 = vmul.f32 %v396, 0.044715
  %v876 = vmul.f32 %v398, 0.044715
  %v877 = vmul.f32 %v589, 0.044715
  %v878 = vmul.f32 %v591, 0.044715
  %v879 = vmul.f32 %v402, 0.044715
  %v880 = vmul.f32 %v404, 0.044715
  %v881 = vmul.f32 %v595, 0.044715
  %v882 = vmul.f32 %v597, 0.044715
  %v883 = vmul.f32 %v406, 0.044715
  %v884 = vmul.f32 %v408, 0.044715
  %v885 = vmul.f32 %v599, 0.044715
  %v886 = vmul.f32 %v601, 0.044715
  %v887 = vmul.f32 %v412, 0.044715
  %v888 = vmul.f32 %v414, 0.044715
  %v889 = vmul.f32 %v605, 0.044715
  %v890 = vmul.f32 %v607, 0.044715
  %v891 = vmul.f32 %v416, 0.044715
  %v892 = vmul.f32 %v418, 0.044715
  %v893 = vmul.f32 %v609, 0.044715
  %v894 = vmul.f32 %v611, 0.044715
  %v895 = vmul.f32 %v422, 0.044715
  %v896 = vmul.f32 %v424, 0.044715
  %v897 = vmul.f32 %v615, 0.044715
  %v898 = vmul.f32 %v617, 0.044715
  %v899 = vmul.f32 %v426, 0.044715
  %v900 = vmul.f32 %v428, 0.044715
  %v901 = vmul.f32 %v619, 0.044715
  %v902 = vmul.f32 %v621, 0.044715
  %v903 = vmul.f32 %v432, 0.044715
  %v904 = vmul.f32 %v434, 0.044715
  %v905 = vmul.f32 %v625, 0.044715
  %v906 = vmul.f32 %v627, 0.044715
  %v907 = vmul.f32 %v436, 0.044715
  %v908 = vmul.f32 %v438, 0.044715
  %v909 = vmul.f32 %v629, 0.044715
  %v910 = vmul.f32 %v631, 0.044715
  %v911 = vmul.f32 %v442, 0.044715
  %v912 = vmul.f32 %v444, 0.044715
  %v913 = vmul.f32 %v635, 0.044715
  %v914 = vmul.f32 %v637, 0.044715
  %v915 = vmul.f32 %v446, 0.044715
  %v916 = vmul.f32 %v448, 0.044715
  %v917 = vmul.f32 %v639, 0.044715
  %v918 = vmul.f32 %v641, 0.044715
  %v919 = vmul.f32 %v452, 0.044715
  %v920 = vmul.f32 %v454, 0.044715
  %v921 = vmul.f32 %v645, 0.044715
  %v922 = vmul.f32 %v647, 0.044715
  %v923 = vmul.f32 %v456, 0.044715
  %v924 = vmul.f32 %v458, 0.044715
  %v925 = vmul.f32 %v649, 0.044715
  %v926 = vmul.f32 %v651, 0.044715
  %v927 = vmul.f32 %v462, 0.044715
  %v928 = vmul.f32 %v464, 0.044715
  %v929 = vmul.f32 %v655, 0.044715
  %v930 = vmul.f32 %v657, 0.044715
  %v931 = vmul.f32 %v466, 0.044715
  %v932 = vmul.f32 %v468, 0.044715
  %v933 = vmul.f32 %v659, 0.044715
  %v934 = vmul.f32 %v661, 0.044715
  %v935 = vmul.f32 %v472, 0.044715
  %v936 = vmul.f32 %v474, 0.044715
  %v937 = vmul.f32 %v665, 0.044715
  %v938 = vmul.f32 %v667, 0.044715
  %v939 = vmul.f32 %v476, 0.044715
  %v940 = vmul.f32 %v478, 0.044715
  %v941 = vmul.f32 %v669, 0.044715
  %v942 = vmul.f32 %v671, 0.044715
  %v943 = vmul.f32 %v482, 0.044715
  %v944 = vmul.f32 %v484, 0.044715
  %v945 = vmul.f32 %v675, 0.044715
  %v946 = vmul.f32 %v677, 0.044715
  %v947 = vmul.f32 %v486, 0.044715
  %v948 = vmul.f32 %v488, 0.044715
  %v949 = vmul.f32 %v679, 0.044715
  %v950 = vmul.f32 %v681, 0.044715
  %v951 = vmul.f32 %v492, 0.044715
  %v952 = vmul.f32 %v494, 0.044715
  %v953 = vmul.f32 %v685, 0.044715
  %v954 = vmul.f32 %v687, 0.044715
  %v955 = vmul.f32 %v496, 0.044715
  %v956 = vmul.f32 %v498, 0.044715
  %v957 = vmul.f32 %v689, 0.044715
  %v958 = vmul.f32 %v691, 0.044715
  %v959 = vmul.f32 %v502, 0.044715
  %v960 = vmul.f32 %v504, 0.044715
  %v961 = vmul.f32 %v695, 0.044715
  %v962 = vmul.f32 %v697, 0.044715
  %v963 = vmul.f32 %v506, 0.044715
  %v964 = vmul.f32 %v508, 0.044715
  %v965 = vmul.f32 %v699, 0.044715
  %v966 = vmul.f32 %v701, 0.044715
  %v967 = vmul.f32 %v512, 0.044715
  %v968 = vmul.f32 %v514, 0.044715
  %v969 = vmul.f32 %v705, 0.044715
  %v970 = vmul.f32 %v707, 0.044715
  %v971 = vmul.f32 %v516, 0.044715
  %v972 = vmul.f32 %v518, 0.044715
  %v973 = vmul.f32 %v709, 0.044715
  %v974 = vmul.f32 %v711, 0.044715
  %v975 = vmul.f32 %v522, 0.044715
  %v976 = vmul.f32 %v524, 0.044715
  %v977 = vmul.f32 %v715, 0.044715
  %v978 = vmul.f32 %v717, 0.044715
  %v979 = vmul.f32 %v526, 0.044715
  %v980 = vmul.f32 %v528, 0.044715
  %v981 = vmul.f32 %v719, 0.044715
  %v982 = vmul.f32 %v721, 0.044715
  %v983 = vmul.f32 %v532, 0.044715
  %v984 = vmul.f32 %v534, 0.044715
  %v985 = vmul.f32 %v725, 0.044715
  %v986 = vmul.f32 %v727, 0.044715
  %v987 = vmul.f32 %v536, 0.044715
  %v988 = vmul.f32 %v538, 0.044715
  %v989 = vmul.f32 %v729, 0.044715
  %v990 = vmul.f32 %v731, 0.044715
  %v991 = vmul.f32 %v542, 0.044715
  %v992 = vmul.f32 %v544, 0.044715
  %v993 = vmul.f32 %v735, 0.044715
  %v994 = vmul.f32 %v737, 0.044715
  %v995 = vmul.f32 %v546, 0.044715
  %v996 = vmul.f32 %v548, 0.044715
  %v997 = vmul.f32 %v739, 0.044715
  %v998 = vmul.f32 %v741, 0.044715
  %v999 = vmul.f32 %v871, %v392
  %v1000 = vmul.f32 %v872, %v394
  %v1001 = vmul.f32 %v873, %v585
  %v1002 = vmul.f32 %v874, %v587
  %v1003 = vmul.f32 %v875, %v396
  %v1004 = vmul.f32 %v876, %v398
  %v1005 = vmul.f32 %v877, %v589
  %v1006 = vmul.f32 %v878, %v591
  %v1007 = vmul.f32 %v879, %v402
  %v1008 = vmul.f32 %v880, %v404
  %v1009 = vmul.f32 %v881, %v595
  %v1010 = vmul.f32 %v882, %v597
  %v1011 = vmul.f32 %v883, %v406
  %v1012 = vmul.f32 %v884, %v408
  %v1013 = vmul.f32 %v885, %v599
  %v1014 = vmul.f32 %v886, %v601
  %v1015 = vmul.f32 %v887, %v412
  %v1016 = vmul.f32 %v888, %v414
  %v1017 = vmul.f32 %v889, %v605
  %v1018 = vmul.f32 %v890, %v607
  %v1019 = vmul.f32 %v891, %v416
  %v1020 = vmul.f32 %v892, %v418
  %v1021 = vmul.f32 %v893, %v609
  %v1022 = vmul.f32 %v894, %v611
  %v1023 = vmul.f32 %v895, %v422
  %v1024 = vmul.f32 %v896, %v424
  %v1025 = vmul.f32 %v897, %v615
  %v1026 = vmul.f32 %v898, %v617
  %v1027 = vmul.f32 %v899, %v426
  %v1028 = vmul.f32 %v900, %v428
  %v1029 = vmul.f32 %v901, %v619
  %v1030 = vmul.f32 %v902, %v621
  %v1031 = vmul.f32 %v903, %v432
  %v1032 = vmul.f32 %v904, %v434
  %v1033 = vmul.f32 %v905, %v625
  %v1034 = vmul.f32 %v906, %v627
  %v1035 = vmul.f32 %v907, %v436
  %v1036 = vmul.f32 %v908, %v438
  %v1037 = vmul.f32 %v909, %v629
  %v1038 = vmul.f32 %v910, %v631
  %v1039 = vmul.f32 %v911, %v442
  %v1040 = vmul.f32 %v912, %v444
  %v1041 = vmul.f32 %v913, %v635
  %v1042 = vmul.f32 %v914, %v637
  %v1043 = vmul.f32 %v915, %v446
  %v1044 = vmul.f32 %v916, %v448
  %v1045 = vmul.f32 %v917, %v639
  %v1046 = vmul.f32 %v918, %v641
  %v1047 = vmul.f32 %v919, %v452
  %v1048 = vmul.f32 %v920, %v454
  %v1049 = vmul.f32 %v921, %v645
  %v1050 = vmul.f32 %v922, %v647
  %v1051 = vmul.f32 %v923, %v456
  %v1052 = vmul.f32 %v924, %v458
  %v1053 = vmul.f32 %v925, %v649
  %v1054 = vmul.f32 %v926, %v651
  %v1055 = vmul.f32 %v927, %v462
  %v1056 = vmul.f32 %v928, %v464
  %v1057 = vmul.f32 %v929, %v655
  %v1058 = vmul.f32 %v930, %v657
  %v1059 = vmul.f32 %v931, %v466
  %v1060 = vmul.f32 %v932, %v468
  %v1061 = vmul.f32 %v933, %v659
  %v1062 = vmul.f32 %v934, %v661
  %v1063 = vmul.f32 %v935, %v472
  %v1064 = vmul.f32 %v936, %v474
  %v1065 = vmul.f32 %v937, %v665
  %v1066 = vmul.f32 %v938, %v667
  %v1067 = vmul.f32 %v939, %v476
  %v1068 = vmul.f32 %v940, %v478
  %v1069 = vmul.f32 %v941, %v669
  %v1070 = vmul.f32 %v942, %v671
  %v1071 = vmul.f32 %v943, %v482
  %v1072 = vmul.f32 %v944, %v484
  %v1073 = vmul.f32 %v945, %v675
  %v1074 = vmul.f32 %v946, %v677
  %v1075 = vmul.f32 %v947, %v486
  %v1076 = vmul.f32 %v948, %v488
  %v1077 = vmul.f32 %v949, %v679
  %v1078 = vmul.f32 %v950, %v681
  %v1079 = vmul.f32 %v951, %v492
  %v1080 = vmul.f32 %v952, %v494
  %v1081 = vmul.f32 %v953, %v685
  %v1082 = vmul.f32 %v954, %v687
  %v1083 = vmul.f32 %v955, %v496
  %v1084 = vmul.f32 %v956, %v498
  %v1085 = vmul.f32 %v957, %v689
  %v1086 = vmul.f32 %v958, %v691
  %v1087 = vmul.f32 %v959, %v502
  %v1088 = vmul.f32 %v960, %v504
  %v1089 = vmul.f32 %v961, %v695
  %v1090 = vmul.f32 %v962, %v697
  %v1091 = vmul.f32 %v963, %v506
  %v1092 = vmul.f32 %v964, %v508
  %v1093 = vmul.f32 %v965, %v699
  %v1094 = vmul.f32 %v966, %v701
  %v1095 = vmul.f32 %v967, %v512
  %v1096 = vmul.f32 %v968, %v514
  %v1097 = vmul.f32 %v969, %v705
  %v1098 = vmul.f32 %v970, %v707
  %v1099 = vmul.f32 %v971, %v516
  %v1100 = vmul.f32 %v972, %v518
  %v1101 = vmul.f32 %v973, %v709
  %v1102 = vmul.f32 %v974, %v711
  %v1103 = vmul.f32 %v975, %v522
  %v1104 = vmul.f32 %v976, %v524
  %v1105 = vmul.f32 %v977, %v715
  %v1106 = vmul.f32 %v978, %v717
  %v1107 = vmul.f32 %v979, %v526
  %v1108 = vmul.f32 %v980, %v528
  %v1109 = vmul.f32 %v981, %v719
  %v1110 = vmul.f32 %v982, %v721
  %v1111 = vmul.f32 %v983, %v532
  %v1112 = vmul.f32 %v984, %v534
  %v1113 = vmul.f32 %v985, %v725
  %v1114 = vmul.f32 %v986, %v727
  %v1115 = vmul.f32 %v987, %v536
  %v1116 = vmul.f32 %v988, %v538
  %v1117 = vmul.f32 %v989, %v729
  %v1118 = vmul.f32 %v990, %v731
  %v1119 = vmul.f32 %v991, %v542
  %v1120 = vmul.f32 %v992, %v544
  %v1121 = vmul.f32 %v993, %v735
  %v1122 = vmul.f32 %v994, %v737
  %v1123 = vmul.f32 %v995, %v546
  %v1124 = vmul.f32 %v996, %v548
  %v1125 = vmul.f32 %v997, %v739
  %v1126 = vmul.f32 %v998, %v741
  %v1127 = vmul.f32 %v999, %v392
  %v1128 = vmul.f32 %v1000, %v394
  %v1129 = vmul.f32 %v1001, %v585
  %v1130 = vmul.f32 %v1002, %v587
  %v1131 = vmul.f32 %v1003, %v396
  %v1132 = vmul.f32 %v1004, %v398
  %v1133 = vmul.f32 %v1005, %v589
  %v1134 = vmul.f32 %v1006, %v591
  %v1135 = vmul.f32 %v1007, %v402
  %v1136 = vmul.f32 %v1008, %v404
  %v1137 = vmul.f32 %v1009, %v595
  %v1138 = vmul.f32 %v1010, %v597
  %v1139 = vmul.f32 %v1011, %v406
  %v1140 = vmul.f32 %v1012, %v408
  %v1141 = vmul.f32 %v1013, %v599
  %v1142 = vmul.f32 %v1014, %v601
  %v1143 = vmul.f32 %v1015, %v412
  %v1144 = vmul.f32 %v1016, %v414
  %v1145 = vmul.f32 %v1017, %v605
  %v1146 = vmul.f32 %v1018, %v607
  %v1147 = vmul.f32 %v1019, %v416
  %v1148 = vmul.f32 %v1020, %v418
  %v1149 = vmul.f32 %v1021, %v609
  %v1150 = vmul.f32 %v1022, %v611
  %v1151 = vmul.f32 %v1023, %v422
  %v1152 = vmul.f32 %v1024, %v424
  %v1153 = vmul.f32 %v1025, %v615
  %v1154 = vmul.f32 %v1026, %v617
  %v1155 = vmul.f32 %v1027, %v426
  %v1156 = vmul.f32 %v1028, %v428
  %v1157 = vmul.f32 %v1029, %v619
  %v1158 = vmul.f32 %v1030, %v621
  %v1159 = vmul.f32 %v1031, %v432
  %v1160 = vmul.f32 %v1032, %v434
  %v1161 = vmul.f32 %v1033, %v625
  %v1162 = vmul.f32 %v1034, %v627
  %v1163 = vmul.f32 %v1035, %v436
  %v1164 = vmul.f32 %v1036, %v438
  %v1165 = vmul.f32 %v1037, %v629
  %v1166 = vmul.f32 %v1038, %v631
  %v1167 = vmul.f32 %v1039, %v442
  %v1168 = vmul.f32 %v1040, %v444
  %v1169 = vmul.f32 %v1041, %v635
  %v1170 = vmul.f32 %v1042, %v637
  %v1171 = vmul.f32 %v1043, %v446
  %v1172 = vmul.f32 %v1044, %v448
  %v1173 = vmul.f32 %v1045, %v639
  %v1174 = vmul.f32 %v1046, %v641
  %v1175 = vmul.f32 %v1047, %v452
  %v1176 = vmul.f32 %v1048, %v454
  %v1177 = vmul.f32 %v1049, %v645
  %v1178 = vmul.f32 %v1050, %v647
  %v1179 = vmul.f32 %v1051, %v456
  %v1180 = vmul.f32 %v1052, %v458
  %v1181 = vmul.f32 %v1053, %v649
  %v1182 = vmul.f32 %v1054, %v651
  %v1183 = vmul.f32 %v1055, %v462
  %v1184 = vmul.f32 %v1056, %v464
  %v1185 = vmul.f32 %v1057, %v655
  %v1186 = vmul.f32 %v1058, %v657
  %v1187 = vmul.f32 %v1059, %v466
  %v1188 = vmul.f32 %v1060, %v468
  %v1189 = vmul.f32 %v1061, %v659
  %v1190 = vmul.f32 %v1062, %v661
  %v1191 = vmul.f32 %v1063, %v472
  %v1192 = vmul.f32 %v1064, %v474
  %v1193 = vmul.f32 %v1065, %v665
  %v1194 = vmul.f32 %v1066, %v667
  %v1195 = vmul.f32 %v1067, %v476
  %v1196 = vmul.f32 %v1068, %v478
  %v1197 = vmul.f32 %v1069, %v669
  %v1198 = vmul.f32 %v1070, %v671
  %v1199 = vmul.f32 %v1071, %v482
  %v1200 = vmul.f32 %v1072, %v484
  %v1201 = vmul.f32 %v1073, %v675
  %v1202 = vmul.f32 %v1074, %v677
  %v1203 = vmul.f32 %v1075, %v486
  %v1204 = vmul.f32 %v1076, %v488
  %v1205 = vmul.f32 %v1077, %v679
  %v1206 = vmul.f32 %v1078, %v681
  %v1207 = vmul.f32 %v1079, %v492
  %v1208 = vmul.f32 %v1080, %v494
  %v1209 = vmul.f32 %v1081, %v685
  %v1210 = vmul.f32 %v1082, %v687
  %v1211 = vmul.f32 %v1083, %v496
  %v1212 = vmul.f32 %v1084, %v498
  %v1213 = vmul.f32 %v1085, %v689
  %v1214 = vmul.f32 %v1086, %v691
  %v1215 = vmul.f32 %v1087, %v502
  %v1216 = vmul.f32 %v1088, %v504
  %v1217 = vmul.f32 %v1089, %v695
  %v1218 = vmul.f32 %v1090, %v697
  %v1219 = vmul.f32 %v1091, %v506
  %v1220 = vmul.f32 %v1092, %v508
  %v1221 = vmul.f32 %v1093, %v699
  %v1222 = vmul.f32 %v1094, %v701
  %v1223 = vmul.f32 %v1095, %v512
  %v1224 = vmul.f32 %v1096, %v514
  %v1225 = vmul.f32 %v1097, %v705
  %v1226 = vmul.f32 %v1098, %v707
  %v1227 = vmul.f32 %v1099, %v516
  %v1228 = vmul.f32 %v1100, %v518
  %v1229 = vmul.f32 %v1101, %v709
  %v1230 = vmul.f32 %v1102, %v711
  %v1231 = vmul.f32 %v1103, %v522
  %v1232 = vmul.f32 %v1104, %v524
  %v1233 = vmul.f32 %v1105, %v715
  %v1234 = vmul.f32 %v1106, %v717
  %v1235 = vmul.f32 %v1107, %v526
  %v1236 = vmul.f32 %v1108, %v528
  %v1237 = vmul.f32 %v1109, %v719
  %v1238 = vmul.f32 %v1110, %v721
  %v1239 = vmul.f32 %v1111, %v532
  %v1240 = vmul.f32 %v1112, %v534
  %v1241 = vmul.f32 %v1113, %v725
  %v1242 = vmul.f32 %v1114, %v727
  %v1243 = vmul.f32 %v1115, %v536
  %v1244 = vmul.f32 %v1116, %v538
  %v1245 = vmul.f32 %v1117, %v729
  %v1246 = vmul.f32 %v1118, %v731
  %v1247 = vmul.f32 %v1119, %v542
  %v1248 = vmul.f32 %v1120, %v544
  %v1249 = vmul.f32 %v1121, %v735
  %v1250 = vmul.f32 %v1122, %v737
  %v1251 = vmul.f32 %v1123, %v546
  %v1252 = vmul.f32 %v1124, %v548
  %v1253 = vmul.f32 %v1125, %v739
  %v1254 = vmul.f32 %v1126, %v741
  %v1255 = vadd.f32 %v392, %v1127
  %v1256 = vadd.f32 %v394, %v1128
  %v1257 = vadd.f32 %v585, %v1129
  %v1258 = vadd.f32 %v587, %v1130
  %v1259 = vadd.f32 %v396, %v1131
  %v1260 = vadd.f32 %v398, %v1132
  %v1261 = vadd.f32 %v589, %v1133
  %v1262 = vadd.f32 %v591, %v1134
  %v1263 = vadd.f32 %v402, %v1135
  %v1264 = vadd.f32 %v404, %v1136
  %v1265 = vadd.f32 %v595, %v1137
  %v1266 = vadd.f32 %v597, %v1138
  %v1267 = vadd.f32 %v406, %v1139
  %v1268 = vadd.f32 %v408, %v1140
  %v1269 = vadd.f32 %v599, %v1141
  %v1270 = vadd.f32 %v601, %v1142
  %v1271 = vadd.f32 %v412, %v1143
  %v1272 = vadd.f32 %v414, %v1144
  %v1273 = vadd.f32 %v605, %v1145
  %v1274 = vadd.f32 %v607, %v1146
  %v1275 = vadd.f32 %v416, %v1147
  %v1276 = vadd.f32 %v418, %v1148
  %v1277 = vadd.f32 %v609, %v1149
  %v1278 = vadd.f32 %v611, %v1150
  %v1279 = vadd.f32 %v422, %v1151
  %v1280 = vadd.f32 %v424, %v1152
  %v1281 = vadd.f32 %v615, %v1153
  %v1282 = vadd.f32 %v617, %v1154
  %v1283 = vadd.f32 %v426, %v1155
  %v1284 = vadd.f32 %v428, %v1156
  %v1285 = vadd.f32 %v619, %v1157
  %v1286 = vadd.f32 %v621, %v1158
  %v1287 = vadd.f32 %v432, %v1159
  %v1288 = vadd.f32 %v434, %v1160
  %v1289 = vadd.f32 %v625, %v1161
  %v1290 = vadd.f32 %v627, %v1162
  %v1291 = vadd.f32 %v436, %v1163
  %v1292 = vadd.f32 %v438, %v1164
  %v1293 = vadd.f32 %v629, %v1165
  %v1294 = vadd.f32 %v631, %v1166
  %v1295 = vadd.f32 %v442, %v1167
  %v1296 = vadd.f32 %v444, %v1168
  %v1297 = vadd.f32 %v635, %v1169
  %v1298 = vadd.f32 %v637, %v1170
  %v1299 = vadd.f32 %v446, %v1171
  %v1300 = vadd.f32 %v448, %v1172
  %v1301 = vadd.f32 %v639, %v1173
  %v1302 = vadd.f32 %v641, %v1174
  %v1303 = vadd.f32 %v452, %v1175
  %v1304 = vadd.f32 %v454, %v1176
  %v1305 = vadd.f32 %v645, %v1177
  %v1306 = vadd.f32 %v647, %v1178
  %v1307 = vadd.f32 %v456, %v1179
  %v1308 = vadd.f32 %v458, %v1180
  %v1309 = vadd.f32 %v649, %v1181
  %v1310 = vadd.f32 %v651, %v1182
  %v1311 = vadd.f32 %v462, %v1183
  %v1312 = vadd.f32 %v464, %v1184
  %v1313 = vadd.f32 %v655, %v1185
  %v1314 = vadd.f32 %v657, %v1186
  %v1315 = vadd.f32 %v466, %v1187
  %v1316 = vadd.f32 %v468, %v1188
  %v1317 = vadd.f32 %v659, %v1189
  %v1318 = vadd.f32 %v661, %v1190
  %v1319 = vadd.f32 %v472, %v1191
  %v1320 = vadd.f32 %v474, %v1192
  %v1321 = vadd.f32 %v665, %v1193
  %v1322 = vadd.f32 %v667, %v1194
  %v1323 = vadd.f32 %v476, %v1195
  %v1324 = vadd.f32 %v478, %v1196
  %v1325 = vadd.f32 %v669, %v1197
  %v1326 = vadd.f32 %v671, %v1198
  %v1327 = vadd.f32 %v482, %v1199
  %v1328 = vadd.f32 %v484, %v1200
  %v1329 = vadd.f32 %v675, %v1201
  %v1330 = vadd.f32 %v677, %v1202
  %v1331 = vadd.f32 %v486, %v1203
  %v1332 = vadd.f32 %v488, %v1204
  %v1333 = vadd.f32 %v679, %v1205
  %v1334 = vadd.f32 %v681, %v1206
  %v1335 = vadd.f32 %v492, %v1207
  %v1336 = vadd.f32 %v494, %v1208
  %v1337 = vadd.f32 %v685, %v1209
  %v1338 = vadd.f32 %v687, %v1210
  %v1339 = vadd.f32 %v496, %v1211
  %v1340 = vadd.f32 %v498, %v1212
  %v1341 = vadd.f32 %v689, %v1213
  %v1342 = vadd.f32 %v691, %v1214
  %v1343 = vadd.f32 %v502, %v1215
  %v1344 = vadd.f32 %v504, %v1216
  %v1345 = vadd.f32 %v695, %v1217
  %v1346 = vadd.f32 %v697, %v1218
  %v1347 = vadd.f32 %v506, %v1219
  %v1348 = vadd.f32 %v508, %v1220
  %v1349 = vadd.f32 %v699, %v1221
  %v1350 = vadd.f32 %v701, %v1222
  %v1351 = vadd.f32 %v512, %v1223
  %v1352 = vadd.f32 %v514, %v1224
  %v1353 = vadd.f32 %v705, %v1225
  %v1354 = vadd.f32 %v707, %v1226
  %v1355 = vadd.f32 %v516, %v1227
  %v1356 = vadd.f32 %v518, %v1228
  %v1357 = vadd.f32 %v709, %v1229
  %v1358 = vadd.f32 %v711, %v1230
  %v1359 = vadd.f32 %v522, %v1231
  %v1360 = vadd.f32 %v524, %v1232
  %v1361 = vadd.f32 %v715, %v1233
  %v1362 = vadd.f32 %v717, %v1234
  %v1363 = vadd.f32 %v526, %v1235
  %v1364 = vadd.f32 %v528, %v1236
  %v1365 = vadd.f32 %v719, %v1237
  %v1366 = vadd.f32 %v721, %v1238
  %v1367 = vadd.f32 %v532, %v1239
  %v1368 = vadd.f32 %v534, %v1240
  %v1369 = vadd.f32 %v725, %v1241
  %v1370 = vadd.f32 %v727, %v1242
  %v1371 = vadd.f32 %v536, %v1243
  %v1372 = vadd.f32 %v538, %v1244
  %v1373 = vadd.f32 %v729, %v1245
  %v1374 = vadd.f32 %v731, %v1246
  %v1375 = vadd.f32 %v542, %v1247
  %v1376 = vadd.f32 %v544, %v1248
  %v1377 = vadd.f32 %v735, %v1249
  %v1378 = vadd.f32 %v737, %v1250
  %v1379 = vadd.f32 %v546, %v1251
  %v1380 = vadd.f32 %v548, %v1252
  %v1381 = vadd.f32 %v739, %v1253
  %v1382 = vadd.f32 %v741, %v1254
  %v1383 = vmul.f32 %v1255, 0.7978846
  %v1384 = vmul.f32 %v1256, 0.7978846
  %v1385 = vmul.f32 %v1257, 0.7978846
  %v1386 = vmul.f32 %v1258, 0.7978846
  %v1387 = vmul.f32 %v1259, 0.7978846
  %v1388 = vmul.f32 %v1260, 0.7978846
  %v1389 = vmul.f32 %v1261, 0.7978846
  %v1390 = vmul.f32 %v1262, 0.7978846
  %v1391 = vmul.f32 %v1263, 0.7978846
  %v1392 = vmul.f32 %v1264, 0.7978846
  %v1393 = vmul.f32 %v1265, 0.7978846
  %v1394 = vmul.f32 %v1266, 0.7978846
  %v1395 = vmul.f32 %v1267, 0.7978846
  %v1396 = vmul.f32 %v1268, 0.7978846
  %v1397 = vmul.f32 %v1269, 0.7978846
  %v1398 = vmul.f32 %v1270, 0.7978846
  %v1399 = vmul.f32 %v1271, 0.7978846
  %v1400 = vmul.f32 %v1272, 0.7978846
  %v1401 = vmul.f32 %v1273, 0.7978846
  %v1402 = vmul.f32 %v1274, 0.7978846
  %v1403 = vmul.f32 %v1275, 0.7978846
  %v1404 = vmul.f32 %v1276, 0.7978846
  %v1405 = vmul.f32 %v1277, 0.7978846
  %v1406 = vmul.f32 %v1278, 0.7978846
  %v1407 = vmul.f32 %v1279, 0.7978846
  %v1408 = vmul.f32 %v1280, 0.7978846
  %v1409 = vmul.f32 %v1281, 0.7978846
  %v1410 = vmul.f32 %v1282, 0.7978846
  %v1411 = vmul.f32 %v1283, 0.7978846
  %v1412 = vmul.f32 %v1284, 0.7978846
  %v1413 = vmul.f32 %v1285, 0.7978846
  %v1414 = vmul.f32 %v1286, 0.7978846
  %v1415 = vmul.f32 %v1287, 0.7978846
  %v1416 = vmul.f32 %v1288, 0.7978846
  %v1417 = vmul.f32 %v1289, 0.7978846
  %v1418 = vmul.f32 %v1290, 0.7978846
  %v1419 = vmul.f32 %v1291, 0.7978846
  %v1420 = vmul.f32 %v1292, 0.7978846
  %v1421 = vmul.f32 %v1293, 0.7978846
  %v1422 = vmul.f32 %v1294, 0.7978846
  %v1423 = vmul.f32 %v1295, 0.7978846
  %v1424 = vmul.f32 %v1296, 0.7978846
  %v1425 = vmul.f32 %v1297, 0.7978846
  %v1426 = vmul.f32 %v1298, 0.7978846
  %v1427 = vmul.f32 %v1299, 0.7978846
  %v1428 = vmul.f32 %v1300, 0.7978846
  %v1429 = vmul.f32 %v1301, 0.7978846
  %v1430 = vmul.f32 %v1302, 0.7978846
  %v1431 = vmul.f32 %v1303, 0.7978846
  %v1432 = vmul.f32 %v1304, 0.7978846
  %v1433 = vmul.f32 %v1305, 0.7978846
  %v1434 = vmul.f32 %v1306, 0.7978846
  %v1435 = vmul.f32 %v1307, 0.7978846
  %v1436 = vmul.f32 %v1308, 0.7978846
  %v1437 = vmul.f32 %v1309, 0.7978846
  %v1438 = vmul.f32 %v1310, 0.7978846
  %v1439 = vmul.f32 %v1311, 0.7978846
  %v1440 = vmul.f32 %v1312, 0.7978846
  %v1441 = vmul.f32 %v1313, 0.7978846
  %v1442 = vmul.f32 %v1314, 0.7978846
  %v1443 = vmul.f32 %v1315, 0.7978846
  %v1444 = vmul.f32 %v1316, 0.7978846
  %v1445 = vmul.f32 %v1317, 0.7978846
  %v1446 = vmul.f32 %v1318, 0.7978846
  %v1447 = vmul.f32 %v1319, 0.7978846
  %v1448 = vmul.f32 %v1320, 0.7978846
  %v1449 = vmul.f32 %v1321, 0.7978846
  %v1450 = vmul.f32 %v1322, 0.7978846
  %v1451 = vmul.f32 %v1323, 0.7978846
  %v1452 = vmul.f32 %v1324, 0.7978846
  %v1453 = vmul.f32 %v1325, 0.7978846
  %v1454 = vmul.f32 %v1326, 0.7978846
  %v1455 = vmul.f32 %v1327, 0.7978846
  %v1456 = vmul.f32 %v1328, 0.7978846
  %v1457 = vmul.f32 %v1329, 0.7978846
  %v1458 = vmul.f32 %v1330, 0.7978846
  %v1459 = vmul.f32 %v1331, 0.7978846
  %v1460 = vmul.f32 %v1332, 0.7978846
  %v1461 = vmul.f32 %v1333, 0.7978846
  %v1462 = vmul.f32 %v1334, 0.7978846
  %v1463 = vmul.f32 %v1335, 0.7978846
  %v1464 = vmul.f32 %v1336, 0.7978846
  %v1465 = vmul.f32 %v1337, 0.7978846
  %v1466 = vmul.f32 %v1338, 0.7978846
  %v1467 = vmul.f32 %v1339, 0.7978846
  %v1468 = vmul.f32 %v1340, 0.7978846
  %v1469 = vmul.f32 %v1341, 0.7978846
  %v1470 = vmul.f32 %v1342, 0.7978846
  %v1471 = vmul.f32 %v1343, 0.7978846
  %v1472 = vmul.f32 %v1344, 0.7978846
  %v1473 = vmul.f32 %v1345, 0.7978846
  %v1474 = vmul.f32 %v1346, 0.7978846
  %v1475 = vmul.f32 %v1347, 0.7978846
  %v1476 = vmul.f32 %v1348, 0.7978846
  %v1477 = vmul.f32 %v1349, 0.7978846
  %v1478 = vmul.f32 %v1350, 0.7978846
  %v1479 = vmul.f32 %v1351, 0.7978846
  %v1480 = vmul.f32 %v1352, 0.7978846
  %v1481 = vmul.f32 %v1353, 0.7978846
  %v1482 = vmul.f32 %v1354, 0.7978846
  %v1483 = vmul.f32 %v1355, 0.7978846
  %v1484 = vmul.f32 %v1356, 0.7978846
  %v1485 = vmul.f32 %v1357, 0.7978846
  %v1486 = vmul.f32 %v1358, 0.7978846
  %v1487 = vmul.f32 %v1359, 0.7978846
  %v1488 = vmul.f32 %v1360, 0.7978846
  %v1489 = vmul.f32 %v1361, 0.7978846
  %v1490 = vmul.f32 %v1362, 0.7978846
  %v1491 = vmul.f32 %v1363, 0.7978846
  %v1492 = vmul.f32 %v1364, 0.7978846
  %v1493 = vmul.f32 %v1365, 0.7978846
  %v1494 = vmul.f32 %v1366, 0.7978846
  %v1495 = vmul.f32 %v1367, 0.7978846
  %v1496 = vmul.f32 %v1368, 0.7978846
  %v1497 = vmul.f32 %v1369, 0.7978846
  %v1498 = vmul.f32 %v1370, 0.7978846
  %v1499 = vmul.f32 %v1371, 0.7978846
  %v1500 = vmul.f32 %v1372, 0.7978846
  %v1501 = vmul.f32 %v1373, 0.7978846
  %v1502 = vmul.f32 %v1374, 0.7978846
  %v1503 = vmul.f32 %v1375, 0.7978846
  %v1504 = vmul.f32 %v1376, 0.7978846
  %v1505 = vmul.f32 %v1377, 0.7978846
  %v1506 = vmul.f32 %v1378, 0.7978846
  %v1507 = vmul.f32 %v1379, 0.7978846
  %v1508 = vmul.f32 %v1380, 0.7978846
  %v1509 = vmul.f32 %v1381, 0.7978846
  %v1510 = vmul.f32 %v1382, 0.7978846
  %v1511 = vtanh.pop %v1383
  %v1512 = vtanh.pop %v1384
  %v1513 = vtanh.pop %v1385
  %v1514 = vtanh.pop %v1386
  %v1515 = vtanh.pop %v1387
  %v1516 = vtanh.pop %v1388
  %v1517 = vtanh.pop %v1389
  %v1518 = vtanh.pop %v1390
  %v1519 = vtanh.pop %v1391
  %v1520 = vtanh.pop %v1392
  %v1521 = vtanh.pop %v1393
  %v1522 = vtanh.pop %v1394
  %v1523 = vtanh.pop %v1395
  %v1524 = vtanh.pop %v1396
  %v1525 = vtanh.pop %v1397
  %v1526 = vtanh.pop %v1398
  %v1527 = vtanh.pop %v1399
  %v1528 = vtanh.pop %v1400
  %v1529 = vtanh.pop %v1401
  %v1530 = vtanh.pop %v1402
  %v1531 = vtanh.pop %v1403
  %v1532 = vtanh.pop %v1404
  %v1533 = vtanh.pop %v1405
  %v1534 = vtanh.pop %v1406
  %v1535 = vtanh.pop %v1407
  %v1536 = vtanh.pop %v1408
  %v1537 = vtanh.pop %v1409
  %v1538 = vtanh.pop %v1410
  %v1539 = vtanh.pop %v1411
  %v1540 = vtanh.pop %v1412
  %v1541 = vtanh.pop %v1413
  %v1542 = vtanh.pop %v1414
  %v1543 = vtanh.pop %v1415
  %v1544 = vtanh.pop %v1416
  %v1545 = vtanh.pop %v1417
  %v1546 = vtanh.pop %v1418
  %v1547 = vtanh.pop %v1419
  %v1548 = vtanh.pop %v1420
  %v1549 = vtanh.pop %v1421
  %v1550 = vtanh.pop %v1422
  %v1551 = vtanh.pop %v1423
  %v1552 = vtanh.pop %v1424
  %v1553 = vtanh.pop %v1425
  %v1554 = vtanh.pop %v1426
  %v1555 = vtanh.pop %v1427
  %v1556 = vtanh.pop %v1428
  %v1557 = vtanh.pop %v1429
  %v1558 = vtanh.pop %v1430
  %v1559 = vtanh.pop %v1431
  %v1560 = vtanh.pop %v1432
  %v1561 = vtanh.pop %v1433
  %v1562 = vtanh.pop %v1434
  %v1563 = vtanh.pop %v1435
  %v1564 = vtanh.pop %v1436
  %v1565 = vtanh.pop %v1437
  %v1566 = vtanh.pop %v1438
  %v1567 = vtanh.pop %v1439
  %v1568 = vtanh.pop %v1440
  %v1569 = vtanh.pop %v1441
  %v1570 = vtanh.pop %v1442
  %v1571 = vtanh.pop %v1443
  %v1572 = vtanh.pop %v1444
  %v1573 = vtanh.pop %v1445
  %v1574 = vtanh.pop %v1446
  %v1575 = vtanh.pop %v1447
  %v1576 = vtanh.pop %v1448
  %v1577 = vtanh.pop %v1449
  %v1578 = vtanh.pop %v1450
  %v1579 = vtanh.pop %v1451
  %v1580 = vtanh.pop %v1452
  %v1581 = vtanh.pop %v1453
  %v1582 = vtanh.pop %v1454
  %v1583 = vtanh.pop %v1455
  %v1584 = vtanh.pop %v1456
  %v1585 = vtanh.pop %v1457
  %v1586 = vtanh.pop %v1458
  %v1587 = vtanh.pop %v1459
  %v1588 = vtanh.pop %v1460
  %v1589 = vtanh.pop %v1461
  %v1590 = vtanh.pop %v1462
  %v1591 = vtanh.pop %v1463
  %v1592 = vtanh.pop %v1464
  %v1593 = vtanh.pop %v1465
  %v1594 = vtanh.pop %v1466
  %v1595 = vtanh.pop %v1467
  %v1596 = vtanh.pop %v1468
  %v1597 = vtanh.pop %v1469
  %v1598 = vtanh.pop %v1470
  %v1599 = vtanh.pop %v1471
  %v1600 = vtanh.pop %v1472
  %v1601 = vtanh.pop %v1473
  %v1602 = vtanh.pop %v1474
  %v1603 = vtanh.pop %v1475
  %v1604 = vtanh.pop %v1476
  %v1605 = vtanh.pop %v1477
  %v1606 = vtanh.pop %v1478
  %v1607 = vtanh.pop %v1479
  %v1608 = vtanh.pop %v1480
  %v1609 = vtanh.pop %v1481
  %v1610 = vtanh.pop %v1482
  %v1611 = vtanh.pop %v1483
  %v1612 = vtanh.pop %v1484
  %v1613 = vtanh.pop %v1485
  %v1614 = vtanh.pop %v1486
  %v1615 = vtanh.pop %v1487
  %v1616 = vtanh.pop %v1488
  %v1617 = vtanh.pop %v1489
  %v1618 = vtanh.pop %v1490
  %v1619 = vtanh.pop %v1491
  %v1620 = vtanh.pop %v1492
  %v1621 = vtanh.pop %v1493
  %v1622 = vtanh.pop %v1494
  %v1623 = vtanh.pop %v1495
  %v1624 = vtanh.pop %v1496
  %v1625 = vtanh.pop %v1497
  %v1626 = vtanh.pop %v1498
  %v1627 = vtanh.pop %v1499
  %v1628 = vtanh.pop %v1500
  %v1629 = vtanh.pop %v1501
  %v1630 = vtanh.pop %v1502
  %v1631 = vtanh.pop %v1503
  %v1632 = vtanh.pop %v1504
  %v1633 = vtanh.pop %v1505
  %v1634 = vtanh.pop %v1506
  %v1635 = vtanh.pop %v1507
  %v1636 = vtanh.pop %v1508
  %v1637 = vtanh.pop %v1509
  %v1638 = vtanh.pop %v1510
  %v1639 = vadd.f32 %v1511, 1.0
  %v1640 = vadd.f32 %v1512, 1.0
  %v1641 = vadd.f32 %v1513, 1.0
  %v1642 = vadd.f32 %v1514, 1.0
  %v1643 = vadd.f32 %v1515, 1.0
  %v1644 = vadd.f32 %v1516, 1.0
  %v1645 = vadd.f32 %v1517, 1.0
  %v1646 = vadd.f32 %v1518, 1.0
  %v1647 = vadd.f32 %v1519, 1.0
  %v1648 = vadd.f32 %v1520, 1.0
  %v1649 = vadd.f32 %v1521, 1.0
  %v1650 = vadd.f32 %v1522, 1.0
  %v1651 = vadd.f32 %v1523, 1.0
  %v1652 = vadd.f32 %v1524, 1.0
  %v1653 = vadd.f32 %v1525, 1.0
  %v1654 = vadd.f32 %v1526, 1.0
  %v1655 = vadd.f32 %v1527, 1.0
  %v1656 = vadd.f32 %v1528, 1.0
  %v1657 = vadd.f32 %v1529, 1.0
  %v1658 = vadd.f32 %v1530, 1.0
  %v1659 = vadd.f32 %v1531, 1.0
  %v1660 = vadd.f32 %v1532, 1.0
  %v1661 = vadd.f32 %v1533, 1.0
  %v1662 = vadd.f32 %v1534, 1.0
  %v1663 = vadd.f32 %v1535, 1.0
  %v1664 = vadd.f32 %v1536, 1.0
  %v1665 = vadd.f32 %v1537, 1.0
  %v1666 = vadd.f32 %v1538, 1.0
  %v1667 = vadd.f32 %v1539, 1.0
  %v1668 = vadd.f32 %v1540, 1.0
  %v1669 = vadd.f32 %v1541, 1.0
  %v1670 = vadd.f32 %v1542, 1.0
  %v1671 = vadd.f32 %v1543, 1.0
  %v1672 = vadd.f32 %v1544, 1.0
  %v1673 = vadd.f32 %v1545, 1.0
  %v1674 = vadd.f32 %v1546, 1.0
  %v1675 = vadd.f32 %v1547, 1.0
  %v1676 = vadd.f32 %v1548, 1.0
  %v1677 = vadd.f32 %v1549, 1.0
  %v1678 = vadd.f32 %v1550, 1.0
  %v1679 = vadd.f32 %v1551, 1.0
  %v1680 = vadd.f32 %v1552, 1.0
  %v1681 = vadd.f32 %v1553, 1.0
  %v1682 = vadd.f32 %v1554, 1.0
  %v1683 = vadd.f32 %v1555, 1.0
  %v1684 = vadd.f32 %v1556, 1.0
  %v1685 = vadd.f32 %v1557, 1.0
  %v1686 = vadd.f32 %v1558, 1.0
  %v1687 = vadd.f32 %v1559, 1.0
  %v1688 = vadd.f32 %v1560, 1.0
  %v1689 = vadd.f32 %v1561, 1.0
  %v1690 = vadd.f32 %v1562, 1.0
  %v1691 = vadd.f32 %v1563, 1.0
  %v1692 = vadd.f32 %v1564, 1.0
  %v1693 = vadd.f32 %v1565, 1.0
  %v1694 = vadd.f32 %v1566, 1.0
  %v1695 = vadd.f32 %v1567, 1.0
  %v1696 = vadd.f32 %v1568, 1.0
  %v1697 = vadd.f32 %v1569, 1.0
  %v1698 = vadd.f32 %v1570, 1.0
  %v1699 = vadd.f32 %v1571, 1.0
  %v1700 = vadd.f32 %v1572, 1.0
  %v1701 = vadd.f32 %v1573, 1.0
  %v1702 = vadd.f32 %v1574, 1.0
  %v1703 = vadd.f32 %v1575, 1.0
  %v1704 = vadd.f32 %v1576, 1.0
  %v1705 = vadd.f32 %v1577, 1.0
  %v1706 = vadd.f32 %v1578, 1.0
  %v1707 = vadd.f32 %v1579, 1.0
  %v1708 = vadd.f32 %v1580, 1.0
  %v1709 = vadd.f32 %v1581, 1.0
  %v1710 = vadd.f32 %v1582, 1.0
  %v1711 = vadd.f32 %v1583, 1.0
  %v1712 = vadd.f32 %v1584, 1.0
  %v1713 = vadd.f32 %v1585, 1.0
  %v1714 = vadd.f32 %v1586, 1.0
  %v1715 = vadd.f32 %v1587, 1.0
  %v1716 = vadd.f32 %v1588, 1.0
  %v1717 = vadd.f32 %v1589, 1.0
  %v1718 = vadd.f32 %v1590, 1.0
  %v1719 = vadd.f32 %v1591, 1.0
  %v1720 = vadd.f32 %v1592, 1.0
  %v1721 = vadd.f32 %v1593, 1.0
  %v1722 = vadd.f32 %v1594, 1.0
  %v1723 = vadd.f32 %v1595, 1.0
  %v1724 = vadd.f32 %v1596, 1.0
  %v1725 = vadd.f32 %v1597, 1.0
  %v1726 = vadd.f32 %v1598, 1.0
  %v1727 = vadd.f32 %v1599, 1.0
  %v1728 = vadd.f32 %v1600, 1.0
  %v1729 = vadd.f32 %v1601, 1.0
  %v1730 = vadd.f32 %v1602, 1.0
  %v1731 = vadd.f32 %v1603, 1.0
  %v1732 = vadd.f32 %v1604, 1.0
  %v1733 = vadd.f32 %v1605, 1.0
  %v1734 = vadd.f32 %v1606, 1.0
  %v1735 = vadd.f32 %v1607, 1.0
  %v1736 = vadd.f32 %v1608, 1.0
  %v1737 = vadd.f32 %v1609, 1.0
  %v1738 = vadd.f32 %v1610, 1.0
  %v1739 = vadd.f32 %v1611, 1.0
  %v1740 = vadd.f32 %v1612, 1.0
  %v1741 = vadd.f32 %v1613, 1.0
  %v1742 = vadd.f32 %v1614, 1.0
  %v1743 = vadd.f32 %v1615, 1.0
  %v1744 = vadd.f32 %v1616, 1.0
  %v1745 = vadd.f32 %v1617, 1.0
  %v1746 = vadd.f32 %v1618, 1.0
  %v1747 = vadd.f32 %v1619, 1.0
  %v1748 = vadd.f32 %v1620, 1.0
  %v1749 = vadd.f32 %v1621, 1.0
  %v1750 = vadd.f32 %v1622, 1.0
  %v1751 = vadd.f32 %v1623, 1.0
  %v1752 = vadd.f32 %v1624, 1.0
  %v1753 = vadd.f32 %v1625, 1.0
  %v1754 = vadd.f32 %v1626, 1.0
  %v1755 = vadd.f32 %v1627, 1.0
  %v1756 = vadd.f32 %v1628, 1.0
  %v1757 = vadd.f32 %v1629, 1.0
  %v1758 = vadd.f32 %v1630, 1.0
  %v1759 = vadd.f32 %v1631, 1.0
  %v1760 = vadd.f32 %v1632, 1.0
  %v1761 = vadd.f32 %v1633, 1.0
  %v1762 = vadd.f32 %v1634, 1.0
  %v1763 = vadd.f32 %v1635, 1.0
  %v1764 = vadd.f32 %v1636, 1.0
  %v1765 = vadd.f32 %v1637, 1.0
  %v1766 = vadd.f32 %v1638, 1.0
  %v1767 = vmul.f32 %v743, %v1639
  %v1768 = vmul.f32 %v744, %v1640
  %v1769 = vmul.f32 %v745, %v1641
  %v1770 = vmul.f32 %v746, %v1642
  %v1771 = vmul.f32 %v747, %v1643
  %v1772 = vmul.f32 %v748, %v1644
  %v1773 = vmul.f32 %v749, %v1645
  %v1774 = vmul.f32 %v750, %v1646
  %v1775 = vmul.f32 %v751, %v1647
  %v1776 = vmul.f32 %v752, %v1648
  %v1777 = vmul.f32 %v753, %v1649
  %v1778 = vmul.f32 %v754, %v1650
  %v1779 = vmul.f32 %v755, %v1651
  %v1780 = vmul.f32 %v756, %v1652
  %v1781 = vmul.f32 %v757, %v1653
  %v1782 = vmul.f32 %v758, %v1654
  %v1783 = vmul.f32 %v759, %v1655
  %v1784 = vmul.f32 %v760, %v1656
  %v1785 = vmul.f32 %v761, %v1657
  %v1786 = vmul.f32 %v762, %v1658
  %v1787 = vmul.f32 %v763, %v1659
  %v1788 = vmul.f32 %v764, %v1660
  %v1789 = vmul.f32 %v765, %v1661
  %v1790 = vmul.f32 %v766, %v1662
  %v1791 = vmul.f32 %v767, %v1663
  %v1792 = vmul.f32 %v768, %v1664
  %v1793 = vmul.f32 %v769, %v1665
  %v1794 = vmul.f32 %v770, %v1666
  %v1795 = vmul.f32 %v771, %v1667
  %v1796 = vmul.f32 %v772, %v1668
  %v1797 = vmul.f32 %v773, %v1669
  %v1798 = vmul.f32 %v774, %v1670
  %v1799 = vmul.f32 %v775, %v1671
  %v1800 = vmul.f32 %v776, %v1672
  %v1801 = vmul.f32 %v777, %v1673
  %v1802 = vmul.f32 %v778, %v1674
  %v1803 = vmul.f32 %v779, %v1675
  %v1804 = vmul.f32 %v780, %v1676
  %v1805 = vmul.f32 %v781, %v1677
  %v1806 = vmul.f32 %v782, %v1678
  %v1807 = vmul.f32 %v783, %v1679
  %v1808 = vmul.f32 %v784, %v1680
  %v1809 = vmul.f32 %v785, %v1681
  %v1810 = vmul.f32 %v786, %v1682
  %v1811 = vmul.f32 %v787, %v1683
  %v1812 = vmul.f32 %v788, %v1684
  %v1813 = vmul.f32 %v789, %v1685
  %v1814 = vmul.f32 %v790, %v1686
  %v1815 = vmul.f32 %v791, %v1687
  %v1816 = vmul.f32 %v792, %v1688
  %v1817 = vmul.f32 %v793, %v1689
  %v1818 = vmul.f32 %v794, %v1690
  %v1819 = vmul.f32 %v795, %v1691
  %v1820 = vmul.f32 %v796, %v1692
  %v1821 = vmul.f32 %v797, %v1693
  %v1822 = vmul.f32 %v798, %v1694
  %v1823 = vmul.f32 %v799, %v1695
  %v1824 = vmul.f32 %v800, %v1696
  %v1825 = vmul.f32 %v801, %v1697
  %v1826 = vmul.f32 %v802, %v1698
  %v1827 = vmul.f32 %v803, %v1699
  %v1828 = vmul.f32 %v804, %v1700
  %v1829 = vmul.f32 %v805, %v1701
  %v1830 = vmul.f32 %v806, %v1702
  %v1831 = vmul.f32 %v807, %v1703
  %v1832 = vmul.f32 %v808, %v1704
  %v1833 = vmul.f32 %v809, %v1705
  %v1834 = vmul.f32 %v810, %v1706
  %v1835 = vmul.f32 %v811, %v1707
  %v1836 = vmul.f32 %v812, %v1708
  %v1837 = vmul.f32 %v813, %v1709
  %v1838 = vmul.f32 %v814, %v1710
  %v1839 = vmul.f32 %v815, %v1711
  %v1840 = vmul.f32 %v816, %v1712
  %v1841 = vmul.f32 %v817, %v1713
  %v1842 = vmul.f32 %v818, %v1714
  %v1843 = vmul.f32 %v819, %v1715
  %v1844 = vmul.f32 %v820, %v1716
  %v1845 = vmul.f32 %v821, %v1717
  %v1846 = vmul.f32 %v822, %v1718
  %v1847 = vmul.f32 %v823, %v1719
  %v1848 = vmul.f32 %v824, %v1720
  %v1849 = vmul.f32 %v825, %v1721
  %v1850 = vmul.f32 %v826, %v1722
  %v1851 = vmul.f32 %v827, %v1723
  %v1852 = vmul.f32 %v828, %v1724
  %v1853 = vmul.f32 %v829, %v1725
  %v1854 = vmul.f32 %v830, %v1726
  %v1855 = vmul.f32 %v831, %v1727
  %v1856 = vmul.f32 %v832, %v1728
  %v1857 = vmul.f32 %v833, %v1729
  %v1858 = vmul.f32 %v834, %v1730
  %v1859 = vmul.f32 %v835, %v1731
  %v1860 = vmul.f32 %v836, %v1732
  %v1861 = vmul.f32 %v837, %v1733
  %v1862 = vmul.f32 %v838, %v1734
  %v1863 = vmul.f32 %v839, %v1735
  %v1864 = vmul.f32 %v840, %v1736
  %v1865 = vmul.f32 %v841, %v1737
  %v1866 = vmul.f32 %v842, %v1738
  %v1867 = vmul.f32 %v843, %v1739
  %v1868 = vmul.f32 %v844, %v1740
  %v1869 = vmul.f32 %v845, %v1741
  %v1870 = vmul.f32 %v846, %v1742
  %v1871 = vmul.f32 %v847, %v1743
  %v1872 = vmul.f32 %v848, %v1744
  %v1873 = vmul.f32 %v849, %v1745
  %v1874 = vmul.f32 %v850, %v1746
  %v1875 = vmul.f32 %v851, %v1747
  %v1876 = vmul.f32 %v852, %v1748
  %v1877 = vmul.f32 %v853, %v1749
  %v1878 = vmul.f32 %v854, %v1750
  %v1879 = vmul.f32 %v855, %v1751
  %v1880 = vmul.f32 %v856, %v1752
  %v1881 = vmul.f32 %v857, %v1753
  %v1882 = vmul.f32 %v858, %v1754
  %v1883 = vmul.f32 %v859, %v1755
  %v1884 = vmul.f32 %v860, %v1756
  %v1885 = vmul.f32 %v861, %v1757
  %v1886 = vmul.f32 %v862, %v1758
  %v1887 = vmul.f32 %v863, %v1759
  %v1888 = vmul.f32 %v864, %v1760
  %v1889 = vmul.f32 %v865, %v1761
  %v1890 = vmul.f32 %v866, %v1762
  %v1891 = vmul.f32 %v867, %v1763
  %v1892 = vmul.f32 %v868, %v1764
  %v1893 = vmul.f32 %v869, %v1765
  %v1894 = vmul.f32 %v870, %v1766
  %v1895 = vpack.c.bf16 %v1771, %v1767
  %v1896 = vpack.c.bf16 %v1772, %v1768
  %v1897 = vpack.c.bf16 %v1773, %v1769
  %v1898 = vpack.c.bf16 %v1774, %v1770
  %v1899 = vpack.c.bf16 %v1779, %v1775
  %v1900 = vpack.c.bf16 %v1780, %v1776
  %v1901 = vpack.c.bf16 %v1781, %v1777
  %v1902 = vpack.c.bf16 %v1782, %v1778
  %v1903 = vpack.c.bf16 %v1787, %v1783
  %v1904 = vpack.c.bf16 %v1788, %v1784
  %v1905 = vpack.c.bf16 %v1789, %v1785
  %v1906 = vpack.c.bf16 %v1790, %v1786
  %v1907 = vpack.c.bf16 %v1795, %v1791
  %v1908 = vpack.c.bf16 %v1796, %v1792
  %v1909 = vpack.c.bf16 %v1797, %v1793
  %v1910 = vpack.c.bf16 %v1798, %v1794
  %v1911 = vpack.c.bf16 %v1803, %v1799
  %v1912 = vpack.c.bf16 %v1804, %v1800
  %v1913 = vpack.c.bf16 %v1805, %v1801
  %v1914 = vpack.c.bf16 %v1806, %v1802
  %v1915 = vpack.c.bf16 %v1811, %v1807
  %v1916 = vpack.c.bf16 %v1812, %v1808
  %v1917 = vpack.c.bf16 %v1813, %v1809
  %v1918 = vpack.c.bf16 %v1814, %v1810
  %v1919 = vpack.c.bf16 %v1819, %v1815
  %v1920 = vpack.c.bf16 %v1820, %v1816
  %v1921 = vpack.c.bf16 %v1821, %v1817
  %v1922 = vpack.c.bf16 %v1822, %v1818
  %v1923 = vpack.c.bf16 %v1827, %v1823
  %v1924 = vpack.c.bf16 %v1828, %v1824
  %v1925 = vpack.c.bf16 %v1829, %v1825
  %v1926 = vpack.c.bf16 %v1830, %v1826
  %v1927 = vpack.c.bf16 %v1835, %v1831
  %v1928 = vpack.c.bf16 %v1836, %v1832
  %v1929 = vpack.c.bf16 %v1837, %v1833
  %v1930 = vpack.c.bf16 %v1838, %v1834
  %v1931 = vpack.c.bf16 %v1843, %v1839
  %v1932 = vpack.c.bf16 %v1844, %v1840
  %v1933 = vpack.c.bf16 %v1845, %v1841
  %v1934 = vpack.c.bf16 %v1846, %v1842
  %v1935 = vpack.c.bf16 %v1851, %v1847
  %v1936 = vpack.c.bf16 %v1852, %v1848
  %v1937 = vpack.c.bf16 %v1853, %v1849
  %v1938 = vpack.c.bf16 %v1854, %v1850
  %v1939 = vpack.c.bf16 %v1859, %v1855
  %v1940 = vpack.c.bf16 %v1860, %v1856
  %v1941 = vpack.c.bf16 %v1861, %v1857
  %v1942 = vpack.c.bf16 %v1862, %v1858
  %v1943 = vpack.c.bf16 %v1867, %v1863
  %v1944 = vpack.c.bf16 %v1868, %v1864
  %v1945 = vpack.c.bf16 %v1869, %v1865
  %v1946 = vpack.c.bf16 %v1870, %v1866
  %v1947 = vpack.c.bf16 %v1875, %v1871
  %v1948 = vpack.c.bf16 %v1876, %v1872
  %v1949 = vpack.c.bf16 %v1877, %v1873
  %v1950 = vpack.c.bf16 %v1878, %v1874
  %v1951 = vpack.c.bf16 %v1883, %v1879
  %v1952 = vpack.c.bf16 %v1884, %v1880
  %v1953 = vpack.c.bf16 %v1885, %v1881
  %v1954 = vpack.c.bf16 %v1886, %v1882
  %v1955 = vpack.c.bf16 %v1891, %v1887
  %v1956 = vpack.c.bf16 %v1892, %v1888
  %v1957 = vpack.c.bf16 %v1893, %v1889
  %v1958 = vpack.c.bf16 %v1894, %v1890
  %v2023 = vunpack.c.l.b16 %v1895
  %v2024 = vunpack.c.l.b16 %v1896
  %v2025 = vunpack.c.l.b16 %v1897
  %v2026 = vunpack.c.l.b16 %v1898
  %v2027 = vunpack.c.h.b16 %v1895
  %v2028 = vunpack.c.h.b16 %v1896
  %v2029 = vunpack.c.h.b16 %v1897
  %v2030 = vunpack.c.h.b16 %v1898
  %v2031 = vunpack.c.l.b16 %v1899
  %v2032 = vunpack.c.l.b16 %v1900
  %v2033 = vunpack.c.l.b16 %v1901
  %v2034 = vunpack.c.l.b16 %v1902
  %v2035 = vunpack.c.h.b16 %v1899
  %v2036 = vunpack.c.h.b16 %v1900
  %v2037 = vunpack.c.h.b16 %v1901
  %v2038 = vunpack.c.h.b16 %v1902
  %v2039 = vunpack.c.l.b16 %v1903
  %v2040 = vunpack.c.l.b16 %v1904
  %v2041 = vunpack.c.l.b16 %v1905
  %v2042 = vunpack.c.l.b16 %v1906
  %v2043 = vunpack.c.h.b16 %v1903
  %v2044 = vunpack.c.h.b16 %v1904
  %v2045 = vunpack.c.h.b16 %v1905
  %v2046 = vunpack.c.h.b16 %v1906
  %v2047 = vunpack.c.l.b16 %v1907
  %v2048 = vunpack.c.l.b16 %v1908
  %v2049 = vunpack.c.l.b16 %v1909
  %v2050 = vunpack.c.l.b16 %v1910
  %v2051 = vunpack.c.h.b16 %v1907
  %v2052 = vunpack.c.h.b16 %v1908
  %v2053 = vunpack.c.h.b16 %v1909
  %v2054 = vunpack.c.h.b16 %v1910
  %v2055 = vunpack.c.l.b16 %v1911
  %v2056 = vunpack.c.l.b16 %v1912
  %v2057 = vunpack.c.l.b16 %v1913
  %v2058 = vunpack.c.l.b16 %v1914
  %v2059 = vunpack.c.h.b16 %v1911
  %v2060 = vunpack.c.h.b16 %v1912
  %v2061 = vunpack.c.h.b16 %v1913
  %v2062 = vunpack.c.h.b16 %v1914
  %v2063 = vunpack.c.l.b16 %v1915
  %v2064 = vunpack.c.l.b16 %v1916
  %v2065 = vunpack.c.l.b16 %v1917
  %v2066 = vunpack.c.l.b16 %v1918
  %v2067 = vunpack.c.h.b16 %v1915
  %v2068 = vunpack.c.h.b16 %v1916
  %v2069 = vunpack.c.h.b16 %v1917
  %v2070 = vunpack.c.h.b16 %v1918
  %v2071 = vunpack.c.l.b16 %v1919
  %v2072 = vunpack.c.l.b16 %v1920
  %v2073 = vunpack.c.l.b16 %v1921
  %v2074 = vunpack.c.l.b16 %v1922
  %v2075 = vunpack.c.h.b16 %v1919
  %v2076 = vunpack.c.h.b16 %v1920
  %v2077 = vunpack.c.h.b16 %v1921
  %v2078 = vunpack.c.h.b16 %v1922
  %v2079 = vunpack.c.l.b16 %v1923
  %v2080 = vunpack.c.l.b16 %v1924
  %v2081 = vunpack.c.l.b16 %v1925
  %v2082 = vunpack.c.l.b16 %v1926
  %v2083 = vunpack.c.h.b16 %v1923
  %v2084 = vunpack.c.h.b16 %v1924
  %v2085 = vunpack.c.h.b16 %v1925
  %v2086 = vunpack.c.h.b16 %v1926
  %v2087 = vunpack.c.l.b16 %v1927
  %v2088 = vunpack.c.l.b16 %v1928
  %v2089 = vunpack.c.l.b16 %v1929
  %v2090 = vunpack.c.l.b16 %v1930
  %v2091 = vunpack.c.h.b16 %v1927
  %v2092 = vunpack.c.h.b16 %v1928
  %v2093 = vunpack.c.h.b16 %v1929
  %v2094 = vunpack.c.h.b16 %v1930
  %v2095 = vunpack.c.l.b16 %v1931
  %v2096 = vunpack.c.l.b16 %v1932
  %v2097 = vunpack.c.l.b16 %v1933
  %v2098 = vunpack.c.l.b16 %v1934
  %v2099 = vunpack.c.h.b16 %v1931
  %v2100 = vunpack.c.h.b16 %v1932
  %v2101 = vunpack.c.h.b16 %v1933
  %v2102 = vunpack.c.h.b16 %v1934
  %v2103 = vunpack.c.l.b16 %v1935
  %v2104 = vunpack.c.l.b16 %v1936
  %v2105 = vunpack.c.l.b16 %v1937
  %v2106 = vunpack.c.l.b16 %v1938
  %v2107 = vunpack.c.h.b16 %v1935
  %v2108 = vunpack.c.h.b16 %v1936
  %v2109 = vunpack.c.h.b16 %v1937
  %v2110 = vunpack.c.h.b16 %v1938
  %v2111 = vunpack.c.l.b16 %v1939
  %v2112 = vunpack.c.l.b16 %v1940
  %v2113 = vunpack.c.l.b16 %v1941
  %v2114 = vunpack.c.l.b16 %v1942
  %v2115 = vunpack.c.h.b16 %v1939
  %v2116 = vunpack.c.h.b16 %v1940
  %v2117 = vunpack.c.h.b16 %v1941
  %v2118 = vunpack.c.h.b16 %v1942
  %v2119 = vunpack.c.l.b16 %v1943
  %v2120 = vunpack.c.l.b16 %v1944
  %v2121 = vunpack.c.l.b16 %v1945
  %v2122 = vunpack.c.l.b16 %v1946
  %v2123 = vunpack.c.h.b16 %v1943
  %v2124 = vunpack.c.h.b16 %v1944
  %v2125 = vunpack.c.h.b16 %v1945
  %v2126 = vunpack.c.h.b16 %v1946
  %v2127 = vunpack.c.l.b16 %v1947
  %v2128 = vunpack.c.l.b16 %v1948
  %v2129 = vunpack.c.l.b16 %v1949
  %v2130 = vunpack.c.l.b16 %v1950
  %v2131 = vunpack.c.h.b16 %v1947
  %v2132 = vunpack.c.h.b16 %v1948
  %v2133 = vunpack.c.h.b16 %v1949
  %v2134 = vunpack.c.h.b16 %v1950
  %v2135 = vunpack.c.l.b16 %v1951
  %v2136 = vunpack.c.l.b16 %v1952
  %v2137 = vunpack.c.l.b16 %v1953
  %v2138 = vunpack.c.l.b16 %v1954
  %v2139 = vunpack.c.h.b16 %v1951
  %v2140 = vunpack.c.h.b16 %v1952
  %v2141 = vunpack.c.h.b16 %v1953
  %v2142 = vunpack.c.h.b16 %v1954
  %v2143 = vunpack.c.l.b16 %v1955
  %v2144 = vunpack.c.l.b16 %v1956
  %v2145 = vunpack.c.l.b16 %v1957
  %v2146 = vunpack.c.l.b16 %v1958
  %v2147 = vunpack.c.h.b16 %v1955
  %v2148 = vunpack.c.h.b16 %v1956
  %v2149 = vunpack.c.h.b16 %v1957
  %v2150 = vunpack.c.h.b16 %v1958
  %v2151 = vpack.c.b16 %v2024, %v2023
  %v2152 = vpack.c.b16 %v2026, %v2025
  %v2153 = vpack.c.b16 %v2028, %v2027
  %v2154 = vpack.c.b16 %v2030, %v2029
  %v2155 = vpack.c.b16 %v2032, %v2031
  %v2156 = vpack.c.b16 %v2034, %v2033
  %v2157 = vpack.c.b16 %v2036, %v2035
  %v2158 = vpack.c.b16 %v2038, %v2037
  %v2159 = vpack.c.b16 %v2040, %v2039
  %v2160 = vpack.c.b16 %v2042, %v2041
  %v2161 = vpack.c.b16 %v2044, %v2043
  %v2162 = vpack.c.b16 %v2046, %v2045
  %v2163 = vpack.c.b16 %v2048, %v2047
  %v2164 = vpack.c.b16 %v2050, %v2049
  %v2165 = vpack.c.b16 %v2052, %v2051
  %v2166 = vpack.c.b16 %v2054, %v2053
  %v2167 = vpack.c.b16 %v2056, %v2055
  %v2168 = vpack.c.b16 %v2058, %v2057
  %v2169 = vpack.c.b16 %v2060, %v2059
  %v2170 = vpack.c.b16 %v2062, %v2061
  %v2171 = vpack.c.b16 %v2064, %v2063
  %v2172 = vpack.c.b16 %v2066, %v2065
  %v2173 = vpack.c.b16 %v2068, %v2067
  %v2174 = vpack.c.b16 %v2070, %v2069
  %v2175 = vpack.c.b16 %v2072, %v2071
  %v2176 = vpack.c.b16 %v2074, %v2073
  %v2177 = vpack.c.b16 %v2076, %v2075
  %v2178 = vpack.c.b16 %v2078, %v2077
  %v2179 = vpack.c.b16 %v2080, %v2079
  %v2180 = vpack.c.b16 %v2082, %v2081
  %v2181 = vpack.c.b16 %v2084, %v2083
  %v2182 = vpack.c.b16 %v2086, %v2085
  %v2183 = vpack.c.b16 %v2088, %v2087
  %v2184 = vpack.c.b16 %v2090, %v2089
  %v2185 = vpack.c.b16 %v2092, %v2091
  %v2186 = vpack.c.b16 %v2094, %v2093
  %v2187 = vpack.c.b16 %v2096, %v2095
  %v2188 = vpack.c.b16 %v2098, %v2097
  %v2189 = vpack.c.b16 %v2100, %v2099
  %v2190 = vpack.c.b16 %v2102, %v2101
  %v2191 = vpack.c.b16 %v2104, %v2103
  %v2192 = vpack.c.b16 %v2106, %v2105
  %v2193 = vpack.c.b16 %v2108, %v2107
  %v2194 = vpack.c.b16 %v2110, %v2109
  %v2195 = vpack.c.b16 %v2112, %v2111
  %v2196 = vpack.c.b16 %v2114, %v2113
  %v2197 = vpack.c.b16 %v2116, %v2115
  %v2198 = vpack.c.b16 %v2118, %v2117
  %v2199 = vpack.c.b16 %v2120, %v2119
  %v2200 = vpack.c.b16 %v2122, %v2121
  %v2201 = vpack.c.b16 %v2124, %v2123
  %v2202 = vpack.c.b16 %v2126, %v2125
  %v2203 = vpack.c.b16 %v2128, %v2127
  %v2204 = vpack.c.b16 %v2130, %v2129
  %v2205 = vpack.c.b16 %v2132, %v2131
  %v2206 = vpack.c.b16 %v2134, %v2133
  %v2207 = vpack.c.b16 %v2136, %v2135
  %v2208 = vpack.c.b16 %v2138, %v2137
  %v2209 = vpack.c.b16 %v2140, %v2139
  %v2210 = vpack.c.b16 %v2142, %v2141
  %v2211 = vpack.c.b16 %v2144, %v2143
  %v2212 = vpack.c.b16 %v2146, %v2145
  %v2213 = vpack.c.b16 %v2148, %v2147
  %v2214 = vpack.c.b16 %v2150, %v2149
  %2279 = vst [vmem:[%s3] sm:$0xff] %v2151
  %2280 = vst [vmem:[%s3 + $0x8] sm:$0xff] %v2152
  %2281 = vst [vmem:[%s3 + $0x10] sm:$0xff] %v2153
  %2282 = vst [vmem:[%s3 + $0x18] sm:$0xff] %v2154
  %2283 = vst [vmem:[%s3 + $0x20] sm:$0xff] %v2155
  %2284 = vst [vmem:[%s3 + $0x28] sm:$0xff] %v2156
  %2285 = vst [vmem:[%s3 + $0x30] sm:$0xff] %v2157
  %2286 = vst [vmem:[%s3 + $0x38] sm:$0xff] %v2158
  %2287 = vst [vmem:[%s3 + $0x40] sm:$0xff] %v2159
  %2288 = vst [vmem:[%s3 + $0x48] sm:$0xff] %v2160
  %2289 = vst [vmem:[%s3 + $0x50] sm:$0xff] %v2161
  %2290 = vst [vmem:[%s3 + $0x58] sm:$0xff] %v2162
  %2291 = vst [vmem:[%s3 + $0x60] sm:$0xff] %v2163
  %2292 = vst [vmem:[%s3 + $0x68] sm:$0xff] %v2164
  %2293 = vst [vmem:[%s3 + $0x70] sm:$0xff] %v2165
  %2294 = vst [vmem:[%s3 + $0x78] sm:$0xff] %v2166
  %2295 = vst [vmem:[%s3 + $0x80] sm:$0xff] %v2167
  %2296 = vst [vmem:[%s3 + $0x88] sm:$0xff] %v2168
  %2297 = vst [vmem:[%s3 + $0x90] sm:$0xff] %v2169
  %2298 = vst [vmem:[%s3 + $0x98] sm:$0xff] %v2170
  %2299 = vst [vmem:[%s3 + $0xa0] sm:$0xff] %v2171
  %2300 = vst [vmem:[%s3 + $0xa8] sm:$0xff] %v2172
  %2301 = vst [vmem:[%s3 + $0xb0] sm:$0xff] %v2173
  %2302 = vst [vmem:[%s3 + $0xb8] sm:$0xff] %v2174
  %2303 = vst [vmem:[%s3 + $0xc0] sm:$0xff] %v2175
  %2304 = vst [vmem:[%s3 + $0xc8] sm:$0xff] %v2176
  %2305 = vst [vmem:[%s3 + $0xd0] sm:$0xff] %v2177
  %2306 = vst [vmem:[%s3 + $0xd8] sm:$0xff] %v2178
  %2307 = vst [vmem:[%s3 + $0xe0] sm:$0xff] %v2179
  %2308 = vst [vmem:[%s3 + $0xe8] sm:$0xff] %v2180
  %2309 = vst [vmem:[%s3 + $0xf0] sm:$0xff] %v2181
  %2310 = vst [vmem:[%s3 + $0xf8] sm:$0xff] %v2182
  %2311 = vst [vmem:[%s3 + $0x100] sm:$0xff] %v2183
  %2312 = vst [vmem:[%s3 + $0x108] sm:$0xff] %v2184
  %2313 = vst [vmem:[%s3 + $0x110] sm:$0xff] %v2185
  %2314 = vst [vmem:[%s3 + $0x118] sm:$0xff] %v2186
  %2315 = vst [vmem:[%s3 + $0x120] sm:$0xff] %v2187
  %2316 = vst [vmem:[%s3 + $0x128] sm:$0xff] %v2188
  %2317 = vst [vmem:[%s3 + $0x130] sm:$0xff] %v2189
  %2318 = vst [vmem:[%s3 + $0x138] sm:$0xff] %v2190
  %2319 = vst [vmem:[%s3 + $0x140] sm:$0xff] %v2191
  %2320 = vst [vmem:[%s3 + $0x148] sm:$0xff] %v2192
  %2321 = vst [vmem:[%s3 + $0x150] sm:$0xff] %v2193
  %2322 = vst [vmem:[%s3 + $0x158] sm:$0xff] %v2194
  %2323 = vst [vmem:[%s3 + $0x160] sm:$0xff] %v2195
  %2324 = vst [vmem:[%s3 + $0x168] sm:$0xff] %v2196
  %2325 = vst [vmem:[%s3 + $0x170] sm:$0xff] %v2197
  %2326 = vst [vmem:[%s3 + $0x178] sm:$0xff] %v2198
  %2327 = vst [vmem:[%s3 + $0x180] sm:$0xff] %v2199
  %2328 = vst [vmem:[%s3 + $0x188] sm:$0xff] %v2200
  %2329 = vst [vmem:[%s3 + $0x190] sm:$0xff] %v2201
  %2330 = vst [vmem:[%s3 + $0x198] sm:$0xff] %v2202
  %2331 = vst [vmem:[%s3 + $0x1a0] sm:$0xff] %v2203
  %2332 = vst [vmem:[%s3 + $0x1a8] sm:$0xff] %v2204
  %2333 = vst [vmem:[%s3 + $0x1b0] sm:$0xff] %v2205
  %2334 = vst [vmem:[%s3 + $0x1b8] sm:$0xff] %v2206
  %2335 = vst [vmem:[%s3 + $0x1c0] sm:$0xff] %v2207
  %2336 = vst [vmem:[%s3 + $0x1c8] sm:$0xff] %v2208
  %2337 = vst [vmem:[%s3 + $0x1d0] sm:$0xff] %v2209
  %2338 = vst [vmem:[%s3 + $0x1d8] sm:$0xff] %v2210
  %2339 = vst [vmem:[%s3 + $0x1e0] sm:$0xff] %v2211
  %2340 = vst [vmem:[%s3 + $0x1e8] sm:$0xff] %v2212
  %2341 = vst [vmem:[%s3 + $0x1f0] sm:$0xff] %v2213
  %2342 = vst [vmem:[%s3 + $0x1f8] sm:$0xff] %v2214
  // Predicated region
  $region14: #{bert_back_forward.11} parent=0 // pred_check
    _
  $region15: #{bert_back_forward.11} parent=0 // pred_check_branch
    %2344 = sbr.rel (0) target = $region17
  $region16: #{bert_back_forward.11} parent=0 // pred_region
    _
  $region17: #{bert_back_forward.11} parent=0 // pred_fallthru
    _
  // Predicated region
  $region18: #{bert_back_forward.11} parent=0 // pred_check
    _
  $region19: #{bert_back_forward.11} parent=0 // pred_check_branch
    %2346 = sbr.rel (0) target = $region21
  $region20: #{bert_back_forward.11} parent=0 // pred_region
    _
  $region21: #{bert_back_forward.11} parent=0 // pred_fallthru
    _

// kernel: bert_back_forward.12
$region0: #{bert_back_forward.12}
  #allocation0 [shape = 'u32[]', space=smem, size = 0x4, offset = 0x4, fixed_abs, tag = 'smem constant byte address 0x4 - core index']
  #allocation1 [shape = 'u32[144,128]{1,0:T(1,128)}', space=vmem, size = 0x12000, scoped, tag = 'internal scratch']
  %s0 = inlined_call_operand.vmem [shape: bf16[256,512], index: 0, kind: input, shape index: {}]
  %s1 = inlined_call_operand.vmem [shape: bf16[512,128], index: 1, kind: input, shape index: {}]
  %s2 = inlined_call_operand.vmem [shape: f32[1,128], index: 2, kind: input, shape index: {}]
  %s3 = inlined_call_operand.vmem [shape: bf16[256,128], index: 3, kind: input, shape index: {}]
  %s4 = inlined_call_operand.vmem [shape: f32[1,128], index: 4, kind: input, shape index: {}]
  %s5 = inlined_call_operand.vmem [shape: f32[1,128], index: 5, kind: input, shape index: {}]
  %s6 = inlined_call_operand.vmem [shape: bf16[256,128], index: 6, kind: output, shape index: {}]
  %s7 = sld [smem:[#allocation0]]
  $region34: #{bert_back_forward.12} parent=0
    _
  %s9 = ssub.s32 1, %s7
  %s10 = scalar_select 0, %s9, %s7
  // Predicated region
  $region2: #{bert_back_forward.12} parent=0 // pred_check
    _
  $region3: #{bert_back_forward.12} parent=0 // pred_check_branch
    %12 = sbr.rel (0) target = $region5
  $region4: #{bert_back_forward.12} parent=0 // pred_region
    _
  $region5: #{bert_back_forward.12} parent=0 // pred_fallthru
    _
  // Predicated region
  $region6: #{bert_back_forward.12} parent=0 // pred_check
    _
  $region7: #{bert_back_forward.12} parent=0 // pred_check_branch
    %14 = sbr.rel (0) target = $region9
  $region8: #{bert_back_forward.12} parent=0 // pred_region
    _
  $region9: #{bert_back_forward.12} parent=0 // pred_fallthru
    _
  // Predicated region
  $region10: #{bert_back_forward.12} parent=0 // pred_check
    _
  $region11: #{bert_back_forward.12} parent=0 // pred_check_branch
    %16 = sbr.rel (0) target = $region13
  $region12: #{bert_back_forward.12} parent=0 // pred_region
    _
  $region13: #{bert_back_forward.12} parent=0 // pred_fallthru
    _
  // Predicated region
  $region14: #{bert_back_forward.12} parent=0 // pred_check
    _
  $region15: #{bert_back_forward.12} parent=0 // pred_check_branch
    %18 = sbr.rel (0) target = $region17
  $region16: #{bert_back_forward.12} parent=0 // pred_region
    _
  $region17: #{bert_back_forward.12} parent=0 // pred_fallthru
    _
  // Predicated region
  $region18: #{bert_back_forward.12} parent=0 // pred_check
    _
  $region19: #{bert_back_forward.12} parent=0 // pred_check_branch
    %20 = sbr.rel (0) target = $region21
  $region20: #{bert_back_forward.12} parent=0 // pred_region
    _
  $region21: #{bert_back_forward.12} parent=0 // pred_fallthru
    _
  // Predicated region
  $region22: #{bert_back_forward.12} parent=0 // pred_check
    _
  $region23: #{bert_back_forward.12} parent=0 // pred_check_branch
    %22 = sbr.rel (0) target = $region25
  $region24: #{bert_back_forward.12} parent=0 // pred_region
    _
  $region25: #{bert_back_forward.12} parent=0 // pred_fallthru
    _
  %v24 = vld [vmem:[%s0] sm:$0xff]
  %v25 = vld [vmem:[%s0 + $0x8] sm:$0xff]
  %v26 = vld [vmem:[%s0 + $0x10] sm:$0xff]
  %v27 = vld [vmem:[%s0 + $0x18] sm:$0xff]
  %v28 = vld [vmem:[%s0 + $0x20] sm:$0xff]
  %v29 = vld [vmem:[%s0 + $0x28] sm:$0xff]
  %v30 = vld [vmem:[%s0 + $0x30] sm:$0xff]
  %v31 = vld [vmem:[%s0 + $0x38] sm:$0xff]
  %v32 = vld [vmem:[%s0 + $0x40] sm:$0xff]
  %v33 = vld [vmem:[%s0 + $0x48] sm:$0xff]
  %v34 = vld [vmem:[%s0 + $0x50] sm:$0xff]
  %v35 = vld [vmem:[%s0 + $0x58] sm:$0xff]
  %v36 = vld [vmem:[%s0 + $0x60] sm:$0xff]
  %v37 = vld [vmem:[%s0 + $0x68] sm:$0xff]
  %v38 = vld [vmem:[%s0 + $0x70] sm:$0xff]
  %v39 = vld [vmem:[%s0 + $0x78] sm:$0xff]
  %v40 = vld [vmem:[%s0 + $0x80] sm:$0xff]
  %v41 = vld [vmem:[%s0 + $0x88] sm:$0xff]
  %v42 = vld [vmem:[%s0 + $0x90] sm:$0xff]
  %v43 = vld [vmem:[%s0 + $0x98] sm:$0xff]
  %v44 = vld [vmem:[%s0 + $0xa0] sm:$0xff]
  %v45 = vld [vmem:[%s0 + $0xa8] sm:$0xff]
  %v46 = vld [vmem:[%s0 + $0xb0] sm:$0xff]
  %v47 = vld [vmem:[%s0 + $0xb8] sm:$0xff]
  %v48 = vld [vmem:[%s0 + $0xc0] sm:$0xff]
  %v49 = vld [vmem:[%s0 + $0xc8] sm:$0xff]
  %v50 = vld [vmem:[%s0 + $0xd0] sm:$0xff]
  %v51 = vld [vmem:[%s0 + $0xd8] sm:$0xff]
  %v52 = vld [vmem:[%s0 + $0xe0] sm:$0xff]
  %v53 = vld [vmem:[%s0 + $0xe8] sm:$0xff]
  %v54 = vld [vmem:[%s0 + $0xf0] sm:$0xff]
  %v55 = vld [vmem:[%s0 + $0xf8] sm:$0xff]
  %v56 = vld [vmem:[%s0 + $0x100] sm:$0xff]
  %v57 = vld [vmem:[%s0 + $0x108] sm:$0xff]
  %v58 = vld [vmem:[%s0 + $0x110] sm:$0xff]
  %v59 = vld [vmem:[%s0 + $0x118] sm:$0xff]
  %v60 = vld [vmem:[%s0 + $0x120] sm:$0xff]
  %v61 = vld [vmem:[%s0 + $0x128] sm:$0xff]
  %v62 = vld [vmem:[%s0 + $0x130] sm:$0xff]
  %v63 = vld [vmem:[%s0 + $0x138] sm:$0xff]
  %v64 = vld [vmem:[%s0 + $0x140] sm:$0xff]
  %v65 = vld [vmem:[%s0 + $0x148] sm:$0xff]
  %v66 = vld [vmem:[%s0 + $0x150] sm:$0xff]
  %v67 = vld [vmem:[%s0 + $0x158] sm:$0xff]
  %v68 = vld [vmem:[%s0 + $0x160] sm:$0xff]
  %v69 = vld [vmem:[%s0 + $0x168] sm:$0xff]
  %v70 = vld [vmem:[%s0 + $0x170] sm:$0xff]
  %v71 = vld [vmem:[%s0 + $0x178] sm:$0xff]
  %v72 = vld [vmem:[%s0 + $0x180] sm:$0xff]
  %v73 = vld [vmem:[%s0 + $0x188] sm:$0xff]
  %v74 = vld [vmem:[%s0 + $0x190] sm:$0xff]
  %v75 = vld [vmem:[%s0 + $0x198] sm:$0xff]
  %v76 = vld [vmem:[%s0 + $0x1a0] sm:$0xff]
  %v77 = vld [vmem:[%s0 + $0x1a8] sm:$0xff]
  %v78 = vld [vmem:[%s0 + $0x1b0] sm:$0xff]
  %v79 = vld [vmem:[%s0 + $0x1b8] sm:$0xff]
  %v80 = vld [vmem:[%s0 + $0x1c0] sm:$0xff]
  %v81 = vld [vmem:[%s0 + $0x1c8] sm:$0xff]
  %v82 = vld [vmem:[%s0 + $0x1d0] sm:$0xff]
  %v83 = vld [vmem:[%s0 + $0x1d8] sm:$0xff]
  %v84 = vld [vmem:[%s0 + $0x1e0] sm:$0xff]
  %v85 = vld [vmem:[%s0 + $0x1e8] sm:$0xff]
  %v86 = vld [vmem:[%s0 + $0x1f0] sm:$0xff]
  %v87 = vld [vmem:[%s0 + $0x1f8] sm:$0xff]
  %v88 = vld [vmem:[%s1] sm:$0xf]
  %v89 = vld [vmem:[%s1 + $0x4] sm:$0xf]
  %v90 = vld [vmem:[%s1 + $0x8] sm:$0xf]
  %v91 = vld [vmem:[%s1 + $0xc] sm:$0xf]
  %v92 = vld [vmem:[%s1 + $0x10] sm:$0xf]
  %v93 = vld [vmem:[%s1 + $0x14] sm:$0xf]
  %v94 = vld [vmem:[%s1 + $0x18] sm:$0xf]
  %v95 = vld [vmem:[%s1 + $0x1c] sm:$0xf]
  %v96 = vld [vmem:[%s1 + $0x20] sm:$0xf]
  %v97 = vld [vmem:[%s1 + $0x24] sm:$0xf]
  %v98 = vld [vmem:[%s1 + $0x28] sm:$0xf]
  %v99 = vld [vmem:[%s1 + $0x2c] sm:$0xf]
  %v100 = vld [vmem:[%s1 + $0x30] sm:$0xf]
  %v101 = vld [vmem:[%s1 + $0x34] sm:$0xf]
  %v102 = vld [vmem:[%s1 + $0x38] sm:$0xf]
  %v103 = vld [vmem:[%s1 + $0x3c] sm:$0xf]
  %v104 = vld [vmem:[%s1 + $0x40] sm:$0xf]
  %v105 = vld [vmem:[%s1 + $0x44] sm:$0xf]
  %v106 = vld [vmem:[%s1 + $0x48] sm:$0xf]
  %v107 = vld [vmem:[%s1 + $0x4c] sm:$0xf]
  %v108 = vld [vmem:[%s1 + $0x50] sm:$0xf]
  %v109 = vld [vmem:[%s1 + $0x54] sm:$0xf]
  %v110 = vld [vmem:[%s1 + $0x58] sm:$0xf]
  %v111 = vld [vmem:[%s1 + $0x5c] sm:$0xf]
  %v112 = vld [vmem:[%s1 + $0x60] sm:$0xf]
  %v113 = vld [vmem:[%s1 + $0x64] sm:$0xf]
  %v114 = vld [vmem:[%s1 + $0x68] sm:$0xf]
  %v115 = vld [vmem:[%s1 + $0x6c] sm:$0xf]
  %v116 = vld [vmem:[%s1 + $0x70] sm:$0xf]
  %v117 = vld [vmem:[%s1 + $0x74] sm:$0xf]
  %v118 = vld [vmem:[%s1 + $0x78] sm:$0xf]
  %v119 = vld [vmem:[%s1 + $0x7c] sm:$0xf]
  %v120 = vld [vmem:[%s1 + $0x80] sm:$0xf]
  %v121 = vld [vmem:[%s1 + $0x84] sm:$0xf]
  %v122 = vld [vmem:[%s1 + $0x88] sm:$0xf]
  %v123 = vld [vmem:[%s1 + $0x8c] sm:$0xf]
  %v124 = vld [vmem:[%s1 + $0x90] sm:$0xf]
  %v125 = vld [vmem:[%s1 + $0x94] sm:$0xf]
  %v126 = vld [vmem:[%s1 + $0x98] sm:$0xf]
  %v127 = vld [vmem:[%s1 + $0x9c] sm:$0xf]
  %v128 = vld [vmem:[%s1 + $0xa0] sm:$0xf]
  %v129 = vld [vmem:[%s1 + $0xa4] sm:$0xf]
  %v130 = vld [vmem:[%s1 + $0xa8] sm:$0xf]
  %v131 = vld [vmem:[%s1 + $0xac] sm:$0xf]
  %v132 = vld [vmem:[%s1 + $0xb0] sm:$0xf]
  %v133 = vld [vmem:[%s1 + $0xb4] sm:$0xf]
  %v134 = vld [vmem:[%s1 + $0xb8] sm:$0xf]
  %v135 = vld [vmem:[%s1 + $0xbc] sm:$0xf]
  %v136 = vld [vmem:[%s1 + $0xc0] sm:$0xf]
  %v137 = vld [vmem:[%s1 + $0xc4] sm:$0xf]
  %v138 = vld [vmem:[%s1 + $0xc8] sm:$0xf]
  %v139 = vld [vmem:[%s1 + $0xcc] sm:$0xf]
  %v140 = vld [vmem:[%s1 + $0xd0] sm:$0xf]
  %v141 = vld [vmem:[%s1 + $0xd4] sm:$0xf]
  %v142 = vld [vmem:[%s1 + $0xd8] sm:$0xf]
  %v143 = vld [vmem:[%s1 + $0xdc] sm:$0xf]
  %v144 = vld [vmem:[%s1 + $0xe0] sm:$0xf]
  %v145 = vld [vmem:[%s1 + $0xe4] sm:$0xf]
  %v146 = vld [vmem:[%s1 + $0xe8] sm:$0xf]
  %v147 = vld [vmem:[%s1 + $0xec] sm:$0xf]
  %v148 = vld [vmem:[%s1 + $0xf0] sm:$0xf]
  %v149 = vld [vmem:[%s1 + $0xf4] sm:$0xf]
  %v150 = vld [vmem:[%s1 + $0xf8] sm:$0xf]
  %v151 = vld [vmem:[%s1 + $0xfc] sm:$0xf]
  %v152 = vld [vmem:[%s2] sm:$0x1]
  %v154 = vlaneseq
  %v155 = vshrl.u32 %v154, 7
  %v156 = vsub.s32 0, %v155
  %v157 = vrot.slane %v152, %v156
  %v223 = vunpack.c.l.b16 %v24
  %v224 = vunpack.c.h.b16 %v24
  %v225 = vunpack.c.l.b16 %v25
  %v226 = vunpack.c.h.b16 %v25
  %v227 = vunpack.c.l.b16 %v26
  %v228 = vunpack.c.h.b16 %v26
  %v229 = vunpack.c.l.b16 %v27
  %v230 = vunpack.c.h.b16 %v27
  %v231 = vunpack.c.l.b16 %v28
  %v232 = vunpack.c.h.b16 %v28
  %v233 = vunpack.c.l.b16 %v29
  %v234 = vunpack.c.h.b16 %v29
  %v235 = vunpack.c.l.b16 %v30
  %v236 = vunpack.c.h.b16 %v30
  %v237 = vunpack.c.l.b16 %v31
  %v238 = vunpack.c.h.b16 %v31
  %v239 = vunpack.c.l.b16 %v32
  %v240 = vunpack.c.h.b16 %v32
  %v241 = vunpack.c.l.b16 %v33
  %v242 = vunpack.c.h.b16 %v33
  %v243 = vunpack.c.l.b16 %v34
  %v244 = vunpack.c.h.b16 %v34
  %v245 = vunpack.c.l.b16 %v35
  %v246 = vunpack.c.h.b16 %v35
  %v247 = vunpack.c.l.b16 %v36
  %v248 = vunpack.c.h.b16 %v36
  %v249 = vunpack.c.l.b16 %v37
  %v250 = vunpack.c.h.b16 %v37
  %v251 = vunpack.c.l.b16 %v38
  %v252 = vunpack.c.h.b16 %v38
  %v253 = vunpack.c.l.b16 %v39
  %v254 = vunpack.c.h.b16 %v39
  %v255 = vunpack.c.l.b16 %v40
  %v256 = vunpack.c.h.b16 %v40
  %v257 = vunpack.c.l.b16 %v41
  %v258 = vunpack.c.h.b16 %v41
  %v259 = vunpack.c.l.b16 %v42
  %v260 = vunpack.c.h.b16 %v42
  %v261 = vunpack.c.l.b16 %v43
  %v262 = vunpack.c.h.b16 %v43
  %v263 = vunpack.c.l.b16 %v44
  %v264 = vunpack.c.h.b16 %v44
  %v265 = vunpack.c.l.b16 %v45
  %v266 = vunpack.c.h.b16 %v45
  %v267 = vunpack.c.l.b16 %v46
  %v268 = vunpack.c.h.b16 %v46
  %v269 = vunpack.c.l.b16 %v47
  %v270 = vunpack.c.h.b16 %v47
  %v271 = vunpack.c.l.b16 %v48
  %v272 = vunpack.c.h.b16 %v48
  %v273 = vunpack.c.l.b16 %v49
  %v274 = vunpack.c.h.b16 %v49
  %v275 = vunpack.c.l.b16 %v50
  %v276 = vunpack.c.h.b16 %v50
  %v277 = vunpack.c.l.b16 %v51
  %v278 = vunpack.c.h.b16 %v51
  %v279 = vunpack.c.l.b16 %v52
  %v280 = vunpack.c.h.b16 %v52
  %v281 = vunpack.c.l.b16 %v53
  %v282 = vunpack.c.h.b16 %v53
  %v283 = vunpack.c.l.b16 %v54
  %v284 = vunpack.c.h.b16 %v54
  %v285 = vunpack.c.l.b16 %v55
  %v286 = vunpack.c.h.b16 %v55
  %v287 = vunpack.c.l.b16 %v56
  %v288 = vunpack.c.h.b16 %v56
  %v289 = vunpack.c.l.b16 %v57
  %v290 = vunpack.c.h.b16 %v57
  %v291 = vunpack.c.l.b16 %v58
  %v292 = vunpack.c.h.b16 %v58
  %v293 = vunpack.c.l.b16 %v59
  %v294 = vunpack.c.h.b16 %v59
  %v295 = vunpack.c.l.b16 %v60
  %v296 = vunpack.c.h.b16 %v60
  %v297 = vunpack.c.l.b16 %v61
  %v298 = vunpack.c.h.b16 %v61
  %v299 = vunpack.c.l.b16 %v62
  %v300 = vunpack.c.h.b16 %v62
  %v301 = vunpack.c.l.b16 %v63
  %v302 = vunpack.c.h.b16 %v63
  %v303 = vunpack.c.l.b16 %v64
  %v304 = vunpack.c.h.b16 %v64
  %v305 = vunpack.c.l.b16 %v65
  %v306 = vunpack.c.h.b16 %v65
  %v307 = vunpack.c.l.b16 %v66
  %v308 = vunpack.c.h.b16 %v66
  %v309 = vunpack.c.l.b16 %v67
  %v310 = vunpack.c.h.b16 %v67
  %v311 = vunpack.c.l.b16 %v68
  %v312 = vunpack.c.h.b16 %v68
  %v313 = vunpack.c.l.b16 %v69
  %v314 = vunpack.c.h.b16 %v69
  %v315 = vunpack.c.l.b16 %v70
  %v316 = vunpack.c.h.b16 %v70
  %v317 = vunpack.c.l.b16 %v71
  %v318 = vunpack.c.h.b16 %v71
  %v319 = vunpack.c.l.b16 %v72
  %v320 = vunpack.c.h.b16 %v72
  %v321 = vunpack.c.l.b16 %v73
  %v322 = vunpack.c.h.b16 %v73
  %v323 = vunpack.c.l.b16 %v74
  %v324 = vunpack.c.h.b16 %v74
  %v325 = vunpack.c.l.b16 %v75
  %v326 = vunpack.c.h.b16 %v75
  %v327 = vunpack.c.l.b16 %v76
  %v328 = vunpack.c.h.b16 %v76
  %v329 = vunpack.c.l.b16 %v77
  %v330 = vunpack.c.h.b16 %v77
  %v331 = vunpack.c.l.b16 %v78
  %v332 = vunpack.c.h.b16 %v78
  %v333 = vunpack.c.l.b16 %v79
  %v334 = vunpack.c.h.b16 %v79
  %v335 = vunpack.c.l.b16 %v80
  %v336 = vunpack.c.h.b16 %v80
  %v337 = vunpack.c.l.b16 %v81
  %v338 = vunpack.c.h.b16 %v81
  %v339 = vunpack.c.l.b16 %v82
  %v340 = vunpack.c.h.b16 %v82
  %v341 = vunpack.c.l.b16 %v83
  %v342 = vunpack.c.h.b16 %v83
  %v343 = vunpack.c.l.b16 %v84
  %v344 = vunpack.c.h.b16 %v84
  %v345 = vunpack.c.l.b16 %v85
  %v346 = vunpack.c.h.b16 %v85
  %v347 = vunpack.c.l.b16 %v86
  %v348 = vunpack.c.h.b16 %v86
  %v349 = vunpack.c.l.b16 %v87
  %v350 = vunpack.c.h.b16 %v87
  %v351 = vpack.c.b16 %v227, %v223
  %v352 = vpack.c.b16 %v228, %v224
  %v353 = vpack.c.b16 %v229, %v225
  %v354 = vpack.c.b16 %v230, %v226
  %v355 = vpack.c.b16 %v235, %v231
  %v356 = vpack.c.b16 %v236, %v232
  %v357 = vpack.c.b16 %v237, %v233
  %v358 = vpack.c.b16 %v238, %v234
  %v359 = vpack.c.b16 %v243, %v239
  %v360 = vpack.c.b16 %v244, %v240
  %v361 = vpack.c.b16 %v245, %v241
  %v362 = vpack.c.b16 %v246, %v242
  %v363 = vpack.c.b16 %v251, %v247
  %v364 = vpack.c.b16 %v252, %v248
  %v365 = vpack.c.b16 %v253, %v249
  %v366 = vpack.c.b16 %v254, %v250
  %v367 = vpack.c.b16 %v259, %v255
  %v368 = vpack.c.b16 %v260, %v256
  %v369 = vpack.c.b16 %v261, %v257
  %v370 = vpack.c.b16 %v262, %v258
  %v371 = vpack.c.b16 %v267, %v263
  %v372 = vpack.c.b16 %v268, %v264
  %v373 = vpack.c.b16 %v269, %v265
  %v374 = vpack.c.b16 %v270, %v266
  %v375 = vpack.c.b16 %v275, %v271
  %v376 = vpack.c.b16 %v276, %v272
  %v377 = vpack.c.b16 %v277, %v273
  %v378 = vpack.c.b16 %v278, %v274
  %v379 = vpack.c.b16 %v283, %v279
  %v380 = vpack.c.b16 %v284, %v280
  %v381 = vpack.c.b16 %v285, %v281
  %v382 = vpack.c.b16 %v286, %v282
  %v383 = vpack.c.b16 %v291, %v287
  %v384 = vpack.c.b16 %v292, %v288
  %v385 = vpack.c.b16 %v293, %v289
  %v386 = vpack.c.b16 %v294, %v290
  %v387 = vpack.c.b16 %v299, %v295
  %v388 = vpack.c.b16 %v300, %v296
  %v389 = vpack.c.b16 %v301, %v297
  %v390 = vpack.c.b16 %v302, %v298
  %v391 = vpack.c.b16 %v307, %v303
  %v392 = vpack.c.b16 %v308, %v304
  %v393 = vpack.c.b16 %v309, %v305
  %v394 = vpack.c.b16 %v310, %v306
  %v395 = vpack.c.b16 %v315, %v311
  %v396 = vpack.c.b16 %v316, %v312
  %v397 = vpack.c.b16 %v317, %v313
  %v398 = vpack.c.b16 %v318, %v314
  %v399 = vpack.c.b16 %v323, %v319
  %v400 = vpack.c.b16 %v324, %v320
  %v401 = vpack.c.b16 %v325, %v321
  %v402 = vpack.c.b16 %v326, %v322
  %v403 = vpack.c.b16 %v331, %v327
  %v404 = vpack.c.b16 %v332, %v328
  %v405 = vpack.c.b16 %v333, %v329
  %v406 = vpack.c.b16 %v334, %v330
  %v407 = vpack.c.b16 %v339, %v335
  %v408 = vpack.c.b16 %v340, %v336
  %v409 = vpack.c.b16 %v341, %v337
  %v410 = vpack.c.b16 %v342, %v338
  %v411 = vpack.c.b16 %v347, %v343
  %v412 = vpack.c.b16 %v348, %v344
  %v413 = vpack.c.b16 %v349, %v345
  %v414 = vpack.c.b16 %v350, %v346
  %v543 = vunpack.c.l.b16 %v88
  %v544 = vunpack.c.l.b16 %v89
  %v545 = vunpack.c.l.b16 %v90
  %v546 = vunpack.c.l.b16 %v91
  %v547 = vunpack.c.l.b16 %v92
  %v548 = vunpack.c.l.b16 %v93
  %v549 = vunpack.c.l.b16 %v94
  %v550 = vunpack.c.l.b16 %v95
  %v551 = vunpack.c.l.b16 %v96
  %v552 = vunpack.c.l.b16 %v97
  %v553 = vunpack.c.l.b16 %v98
  %v554 = vunpack.c.l.b16 %v99
  %v555 = vunpack.c.l.b16 %v100
  %v556 = vunpack.c.l.b16 %v101
  %v557 = vunpack.c.l.b16 %v102
  %v558 = vunpack.c.l.b16 %v103
  %v559 = vunpack.c.l.b16 %v104
  %v560 = vunpack.c.l.b16 %v105
  %v561 = vunpack.c.l.b16 %v106
  %v562 = vunpack.c.l.b16 %v107
  %v563 = vunpack.c.l.b16 %v108
  %v564 = vunpack.c.l.b16 %v109
  %v565 = vunpack.c.l.b16 %v110
  %v566 = vunpack.c.l.b16 %v111
  %v567 = vunpack.c.l.b16 %v112
  %v568 = vunpack.c.l.b16 %v113
  %v569 = vunpack.c.l.b16 %v114
  %v570 = vunpack.c.l.b16 %v115
  %v571 = vunpack.c.l.b16 %v116
  %v572 = vunpack.c.l.b16 %v117
  %v573 = vunpack.c.l.b16 %v118
  %v574 = vunpack.c.l.b16 %v119
  %v575 = vunpack.c.l.b16 %v120
  %v576 = vunpack.c.l.b16 %v121
  %v577 = vunpack.c.l.b16 %v122
  %v578 = vunpack.c.l.b16 %v123
  %v579 = vunpack.c.l.b16 %v124
  %v580 = vunpack.c.l.b16 %v125
  %v581 = vunpack.c.l.b16 %v126
  %v582 = vunpack.c.l.b16 %v127
  %v583 = vunpack.c.l.b16 %v128
  %v584 = vunpack.c.l.b16 %v129
  %v585 = vunpack.c.l.b16 %v130
  %v586 = vunpack.c.l.b16 %v131
  %v587 = vunpack.c.l.b16 %v132
  %v588 = vunpack.c.l.b16 %v133
  %v589 = vunpack.c.l.b16 %v134
  %v590 = vunpack.c.l.b16 %v135
  %v591 = vunpack.c.l.b16 %v136
  %v592 = vunpack.c.l.b16 %v137
  %v593 = vunpack.c.l.b16 %v138
  %v594 = vunpack.c.l.b16 %v139
  %v595 = vunpack.c.l.b16 %v140
  %v596 = vunpack.c.l.b16 %v141
  %v597 = vunpack.c.l.b16 %v142
  %v598 = vunpack.c.l.b16 %v143
  %v599 = vunpack.c.l.b16 %v144
  %v600 = vunpack.c.l.b16 %v145
  %v601 = vunpack.c.l.b16 %v146
  %v602 = vunpack.c.l.b16 %v147
  %v603 = vunpack.c.l.b16 %v148
  %v604 = vunpack.c.l.b16 %v149
  %v605 = vunpack.c.l.b16 %v150
  %v606 = vunpack.c.l.b16 %v151
  %v607 = vpack.c.b16 %v544, %v543
  %v608 = vpack.c.b16 %v546, %v545
  %v609 = vpack.c.b16 %v548, %v547
  %v610 = vpack.c.b16 %v550, %v549
  %v611 = vpack.c.b16 %v552, %v551
  %v612 = vpack.c.b16 %v554, %v553
  %v613 = vpack.c.b16 %v556, %v555
  %v614 = vpack.c.b16 %v558, %v557
  %v615 = vpack.c.b16 %v560, %v559
  %v616 = vpack.c.b16 %v562, %v561
  %v617 = vpack.c.b16 %v564, %v563
  %v618 = vpack.c.b16 %v566, %v565
  %v619 = vpack.c.b16 %v568, %v567
  %v620 = vpack.c.b16 %v570, %v569
  %v621 = vpack.c.b16 %v572, %v571
  %v622 = vpack.c.b16 %v574, %v573
  %v623 = vpack.c.b16 %v576, %v575
  %v624 = vpack.c.b16 %v578, %v577
  %v625 = vpack.c.b16 %v580, %v579
  %v626 = vpack.c.b16 %v582, %v581
  %v627 = vpack.c.b16 %v584, %v583
  %v628 = vpack.c.b16 %v586, %v585
  %v629 = vpack.c.b16 %v588, %v587
  %v630 = vpack.c.b16 %v590, %v589
  %v631 = vpack.c.b16 %v592, %v591
  %v632 = vpack.c.b16 %v594, %v593
  %v633 = vpack.c.b16 %v596, %v595
  %v634 = vpack.c.b16 %v598, %v597
  %v635 = vpack.c.b16 %v600, %v599
  %v636 = vpack.c.b16 %v602, %v601
  %v637 = vpack.c.b16 %v604, %v603
  %v638 = vpack.c.b16 %v606, %v605
  %671 = vmatprep.subr.bf16.mxu0 0
  %672 = vmatpush1.bf16.msra.mxu0 %v607
  %673 = vmatprep.subr.bf16.mxu0 0
  %674 = vmatpush1.bf16.msra.mxu0 %v608
  %675 = vmatprep.subr.bf16.mxu0 0
  %676 = vmatpush1.bf16.msra.mxu0 %v609
  %677 = vmatprep.subr.bf16.mxu0 0
  %678 = vmatpush1.bf16.msra.mxu0 %v610
  %679 = vmatprep.subr.bf16.mxu0 0
  %680 = vmatpush1.bf16.msra.mxu0 %v611
  %681 = vmatprep.subr.bf16.mxu0 0
  %682 = vmatpush1.bf16.msra.mxu0 %v612
  %683 = vmatprep.subr.bf16.mxu0 0
  %684 = vmatpush1.bf16.msra.mxu0 %v613
  %685 = vmatprep.subr.bf16.mxu0 0
  %686 = vmatpush1.bf16.msra.mxu0 %v614
  %687 = vmatprep.subr.bf16.mxu0 0
  %688 = vmatpush1.bf16.msra.mxu0 %v615
  %689 = vmatprep.subr.bf16.mxu0 0
  %690 = vmatpush1.bf16.msra.mxu0 %v616
  %691 = vmatprep.subr.bf16.mxu0 0
  %692 = vmatpush1.bf16.msra.mxu0 %v617
  %693 = vmatprep.subr.bf16.mxu0 0
  %694 = vmatpush1.bf16.msra.mxu0 %v618
  %695 = vmatprep.subr.bf16.mxu0 0
  %696 = vmatpush1.bf16.msra.mxu0 %v619
  %697 = vmatprep.subr.bf16.mxu0 0
  %698 = vmatpush1.bf16.msra.mxu0 %v620
  %699 = vmatprep.subr.bf16.mxu0 0
  %700 = vmatpush1.bf16.msra.mxu0 %v621
  %701 = vmatprep.subr.bf16.mxu0 0
  %702 = vmatpush1.bf16.msra.mxu0 %v622
  %703 = vmatprep.mubr.bf16.mxu0 %v352
  %704 = vmatmul.mubr.bf16.gmra.mrb[0].mxu0 %v351
  %v705 = vpop.f32.mrb[0].mxu0
  %v706 = vadd.f32 %v157, %v705
  %v707 = vpop.f32.mrb[0].mxu0
  %v708 = vpop.f32.mrb[0].mxu0
  %v709 = vadd.f32 %v157, %v708
  %v710 = vpop.f32.mrb[0].mxu0
  %711 = vmatprep.mubr.bf16.mxu0 %v356
  %712 = vmatmul.mubr.bf16.gmra.mrb[0].mxu0 %v355
  %v713 = vpop.f32.mrb[0].mxu0
  %v714 = vadd.f32 %v157, %v713
  %v715 = vpop.f32.mrb[0].mxu0
  %v716 = vpop.f32.mrb[0].mxu0
  %v717 = vadd.f32 %v157, %v716
  %v718 = vpop.f32.mrb[0].mxu0
  %719 = vmatprep.mubr.bf16.mxu0 %v360
  %720 = vmatmul.mubr.bf16.gmra.mrb[0].mxu0 %v359
  %v721 = vpop.f32.mrb[0].mxu0
  %v722 = vadd.f32 %v157, %v721
  %v723 = vpop.f32.mrb[0].mxu0
  %v724 = vpop.f32.mrb[0].mxu0
  %v725 = vadd.f32 %v157, %v724
  %v726 = vpop.f32.mrb[0].mxu0
  %727 = vmatprep.mubr.bf16.mxu0 %v364
  %728 = vmatmul.mubr.bf16.gmra.mrb[0].mxu0 %v363
  %v729 = vpop.f32.mrb[0].mxu0
  %v730 = vadd.f32 %v157, %v729
  %v731 = vpop.f32.mrb[0].mxu0
  %v732 = vpop.f32.mrb[0].mxu0
  %v733 = vadd.f32 %v157, %v732
  %v734 = vpop.f32.mrb[0].mxu0
  %735 = vmatprep.mubr.bf16.mxu0 %v368
  %736 = vmatmul.mubr.bf16.gmra.mrb[0].mxu0 %v367
  %v737 = vpop.f32.mrb[0].mxu0
  %v738 = vadd.f32 %v157, %v737
  %v739 = vpop.f32.mrb[0].mxu0
  %v740 = vpop.f32.mrb[0].mxu0
  %v741 = vadd.f32 %v157, %v740
  %v742 = vpop.f32.mrb[0].mxu0
  %743 = vmatprep.mubr.bf16.mxu0 %v372
  %744 = vmatmul.mubr.bf16.gmra.mrb[0].mxu0 %v371
  %v745 = vpop.f32.mrb[0].mxu0
  %v746 = vadd.f32 %v157, %v745
  %v747 = vpop.f32.mrb[0].mxu0
  %v748 = vpop.f32.mrb[0].mxu0
  %v749 = vadd.f32 %v157, %v748
  %v750 = vpop.f32.mrb[0].mxu0
  %751 = vmatprep.mubr.bf16.mxu0 %v376
  %752 = vmatmul.mubr.bf16.gmra.mrb[0].mxu0 %v375
  %v753 = vpop.f32.mrb[0].mxu0
  %v754 = vadd.f32 %v157, %v753
  %v755 = vpop.f32.mrb[0].mxu0
  %v756 = vpop.f32.mrb[0].mxu0
  %v757 = vadd.f32 %v157, %v756
  %v758 = vpop.f32.mrb[0].mxu0
  %759 = vmatprep.mubr.bf16.mxu0 %v380
  %760 = vmatmul.mubr.bf16.gmra.mrb[0].mxu0 %v379
  %v761 = vpop.f32.mrb[0].mxu0
  %v762 = vadd.f32 %v157, %v761
  %v763 = vpop.f32.mrb[0].mxu0
  %v764 = vpop.f32.mrb[0].mxu0
  %v765 = vadd.f32 %v157, %v764
  %v766 = vpop.f32.mrb[0].mxu0
  %767 = vmatprep.mubr.bf16.mxu0 %v384
  %768 = vmatmul.mubr.bf16.gmra.mrb[0].mxu0 %v383
  %v769 = vpop.f32.mrb[0].mxu0
  %v770 = vadd.f32 %v157, %v769
  %v771 = vpop.f32.mrb[0].mxu0
  %v772 = vpop.f32.mrb[0].mxu0
  %v773 = vadd.f32 %v157, %v772
  %v774 = vpop.f32.mrb[0].mxu0
  %775 = vmatprep.mubr.bf16.mxu0 %v388
  %776 = vmatmul.mubr.bf16.gmra.mrb[0].mxu0 %v387
  %v777 = vpop.f32.mrb[0].mxu0
  %v778 = vadd.f32 %v157, %v777
  %v779 = vpop.f32.mrb[0].mxu0
  %v780 = vpop.f32.mrb[0].mxu0
  %v781 = vadd.f32 %v157, %v780
  %v782 = vpop.f32.mrb[0].mxu0
  %783 = vmatprep.mubr.bf16.mxu0 %v392
  %784 = vmatmul.mubr.bf16.gmra.mrb[0].mxu0 %v391
  %v785 = vpop.f32.mrb[0].mxu0
  %v786 = vadd.f32 %v157, %v785
  %v787 = vpop.f32.mrb[0].mxu0
  %v788 = vpop.f32.mrb[0].mxu0
  %v789 = vadd.f32 %v157, %v788
  %v790 = vpop.f32.mrb[0].mxu0
  %791 = vmatprep.mubr.bf16.mxu0 %v396
  %792 = vmatmul.mubr.bf16.gmra.mrb[0].mxu0 %v395
  %v793 = vpop.f32.mrb[0].mxu0
  %v794 = vadd.f32 %v157, %v793
  %v795 = vpop.f32.mrb[0].mxu0
  %v796 = vpop.f32.mrb[0].mxu0
  %v797 = vadd.f32 %v157, %v796
  %v798 = vpop.f32.mrb[0].mxu0
  %799 = vmatprep.mubr.bf16.mxu0 %v400
  %800 = vmatmul.mubr.bf16.gmra.mrb[0].mxu0 %v399
  %v801 = vpop.f32.mrb[0].mxu0
  %v802 = vadd.f32 %v157, %v801
  %v803 = vpop.f32.mrb[0].mxu0
  %v804 = vpop.f32.mrb[0].mxu0
  %v805 = vadd.f32 %v157, %v804
  %v806 = vpop.f32.mrb[0].mxu0
  %807 = vmatprep.mubr.bf16.mxu0 %v404
  %808 = vmatmul.mubr.bf16.gmra.mrb[0].mxu0 %v403
  %v809 = vpop.f32.mrb[0].mxu0
  %v810 = vadd.f32 %v157, %v809
  %v811 = vpop.f32.mrb[0].mxu0
  %v812 = vpop.f32.mrb[0].mxu0
  %v813 = vadd.f32 %v157, %v812
  %v814 = vpop.f32.mrb[0].mxu0
  %815 = vmatprep.mubr.bf16.mxu0 %v408
  %816 = vmatmul.mubr.bf16.gmra.mrb[0].mxu0 %v407
  %v817 = vpop.f32.mrb[0].mxu0
  %v818 = vadd.f32 %v157, %v817
  %v819 = vpop.f32.mrb[0].mxu0
  %v820 = vpop.f32.mrb[0].mxu0
  %v821 = vadd.f32 %v157, %v820
  %v822 = vpop.f32.mrb[0].mxu0
  %823 = vmatprep.mubr.bf16.mxu0 %v412
  %824 = vmatmul.mubr.bf16.gmra.mrb[0].mxu0 %v411
  %v825 = vpop.f32.mrb[0].mxu0
  %v826 = vadd.f32 %v157, %v825
  %v827 = vpop.f32.mrb[0].mxu0
  %v828 = vpop.f32.mrb[0].mxu0
  %v829 = vadd.f32 %v157, %v828
  %v830 = vpop.f32.mrb[0].mxu0
  %831 = vdwg.mxu0
  %832 = vmatprep.subr.bf16.mxu0 0
  %833 = vmatpush1.bf16.msra.mxu0 %v623
  %834 = vmatprep.subr.bf16.mxu0 0
  %835 = vmatpush1.bf16.msra.mxu0 %v624
  %836 = vmatprep.subr.bf16.mxu0 0
  %837 = vmatpush1.bf16.msra.mxu0 %v625
  %838 = vmatprep.subr.bf16.mxu0 0
  %839 = vmatpush1.bf16.msra.mxu0 %v626
  %840 = vmatprep.subr.bf16.mxu0 0
  %841 = vmatpush1.bf16.msra.mxu0 %v627
  %842 = vmatprep.subr.bf16.mxu0 0
  %843 = vmatpush1.bf16.msra.mxu0 %v628
  %844 = vmatprep.subr.bf16.mxu0 0
  %845 = vmatpush1.bf16.msra.mxu0 %v629
  %846 = vmatprep.subr.bf16.mxu0 0
  %847 = vmatpush1.bf16.msra.mxu0 %v630
  %848 = vmatprep.subr.bf16.mxu0 0
  %849 = vmatpush1.bf16.msra.mxu0 %v631
  %850 = vmatprep.subr.bf16.mxu0 0
  %851 = vmatpush1.bf16.msra.mxu0 %v632
  %852 = vmatprep.subr.bf16.mxu0 0
  %853 = vmatpush1.bf16.msra.mxu0 %v633
  %854 = vmatprep.subr.bf16.mxu0 0
  %855 = vmatpush1.bf16.msra.mxu0 %v634
  %856 = vmatprep.subr.bf16.mxu0 0
  %857 = vmatpush1.bf16.msra.mxu0 %v635
  %858 = vmatprep.subr.bf16.mxu0 0
  %859 = vmatpush1.bf16.msra.mxu0 %v636
  %860 = vmatprep.subr.bf16.mxu0 0
  %861 = vmatpush1.bf16.msra.mxu0 %v637
  %862 = vmatprep.subr.bf16.mxu0 0
  %863 = vmatpush1.bf16.msra.mxu0 %v638
  %864 = vmatprep.mubr.bf16.mxu0 %v354
  %865 = vmatmul.mubr.bf16.gmra.mrb[0].mxu0 %v353
  %v866 = vpop.f32.mrb[0].mxu0
  %v867 = vadd.f32 %v706, %v866
  %v868 = vpop.f32.mrb[0].mxu0
  %v869 = vpop.f32.mrb[0].mxu0
  %v870 = vadd.f32 %v709, %v869
  %v871 = vpop.f32.mrb[0].mxu0
  %872 = vmatprep.mubr.bf16.mxu0 %v358
  %873 = vmatmul.mubr.bf16.gmra.mrb[0].mxu0 %v357
  %v874 = vpop.f32.mrb[0].mxu0
  %v875 = vadd.f32 %v714, %v874
  %v876 = vpop.f32.mrb[0].mxu0
  %v877 = vpop.f32.mrb[0].mxu0
  %v878 = vadd.f32 %v717, %v877
  %v879 = vpop.f32.mrb[0].mxu0
  %880 = vmatprep.mubr.bf16.mxu0 %v362
  %881 = vmatmul.mubr.bf16.gmra.mrb[0].mxu0 %v361
  %v882 = vpop.f32.mrb[0].mxu0
  %v883 = vadd.f32 %v722, %v882
  %v884 = vpop.f32.mrb[0].mxu0
  %v885 = vpop.f32.mrb[0].mxu0
  %v886 = vadd.f32 %v725, %v885
  %v887 = vpop.f32.mrb[0].mxu0
  %888 = vmatprep.mubr.bf16.mxu0 %v366
  %889 = vmatmul.mubr.bf16.gmra.mrb[0].mxu0 %v365
  %v890 = vpop.f32.mrb[0].mxu0
  %v891 = vadd.f32 %v730, %v890
  %v892 = vpop.f32.mrb[0].mxu0
  %v893 = vpop.f32.mrb[0].mxu0
  %v894 = vadd.f32 %v733, %v893
  %v895 = vpop.f32.mrb[0].mxu0
  %896 = vmatprep.mubr.bf16.mxu0 %v370
  %897 = vmatmul.mubr.bf16.gmra.mrb[0].mxu0 %v369
  %v898 = vpop.f32.mrb[0].mxu0
  %v899 = vadd.f32 %v738, %v898
  %v900 = vpop.f32.mrb[0].mxu0
  %v901 = vpop.f32.mrb[0].mxu0
  %v902 = vadd.f32 %v741, %v901
  %v903 = vpop.f32.mrb[0].mxu0
  %904 = vmatprep.mubr.bf16.mxu0 %v374
  %905 = vmatmul.mubr.bf16.gmra.mrb[0].mxu0 %v373
  %v906 = vpop.f32.mrb[0].mxu0
  %v907 = vadd.f32 %v746, %v906
  %v908 = vpop.f32.mrb[0].mxu0
  %v909 = vpop.f32.mrb[0].mxu0
  %v910 = vadd.f32 %v749, %v909
  %v911 = vpop.f32.mrb[0].mxu0
  %912 = vmatprep.mubr.bf16.mxu0 %v378
  %913 = vmatmul.mubr.bf16.gmra.mrb[0].mxu0 %v377
  %v914 = vpop.f32.mrb[0].mxu0
  %v915 = vadd.f32 %v754, %v914
  %v916 = vpop.f32.mrb[0].mxu0
  %v917 = vpop.f32.mrb[0].mxu0
  %v918 = vadd.f32 %v757, %v917
  %v919 = vpop.f32.mrb[0].mxu0
  %920 = vmatprep.mubr.bf16.mxu0 %v382
  %921 = vmatmul.mubr.bf16.gmra.mrb[0].mxu0 %v381
  %v922 = vpop.f32.mrb[0].mxu0
  %v923 = vadd.f32 %v762, %v922
  %v924 = vpop.f32.mrb[0].mxu0
  %v925 = vpop.f32.mrb[0].mxu0
  %v926 = vadd.f32 %v765, %v925
  %v927 = vpop.f32.mrb[0].mxu0
  %928 = vmatprep.mubr.bf16.mxu0 %v386
  %929 = vmatmul.mubr.bf16.gmra.mrb[0].mxu0 %v385
  %v930 = vpop.f32.mrb[0].mxu0
  %v931 = vadd.f32 %v770, %v930
  %v932 = vpop.f32.mrb[0].mxu0
  %v933 = vpop.f32.mrb[0].mxu0
  %v934 = vadd.f32 %v773, %v933
  %v935 = vpop.f32.mrb[0].mxu0
  %936 = vmatprep.mubr.bf16.mxu0 %v390
  %937 = vmatmul.mubr.bf16.gmra.mrb[0].mxu0 %v389
  %v938 = vpop.f32.mrb[0].mxu0
  %v939 = vadd.f32 %v778, %v938
  %v940 = vpop.f32.mrb[0].mxu0
  %v941 = vpop.f32.mrb[0].mxu0
  %v942 = vadd.f32 %v781, %v941
  %v943 = vpop.f32.mrb[0].mxu0
  %944 = vmatprep.mubr.bf16.mxu0 %v394
  %945 = vmatmul.mubr.bf16.gmra.mrb[0].mxu0 %v393
  %v946 = vpop.f32.mrb[0].mxu0
  %v947 = vadd.f32 %v786, %v946
  %v948 = vpop.f32.mrb[0].mxu0
  %v949 = vpop.f32.mrb[0].mxu0
  %v950 = vadd.f32 %v789, %v949
  %v951 = vpop.f32.mrb[0].mxu0
  %952 = vmatprep.mubr.bf16.mxu0 %v398
  %953 = vmatmul.mubr.bf16.gmra.mrb[0].mxu0 %v397
  %v954 = vpop.f32.mrb[0].mxu0
  %v955 = vadd.f32 %v794, %v954
  %v956 = vpop.f32.mrb[0].mxu0
  %v957 = vpop.f32.mrb[0].mxu0
  %v958 = vadd.f32 %v797, %v957
  %v959 = vpop.f32.mrb[0].mxu0
  %960 = vmatprep.mubr.bf16.mxu0 %v402
  %961 = vmatmul.mubr.bf16.gmra.mrb[0].mxu0 %v401
  %v962 = vpop.f32.mrb[0].mxu0
  %v963 = vadd.f32 %v802, %v962
  %v964 = vpop.f32.mrb[0].mxu0
  %v965 = vpop.f32.mrb[0].mxu0
  %v966 = vadd.f32 %v805, %v965
  %v967 = vpop.f32.mrb[0].mxu0
  %968 = vmatprep.mubr.bf16.mxu0 %v406
  %969 = vmatmul.mubr.bf16.gmra.mrb[0].mxu0 %v405
  %v970 = vpop.f32.mrb[0].mxu0
  %v971 = vadd.f32 %v810, %v970
  %v972 = vpop.f32.mrb[0].mxu0
  %v973 = vpop.f32.mrb[0].mxu0
  %v974 = vadd.f32 %v813, %v973
  %v975 = vpop.f32.mrb[0].mxu0
  %976 = vmatprep.mubr.bf16.mxu0 %v410
  %977 = vmatmul.mubr.bf16.gmra.mrb[0].mxu0 %v409
  %v978 = vpop.f32.mrb[0].mxu0
  %v979 = vadd.f32 %v818, %v978
  %v980 = vpop.f32.mrb[0].mxu0
  %v981 = vpop.f32.mrb[0].mxu0
  %v982 = vadd.f32 %v821, %v981
  %v983 = vpop.f32.mrb[0].mxu0
  %984 = vmatprep.mubr.bf16.mxu0 %v414
  %985 = vmatmul.mubr.bf16.gmra.mrb[0].mxu0 %v413
  %v986 = vpop.f32.mrb[0].mxu0
  %v987 = vadd.f32 %v826, %v986
  %v988 = vpop.f32.mrb[0].mxu0
  %v989 = vpop.f32.mrb[0].mxu0
  %v990 = vadd.f32 %v829, %v989
  %v991 = vpop.f32.mrb[0].mxu0
  %992 = vdwg.mxu0
  %v993 = vld [vmem:[%s3] sm:$0xf]
  %v994 = vld [vmem:[%s3 + $0x4] sm:$0xf]
  %v995 = vld [vmem:[%s3 + $0x8] sm:$0xf]
  %v996 = vld [vmem:[%s3 + $0xc] sm:$0xf]
  %v997 = vld [vmem:[%s3 + $0x10] sm:$0xf]
  %v998 = vld [vmem:[%s3 + $0x14] sm:$0xf]
  %v999 = vld [vmem:[%s3 + $0x18] sm:$0xf]
  %v1000 = vld [vmem:[%s3 + $0x1c] sm:$0xf]
  %v1001 = vld [vmem:[%s3 + $0x20] sm:$0xf]
  %v1002 = vld [vmem:[%s3 + $0x24] sm:$0xf]
  %v1003 = vld [vmem:[%s3 + $0x28] sm:$0xf]
  %v1004 = vld [vmem:[%s3 + $0x2c] sm:$0xf]
  %v1005 = vld [vmem:[%s3 + $0x30] sm:$0xf]
  %v1006 = vld [vmem:[%s3 + $0x34] sm:$0xf]
  %v1007 = vld [vmem:[%s3 + $0x38] sm:$0xf]
  %v1008 = vld [vmem:[%s3 + $0x3c] sm:$0xf]
  %v1009 = vld [vmem:[%s3 + $0x40] sm:$0xf]
  %v1010 = vld [vmem:[%s3 + $0x44] sm:$0xf]
  %v1011 = vld [vmem:[%s3 + $0x48] sm:$0xf]
  %v1012 = vld [vmem:[%s3 + $0x4c] sm:$0xf]
  %v1013 = vld [vmem:[%s3 + $0x50] sm:$0xf]
  %v1014 = vld [vmem:[%s3 + $0x54] sm:$0xf]
  %v1015 = vld [vmem:[%s3 + $0x58] sm:$0xf]
  %v1016 = vld [vmem:[%s3 + $0x5c] sm:$0xf]
  %v1017 = vld [vmem:[%s3 + $0x60] sm:$0xf]
  %v1018 = vld [vmem:[%s3 + $0x64] sm:$0xf]
  %v1019 = vld [vmem:[%s3 + $0x68] sm:$0xf]
  %v1020 = vld [vmem:[%s3 + $0x6c] sm:$0xf]
  %v1021 = vld [vmem:[%s3 + $0x70] sm:$0xf]
  %v1022 = vld [vmem:[%s3 + $0x74] sm:$0xf]
  %v1023 = vld [vmem:[%s3 + $0x78] sm:$0xf]
  %v1024 = vld [vmem:[%s3 + $0x7c] sm:$0xf]
  %v1025 = vunpack.c.l.bf16 %v993
  %v1026 = vunpack.c.l.bf16 %v994
  %v1027 = vunpack.c.l.bf16 %v995
  %v1028 = vunpack.c.l.bf16 %v996
  %v1029 = vunpack.c.l.bf16 %v997
  %v1030 = vunpack.c.l.bf16 %v998
  %v1031 = vunpack.c.l.bf16 %v999
  %v1032 = vunpack.c.l.bf16 %v1000
  %v1033 = vunpack.c.l.bf16 %v1001
  %v1034 = vunpack.c.l.bf16 %v1002
  %v1035 = vunpack.c.l.bf16 %v1003
  %v1036 = vunpack.c.l.bf16 %v1004
  %v1037 = vunpack.c.l.bf16 %v1005
  %v1038 = vunpack.c.l.bf16 %v1006
  %v1039 = vunpack.c.l.bf16 %v1007
  %v1040 = vunpack.c.l.bf16 %v1008
  %v1041 = vunpack.c.l.bf16 %v1009
  %v1042 = vunpack.c.l.bf16 %v1010
  %v1043 = vunpack.c.l.bf16 %v1011
  %v1044 = vunpack.c.l.bf16 %v1012
  %v1045 = vunpack.c.l.bf16 %v1013
  %v1046 = vunpack.c.l.bf16 %v1014
  %v1047 = vunpack.c.l.bf16 %v1015
  %v1048 = vunpack.c.l.bf16 %v1016
  %v1049 = vunpack.c.l.bf16 %v1017
  %v1050 = vunpack.c.l.bf16 %v1018
  %v1051 = vunpack.c.l.bf16 %v1019
  %v1052 = vunpack.c.l.bf16 %v1020
  %v1053 = vunpack.c.l.bf16 %v1021
  %v1054 = vunpack.c.l.bf16 %v1022
  %v1055 = vunpack.c.l.bf16 %v1023
  %v1056 = vunpack.c.l.bf16 %v1024
  %v1057 = vadd.f32 %v867, %v1025
  %v1058 = vadd.f32 %v870, %v1026
  %v1059 = vadd.f32 %v875, %v1027
  %v1060 = vadd.f32 %v878, %v1028
  %v1061 = vadd.f32 %v883, %v1029
  %v1062 = vadd.f32 %v886, %v1030
  %v1063 = vadd.f32 %v891, %v1031
  %v1064 = vadd.f32 %v894, %v1032
  %v1065 = vadd.f32 %v899, %v1033
  %v1066 = vadd.f32 %v902, %v1034
  %v1067 = vadd.f32 %v907, %v1035
  %v1068 = vadd.f32 %v910, %v1036
  %v1069 = vadd.f32 %v915, %v1037
  %v1070 = vadd.f32 %v918, %v1038
  %v1071 = vadd.f32 %v923, %v1039
  %v1072 = vadd.f32 %v926, %v1040
  %v1073 = vadd.f32 %v931, %v1041
  %v1074 = vadd.f32 %v934, %v1042
  %v1075 = vadd.f32 %v939, %v1043
  %v1076 = vadd.f32 %v942, %v1044
  %v1077 = vadd.f32 %v947, %v1045
  %v1078 = vadd.f32 %v950, %v1046
  %v1079 = vadd.f32 %v955, %v1047
  %v1080 = vadd.f32 %v958, %v1048
  %v1081 = vadd.f32 %v963, %v1049
  %v1082 = vadd.f32 %v966, %v1050
  %v1083 = vadd.f32 %v971, %v1051
  %v1084 = vadd.f32 %v974, %v1052
  %v1085 = vadd.f32 %v979, %v1053
  %v1086 = vadd.f32 %v982, %v1054
  %v1087 = vadd.f32 %v987, %v1055
  %v1088 = vadd.f32 %v990, %v1056
  %v1089 = vld [vmem:[%s4] sm:$0x1]
  %v1090 = vld [vmem:[%s5] sm:$0x1]
  %1091 = vadd.xlane.f32.xlu0 %v1057
  %v1092 = vpop.xlane.xlu0 %1091
  %1093 = vadd.xlane.f32.xlu0 %v1058
  %v1094 = vpop.xlane.xlu0 %1093
  %1095 = vadd.xlane.f32.xlu0 %v1059
  %v1096 = vpop.xlane.xlu0 %1095
  %1097 = vadd.xlane.f32.xlu0 %v1060
  %v1098 = vpop.xlane.xlu0 %1097
  %1099 = vadd.xlane.f32.xlu0 %v1061
  %v1100 = vpop.xlane.xlu0 %1099
  %1101 = vadd.xlane.f32.xlu0 %v1062
  %v1102 = vpop.xlane.xlu0 %1101
  %1103 = vadd.xlane.f32.xlu0 %v1063
  %v1104 = vpop.xlane.xlu0 %1103
  %1105 = vadd.xlane.f32.xlu0 %v1064
  %v1106 = vpop.xlane.xlu0 %1105
  %1107 = vadd.xlane.f32.xlu0 %v1065
  %v1108 = vpop.xlane.xlu0 %1107
  %1109 = vadd.xlane.f32.xlu0 %v1066
  %v1110 = vpop.xlane.xlu0 %1109
  %1111 = vadd.xlane.f32.xlu0 %v1067
  %v1112 = vpop.xlane.xlu0 %1111
  %1113 = vadd.xlane.f32.xlu0 %v1068
  %v1114 = vpop.xlane.xlu0 %1113
  %1115 = vadd.xlane.f32.xlu0 %v1069
  %v1116 = vpop.xlane.xlu0 %1115
  %1117 = vadd.xlane.f32.xlu0 %v1070
  %v1118 = vpop.xlane.xlu0 %1117
  %1119 = vadd.xlane.f32.xlu0 %v1071
  %v1120 = vpop.xlane.xlu0 %1119
  %1121 = vadd.xlane.f32.xlu0 %v1072
  %v1122 = vpop.xlane.xlu0 %1121
  %1123 = vadd.xlane.f32.xlu0 %v1073
  %v1124 = vpop.xlane.xlu0 %1123
  %1125 = vadd.xlane.f32.xlu0 %v1074
  %v1126 = vpop.xlane.xlu0 %1125
  %1127 = vadd.xlane.f32.xlu0 %v1075
  %v1128 = vpop.xlane.xlu0 %1127
  %1129 = vadd.xlane.f32.xlu0 %v1076
  %v1130 = vpop.xlane.xlu0 %1129
  %1131 = vadd.xlane.f32.xlu0 %v1077
  %v1132 = vpop.xlane.xlu0 %1131
  %1133 = vadd.xlane.f32.xlu0 %v1078
  %v1134 = vpop.xlane.xlu0 %1133
  %1135 = vadd.xlane.f32.xlu0 %v1079
  %v1136 = vpop.xlane.xlu0 %1135
  %1137 = vadd.xlane.f32.xlu0 %v1080
  %v1138 = vpop.xlane.xlu0 %1137
  %1139 = vadd.xlane.f32.xlu0 %v1081
  %v1140 = vpop.xlane.xlu0 %1139
  %1141 = vadd.xlane.f32.xlu0 %v1082
  %v1142 = vpop.xlane.xlu0 %1141
  %1143 = vadd.xlane.f32.xlu0 %v1083
  %v1144 = vpop.xlane.xlu0 %1143
  %1145 = vadd.xlane.f32.xlu0 %v1084
  %v1146 = vpop.xlane.xlu0 %1145
  %1147 = vadd.xlane.f32.xlu0 %v1085
  %v1148 = vpop.xlane.xlu0 %1147
  %1149 = vadd.xlane.f32.xlu0 %v1086
  %v1150 = vpop.xlane.xlu0 %1149
  %1151 = vadd.xlane.f32.xlu0 %v1087
  %v1152 = vpop.xlane.xlu0 %1151
  %1153 = vadd.xlane.f32.xlu0 %v1088
  %v1154 = vpop.xlane.xlu0 %1153
  %v1155 = vrcp.pop 128.0
  %v1156 = vmul.f32 %v1092, %v1155
  %v1157 = vmul.f32 %v1094, %v1155
  %v1158 = vmul.f32 %v1096, %v1155
  %v1159 = vmul.f32 %v1098, %v1155
  %v1160 = vmul.f32 %v1100, %v1155
  %v1161 = vmul.f32 %v1102, %v1155
  %v1162 = vmul.f32 %v1104, %v1155
  %v1163 = vmul.f32 %v1106, %v1155
  %v1164 = vmul.f32 %v1108, %v1155
  %v1165 = vmul.f32 %v1110, %v1155
  %v1166 = vmul.f32 %v1112, %v1155
  %v1167 = vmul.f32 %v1114, %v1155
  %v1168 = vmul.f32 %v1116, %v1155
  %v1169 = vmul.f32 %v1118, %v1155
  %v1170 = vmul.f32 %v1120, %v1155
  %v1171 = vmul.f32 %v1122, %v1155
  %v1172 = vmul.f32 %v1124, %v1155
  %v1173 = vmul.f32 %v1126, %v1155
  %v1174 = vmul.f32 %v1128, %v1155
  %v1175 = vmul.f32 %v1130, %v1155
  %v1176 = vmul.f32 %v1132, %v1155
  %v1177 = vmul.f32 %v1134, %v1155
  %v1178 = vmul.f32 %v1136, %v1155
  %v1179 = vmul.f32 %v1138, %v1155
  %v1180 = vmul.f32 %v1140, %v1155
  %v1181 = vmul.f32 %v1142, %v1155
  %v1182 = vmul.f32 %v1144, %v1155
  %v1183 = vmul.f32 %v1146, %v1155
  %v1184 = vmul.f32 %v1148, %v1155
  %v1185 = vmul.f32 %v1150, %v1155
  %v1186 = vmul.f32 %v1152, %v1155
  %v1187 = vmul.f32 %v1154, %v1155
  %v1188 = vsub.f32 %v1057, %v1156
  %v1189 = vsub.f32 %v1058, %v1157
  %v1190 = vsub.f32 %v1059, %v1158
  %v1191 = vsub.f32 %v1060, %v1159
  %v1192 = vsub.f32 %v1061, %v1160
  %v1193 = vsub.f32 %v1062, %v1161
  %v1194 = vsub.f32 %v1063, %v1162
  %v1195 = vsub.f32 %v1064, %v1163
  %v1196 = vsub.f32 %v1065, %v1164
  %v1197 = vsub.f32 %v1066, %v1165
  %v1198 = vsub.f32 %v1067, %v1166
  %v1199 = vsub.f32 %v1068, %v1167
  %v1200 = vsub.f32 %v1069, %v1168
  %v1201 = vsub.f32 %v1070, %v1169
  %v1202 = vsub.f32 %v1071, %v1170
  %v1203 = vsub.f32 %v1072, %v1171
  %v1204 = vsub.f32 %v1073, %v1172
  %v1205 = vsub.f32 %v1074, %v1173
  %v1206 = vsub.f32 %v1075, %v1174
  %v1207 = vsub.f32 %v1076, %v1175
  %v1208 = vsub.f32 %v1077, %v1176
  %v1209 = vsub.f32 %v1078, %v1177
  %v1210 = vsub.f32 %v1079, %v1178
  %v1211 = vsub.f32 %v1080, %v1179
  %v1212 = vsub.f32 %v1081, %v1180
  %v1213 = vsub.f32 %v1082, %v1181
  %v1214 = vsub.f32 %v1083, %v1182
  %v1215 = vsub.f32 %v1084, %v1183
  %v1216 = vsub.f32 %v1085, %v1184
  %v1217 = vsub.f32 %v1086, %v1185
  %v1218 = vsub.f32 %v1087, %v1186
  %v1219 = vsub.f32 %v1088, %v1187
  %v1220 = vmul.f32 %v1188, %v1188
  %v1221 = vmul.f32 %v1189, %v1189
  %v1222 = vmul.f32 %v1190, %v1190
  %v1223 = vmul.f32 %v1191, %v1191
  %v1224 = vmul.f32 %v1192, %v1192
  %v1225 = vmul.f32 %v1193, %v1193
  %v1226 = vmul.f32 %v1194, %v1194
  %v1227 = vmul.f32 %v1195, %v1195
  %v1228 = vmul.f32 %v1196, %v1196
  %v1229 = vmul.f32 %v1197, %v1197
  %v1230 = vmul.f32 %v1198, %v1198
  %v1231 = vmul.f32 %v1199, %v1199
  %v1232 = vmul.f32 %v1200, %v1200
  %v1233 = vmul.f32 %v1201, %v1201
  %v1234 = vmul.f32 %v1202, %v1202
  %v1235 = vmul.f32 %v1203, %v1203
  %v1236 = vmul.f32 %v1204, %v1204
  %v1237 = vmul.f32 %v1205, %v1205
  %v1238 = vmul.f32 %v1206, %v1206
  %v1239 = vmul.f32 %v1207, %v1207
  %v1240 = vmul.f32 %v1208, %v1208
  %v1241 = vmul.f32 %v1209, %v1209
  %v1242 = vmul.f32 %v1210, %v1210
  %v1243 = vmul.f32 %v1211, %v1211
  %v1244 = vmul.f32 %v1212, %v1212
  %v1245 = vmul.f32 %v1213, %v1213
  %v1246 = vmul.f32 %v1214, %v1214
  %v1247 = vmul.f32 %v1215, %v1215
  %v1248 = vmul.f32 %v1216, %v1216
  %v1249 = vmul.f32 %v1217, %v1217
  %v1250 = vmul.f32 %v1218, %v1218
  %v1251 = vmul.f32 %v1219, %v1219
  %1252 = vadd.xlane.f32.xlu0 %v1220
  %v1253 = vpop.xlane.xlu0 %1252
  %1254 = vadd.xlane.f32.xlu0 %v1221
  %v1255 = vpop.xlane.xlu0 %1254
  %1256 = vadd.xlane.f32.xlu0 %v1222
  %v1257 = vpop.xlane.xlu0 %1256
  %1258 = vadd.xlane.f32.xlu0 %v1223
  %v1259 = vpop.xlane.xlu0 %1258
  %1260 = vadd.xlane.f32.xlu0 %v1224
  %v1261 = vpop.xlane.xlu0 %1260
  %1262 = vadd.xlane.f32.xlu0 %v1225
  %v1263 = vpop.xlane.xlu0 %1262
  %1264 = vadd.xlane.f32.xlu0 %v1226
  %v1265 = vpop.xlane.xlu0 %1264
  %1266 = vadd.xlane.f32.xlu0 %v1227
  %v1267 = vpop.xlane.xlu0 %1266
  %1268 = vadd.xlane.f32.xlu0 %v1228
  %v1269 = vpop.xlane.xlu0 %1268
  %1270 = vadd.xlane.f32.xlu0 %v1229
  %v1271 = vpop.xlane.xlu0 %1270
  %1272 = vadd.xlane.f32.xlu0 %v1230
  %v1273 = vpop.xlane.xlu0 %1272
  %1274 = vadd.xlane.f32.xlu0 %v1231
  %v1275 = vpop.xlane.xlu0 %1274
  %1276 = vadd.xlane.f32.xlu0 %v1232
  %v1277 = vpop.xlane.xlu0 %1276
  %1278 = vadd.xlane.f32.xlu0 %v1233
  %v1279 = vpop.xlane.xlu0 %1278
  %1280 = vadd.xlane.f32.xlu0 %v1234
  %v1281 = vpop.xlane.xlu0 %1280
  %1282 = vadd.xlane.f32.xlu0 %v1235
  %v1283 = vpop.xlane.xlu0 %1282
  %1284 = vadd.xlane.f32.xlu0 %v1236
  %v1285 = vpop.xlane.xlu0 %1284
  %1286 = vadd.xlane.f32.xlu0 %v1237
  %v1287 = vpop.xlane.xlu0 %1286
  %1288 = vadd.xlane.f32.xlu0 %v1238
  %v1289 = vpop.xlane.xlu0 %1288
  %1290 = vadd.xlane.f32.xlu0 %v1239
  %v1291 = vpop.xlane.xlu0 %1290
  %1292 = vadd.xlane.f32.xlu0 %v1240
  %v1293 = vpop.xlane.xlu0 %1292
  %1294 = vadd.xlane.f32.xlu0 %v1241
  %v1295 = vpop.xlane.xlu0 %1294
  %1296 = vadd.xlane.f32.xlu0 %v1242
  %v1297 = vpop.xlane.xlu0 %1296
  %1298 = vadd.xlane.f32.xlu0 %v1243
  %v1299 = vpop.xlane.xlu0 %1298
  %1300 = vadd.xlane.f32.xlu0 %v1244
  %v1301 = vpop.xlane.xlu0 %1300
  %1302 = vadd.xlane.f32.xlu0 %v1245
  %v1303 = vpop.xlane.xlu0 %1302
  %1304 = vadd.xlane.f32.xlu0 %v1246
  %v1305 = vpop.xlane.xlu0 %1304
  %1306 = vadd.xlane.f32.xlu0 %v1247
  %v1307 = vpop.xlane.xlu0 %1306
  %1308 = vadd.xlane.f32.xlu0 %v1248
  %v1309 = vpop.xlane.xlu0 %1308
  %1310 = vadd.xlane.f32.xlu0 %v1249
  %v1311 = vpop.xlane.xlu0 %1310
  %1312 = vadd.xlane.f32.xlu0 %v1250
  %v1313 = vpop.xlane.xlu0 %1312
  %1314 = vadd.xlane.f32.xlu0 %v1251
  %v1315 = vpop.xlane.xlu0 %1314
  %v1316 = vmul.f32 %v1253, %v1155
  %v1317 = vmul.f32 %v1255, %v1155
  %v1318 = vmul.f32 %v1257, %v1155
  %v1319 = vmul.f32 %v1259, %v1155
  %v1320 = vmul.f32 %v1261, %v1155
  %v1321 = vmul.f32 %v1263, %v1155
  %v1322 = vmul.f32 %v1265, %v1155
  %v1323 = vmul.f32 %v1267, %v1155
  %v1324 = vmul.f32 %v1269, %v1155
  %v1325 = vmul.f32 %v1271, %v1155
  %v1326 = vmul.f32 %v1273, %v1155
  %v1327 = vmul.f32 %v1275, %v1155
  %v1328 = vmul.f32 %v1277, %v1155
  %v1329 = vmul.f32 %v1279, %v1155
  %v1330 = vmul.f32 %v1281, %v1155
  %v1331 = vmul.f32 %v1283, %v1155
  %v1332 = vmul.f32 %v1285, %v1155
  %v1333 = vmul.f32 %v1287, %v1155
  %v1334 = vmul.f32 %v1289, %v1155
  %v1335 = vmul.f32 %v1291, %v1155
  %v1336 = vmul.f32 %v1293, %v1155
  %v1337 = vmul.f32 %v1295, %v1155
  %v1338 = vmul.f32 %v1297, %v1155
  %v1339 = vmul.f32 %v1299, %v1155
  %v1340 = vmul.f32 %v1301, %v1155
  %v1341 = vmul.f32 %v1303, %v1155
  %v1342 = vmul.f32 %v1305, %v1155
  %v1343 = vmul.f32 %v1307, %v1155
  %v1344 = vmul.f32 %v1309, %v1155
  %v1345 = vmul.f32 %v1311, %v1155
  %v1346 = vmul.f32 %v1313, %v1155
  %v1347 = vmul.f32 %v1315, %v1155
  %v1348 = vadd.f32 %v1316, 1e-12
  %v1349 = vadd.f32 %v1317, 1e-12
  %v1350 = vadd.f32 %v1318, 1e-12
  %v1351 = vadd.f32 %v1319, 1e-12
  %v1352 = vadd.f32 %v1320, 1e-12
  %v1353 = vadd.f32 %v1321, 1e-12
  %v1354 = vadd.f32 %v1322, 1e-12
  %v1355 = vadd.f32 %v1323, 1e-12
  %v1356 = vadd.f32 %v1324, 1e-12
  %v1357 = vadd.f32 %v1325, 1e-12
  %v1358 = vadd.f32 %v1326, 1e-12
  %v1359 = vadd.f32 %v1327, 1e-12
  %v1360 = vadd.f32 %v1328, 1e-12
  %v1361 = vadd.f32 %v1329, 1e-12
  %v1362 = vadd.f32 %v1330, 1e-12
  %v1363 = vadd.f32 %v1331, 1e-12
  %v1364 = vadd.f32 %v1332, 1e-12
  %v1365 = vadd.f32 %v1333, 1e-12
  %v1366 = vadd.f32 %v1334, 1e-12
  %v1367 = vadd.f32 %v1335, 1e-12
  %v1368 = vadd.f32 %v1336, 1e-12
  %v1369 = vadd.f32 %v1337, 1e-12
  %v1370 = vadd.f32 %v1338, 1e-12
  %v1371 = vadd.f32 %v1339, 1e-12
  %v1372 = vadd.f32 %v1340, 1e-12
  %v1373 = vadd.f32 %v1341, 1e-12
  %v1374 = vadd.f32 %v1342, 1e-12
  %v1375 = vadd.f32 %v1343, 1e-12
  %v1376 = vadd.f32 %v1344, 1e-12
  %v1377 = vadd.f32 %v1345, 1e-12
  %v1378 = vadd.f32 %v1346, 1e-12
  %v1379 = vadd.f32 %v1347, 1e-12
  %v1380 = vrsqrt.pop %v1348
  %v1381 = vrsqrt.pop %v1349
  %v1382 = vrsqrt.pop %v1350
  %v1383 = vrsqrt.pop %v1351
  %v1384 = vrsqrt.pop %v1352
  %v1385 = vrsqrt.pop %v1353
  %v1386 = vrsqrt.pop %v1354
  %v1387 = vrsqrt.pop %v1355
  %v1388 = vrsqrt.pop %v1356
  %v1389 = vrsqrt.pop %v1357
  %v1390 = vrsqrt.pop %v1358
  %v1391 = vrsqrt.pop %v1359
  %v1392 = vrsqrt.pop %v1360
  %v1393 = vrsqrt.pop %v1361
  %v1394 = vrsqrt.pop %v1362
  %v1395 = vrsqrt.pop %v1363
  %v1396 = vrsqrt.pop %v1364
  %v1397 = vrsqrt.pop %v1365
  %v1398 = vrsqrt.pop %v1366
  %v1399 = vrsqrt.pop %v1367
  %v1400 = vrsqrt.pop %v1368
  %v1401 = vrsqrt.pop %v1369
  %v1402 = vrsqrt.pop %v1370
  %v1403 = vrsqrt.pop %v1371
  %v1404 = vrsqrt.pop %v1372
  %v1405 = vrsqrt.pop %v1373
  %v1406 = vrsqrt.pop %v1374
  %v1407 = vrsqrt.pop %v1375
  %v1408 = vrsqrt.pop %v1376
  %v1409 = vrsqrt.pop %v1377
  %v1410 = vrsqrt.pop %v1378
  %v1411 = vrsqrt.pop %v1379
  %v1412 = vmul.f32 %v1188, %v1380
  %v1413 = vmul.f32 %v1189, %v1381
  %v1414 = vmul.f32 %v1190, %v1382
  %v1415 = vmul.f32 %v1191, %v1383
  %v1416 = vmul.f32 %v1192, %v1384
  %v1417 = vmul.f32 %v1193, %v1385
  %v1418 = vmul.f32 %v1194, %v1386
  %v1419 = vmul.f32 %v1195, %v1387
  %v1420 = vmul.f32 %v1196, %v1388
  %v1421 = vmul.f32 %v1197, %v1389
  %v1422 = vmul.f32 %v1198, %v1390
  %v1423 = vmul.f32 %v1199, %v1391
  %v1424 = vmul.f32 %v1200, %v1392
  %v1425 = vmul.f32 %v1201, %v1393
  %v1426 = vmul.f32 %v1202, %v1394
  %v1427 = vmul.f32 %v1203, %v1395
  %v1428 = vmul.f32 %v1204, %v1396
  %v1429 = vmul.f32 %v1205, %v1397
  %v1430 = vmul.f32 %v1206, %v1398
  %v1431 = vmul.f32 %v1207, %v1399
  %v1432 = vmul.f32 %v1208, %v1400
  %v1433 = vmul.f32 %v1209, %v1401
  %v1434 = vmul.f32 %v1210, %v1402
  %v1435 = vmul.f32 %v1211, %v1403
  %v1436 = vmul.f32 %v1212, %v1404
  %v1437 = vmul.f32 %v1213, %v1405
  %v1438 = vmul.f32 %v1214, %v1406
  %v1439 = vmul.f32 %v1215, %v1407
  %v1440 = vmul.f32 %v1216, %v1408
  %v1441 = vmul.f32 %v1217, %v1409
  %v1442 = vmul.f32 %v1218, %v1410
  %v1443 = vmul.f32 %v1219, %v1411
  %v1445 = vlaneseq
  %v1446 = vshrl.u32 %v1445, 7
  %v1447 = vsub.s32 0, %v1446
  %v1448 = vrot.slane %v1089, %v1447
  %v1450 = vmul.f32 %v1412, %v1448
  %v1451 = vmul.f32 %v1413, %v1448
  %v1452 = vmul.f32 %v1414, %v1448
  %v1453 = vmul.f32 %v1415, %v1448
  %v1454 = vmul.f32 %v1416, %v1448
  %v1455 = vmul.f32 %v1417, %v1448
  %v1456 = vmul.f32 %v1418, %v1448
  %v1457 = vmul.f32 %v1419, %v1448
  %v1458 = vmul.f32 %v1420, %v1448
  %v1459 = vmul.f32 %v1421, %v1448
  %v1460 = vmul.f32 %v1422, %v1448
  %v1461 = vmul.f32 %v1423, %v1448
  %v1462 = vmul.f32 %v1424, %v1448
  %v1463 = vmul.f32 %v1425, %v1448
  %v1464 = vmul.f32 %v1426, %v1448
  %v1465 = vmul.f32 %v1427, %v1448
  %v1466 = vmul.f32 %v1428, %v1448
  %v1467 = vmul.f32 %v1429, %v1448
  %v1468 = vmul.f32 %v1430, %v1448
  %v1469 = vmul.f32 %v1431, %v1448
  %v1470 = vmul.f32 %v1432, %v1448
  %v1471 = vmul.f32 %v1433, %v1448
  %v1472 = vmul.f32 %v1434, %v1448
  %v1473 = vmul.f32 %v1435, %v1448
  %v1474 = vmul.f32 %v1436, %v1448
  %v1475 = vmul.f32 %v1437, %v1448
  %v1476 = vmul.f32 %v1438, %v1448
  %v1477 = vmul.f32 %v1439, %v1448
  %v1478 = vmul.f32 %v1440, %v1448
  %v1479 = vmul.f32 %v1441, %v1448
  %v1480 = vmul.f32 %v1442, %v1448
  %v1481 = vmul.f32 %v1443, %v1448
  %v1483 = vlaneseq
  %v1484 = vshrl.u32 %v1483, 7
  %v1485 = vsub.s32 0, %v1484
  %v1486 = vrot.slane %v1090, %v1485
  %v1488 = vadd.f32 %v1450, %v1486
  %v1489 = vadd.f32 %v1451, %v1486
  %v1490 = vadd.f32 %v1452, %v1486
  %v1491 = vadd.f32 %v1453, %v1486
  %v1492 = vadd.f32 %v1454, %v1486
  %v1493 = vadd.f32 %v1455, %v1486
  %v1494 = vadd.f32 %v1456, %v1486
  %v1495 = vadd.f32 %v1457, %v1486
  %v1496 = vadd.f32 %v1458, %v1486
  %v1497 = vadd.f32 %v1459, %v1486
  %v1498 = vadd.f32 %v1460, %v1486
  %v1499 = vadd.f32 %v1461, %v1486
  %v1500 = vadd.f32 %v1462, %v1486
  %v1501 = vadd.f32 %v1463, %v1486
  %v1502 = vadd.f32 %v1464, %v1486
  %v1503 = vadd.f32 %v1465, %v1486
  %v1504 = vadd.f32 %v1466, %v1486
  %v1505 = vadd.f32 %v1467, %v1486
  %v1506 = vadd.f32 %v1468, %v1486
  %v1507 = vadd.f32 %v1469, %v1486
  %v1508 = vadd.f32 %v1470, %v1486
  %v1509 = vadd.f32 %v1471, %v1486
  %v1510 = vadd.f32 %v1472, %v1486
  %v1511 = vadd.f32 %v1473, %v1486
  %v1512 = vadd.f32 %v1474, %v1486
  %v1513 = vadd.f32 %v1475, %v1486
  %v1514 = vadd.f32 %v1476, %v1486
  %v1515 = vadd.f32 %v1477, %v1486
  %v1516 = vadd.f32 %v1478, %v1486
  %v1517 = vadd.f32 %v1479, %v1486
  %v1518 = vadd.f32 %v1480, %v1486
  %v1519 = vadd.f32 %v1481, %v1486
  %v1520 = vpack.c.bf16 %v1489, %v1488
  %v1521 = vpack.c.bf16 %v1491, %v1490
  %v1522 = vpack.c.bf16 %v1493, %v1492
  %v1523 = vpack.c.bf16 %v1495, %v1494
  %v1524 = vpack.c.bf16 %v1497, %v1496
  %v1525 = vpack.c.bf16 %v1499, %v1498
  %v1526 = vpack.c.bf16 %v1501, %v1500
  %v1527 = vpack.c.bf16 %v1503, %v1502
  %v1528 = vpack.c.bf16 %v1505, %v1504
  %v1529 = vpack.c.bf16 %v1507, %v1506
  %v1530 = vpack.c.bf16 %v1509, %v1508
  %v1531 = vpack.c.bf16 %v1511, %v1510
  %v1532 = vpack.c.bf16 %v1513, %v1512
  %v1533 = vpack.c.bf16 %v1515, %v1514
  %v1534 = vpack.c.bf16 %v1517, %v1516
  %v1535 = vpack.c.bf16 %v1519, %v1518
  %v1552 = vunpack.c.l.b16 %v1520
  %v1553 = vunpack.c.h.b16 %v1520
  %v1554 = vunpack.c.l.b16 %v1521
  %v1555 = vunpack.c.h.b16 %v1521
  %v1556 = vunpack.c.l.b16 %v1522
  %v1557 = vunpack.c.h.b16 %v1522
  %v1558 = vunpack.c.l.b16 %v1523
  %v1559 = vunpack.c.h.b16 %v1523
  %v1560 = vunpack.c.l.b16 %v1524
  %v1561 = vunpack.c.h.b16 %v1524
  %v1562 = vunpack.c.l.b16 %v1525
  %v1563 = vunpack.c.h.b16 %v1525
  %v1564 = vunpack.c.l.b16 %v1526
  %v1565 = vunpack.c.h.b16 %v1526
  %v1566 = vunpack.c.l.b16 %v1527
  %v1567 = vunpack.c.h.b16 %v1527
  %v1568 = vunpack.c.l.b16 %v1528
  %v1569 = vunpack.c.h.b16 %v1528
  %v1570 = vunpack.c.l.b16 %v1529
  %v1571 = vunpack.c.h.b16 %v1529
  %v1572 = vunpack.c.l.b16 %v1530
  %v1573 = vunpack.c.h.b16 %v1530
  %v1574 = vunpack.c.l.b16 %v1531
  %v1575 = vunpack.c.h.b16 %v1531
  %v1576 = vunpack.c.l.b16 %v1532
  %v1577 = vunpack.c.h.b16 %v1532
  %v1578 = vunpack.c.l.b16 %v1533
  %v1579 = vunpack.c.h.b16 %v1533
  %v1580 = vunpack.c.l.b16 %v1534
  %v1581 = vunpack.c.h.b16 %v1534
  %v1582 = vunpack.c.l.b16 %v1535
  %v1583 = vunpack.c.h.b16 %v1535
  %v1584 = vpack.c.b16 %v1552, %v1552
  %v1585 = vpack.c.b16 %v1553, %v1553
  %v1586 = vpack.c.b16 %v1554, %v1554
  %v1587 = vpack.c.b16 %v1555, %v1555
  %v1588 = vpack.c.b16 %v1556, %v1556
  %v1589 = vpack.c.b16 %v1557, %v1557
  %v1590 = vpack.c.b16 %v1558, %v1558
  %v1591 = vpack.c.b16 %v1559, %v1559
  %v1592 = vpack.c.b16 %v1560, %v1560
  %v1593 = vpack.c.b16 %v1561, %v1561
  %v1594 = vpack.c.b16 %v1562, %v1562
  %v1595 = vpack.c.b16 %v1563, %v1563
  %v1596 = vpack.c.b16 %v1564, %v1564
  %v1597 = vpack.c.b16 %v1565, %v1565
  %v1598 = vpack.c.b16 %v1566, %v1566
  %v1599 = vpack.c.b16 %v1567, %v1567
  %v1600 = vpack.c.b16 %v1568, %v1568
  %v1601 = vpack.c.b16 %v1569, %v1569
  %v1602 = vpack.c.b16 %v1570, %v1570
  %v1603 = vpack.c.b16 %v1571, %v1571
  %v1604 = vpack.c.b16 %v1572, %v1572
  %v1605 = vpack.c.b16 %v1573, %v1573
  %v1606 = vpack.c.b16 %v1574, %v1574
  %v1607 = vpack.c.b16 %v1575, %v1575
  %v1608 = vpack.c.b16 %v1576, %v1576
  %v1609 = vpack.c.b16 %v1577, %v1577
  %v1610 = vpack.c.b16 %v1578, %v1578
  %v1611 = vpack.c.b16 %v1579, %v1579
  %v1612 = vpack.c.b16 %v1580, %v1580
  %v1613 = vpack.c.b16 %v1581, %v1581
  %v1614 = vpack.c.b16 %v1582, %v1582
  %v1615 = vpack.c.b16 %v1583, %v1583
  %1648 = vst [vmem:[%s6] sm:$0xf] %v1584
  %1649 = vst [vmem:[%s6 + $0x4] sm:$0xf] %v1585
  %1650 = vst [vmem:[%s6 + $0x8] sm:$0xf] %v1586
  %1651 = vst [vmem:[%s6 + $0xc] sm:$0xf] %v1587
  %1652 = vst [vmem:[%s6 + $0x10] sm:$0xf] %v1588
  %1653 = vst [vmem:[%s6 + $0x14] sm:$0xf] %v1589
  %1654 = vst [vmem:[%s6 + $0x18] sm:$0xf] %v1590
  %1655 = vst [vmem:[%s6 + $0x1c] sm:$0xf] %v1591
  %1656 = vst [vmem:[%s6 + $0x20] sm:$0xf] %v1592
  %1657 = vst [vmem:[%s6 + $0x24] sm:$0xf] %v1593
  %1658 = vst [vmem:[%s6 + $0x28] sm:$0xf] %v1594
  %1659 = vst [vmem:[%s6 + $0x2c] sm:$0xf] %v1595
  %1660 = vst [vmem:[%s6 + $0x30] sm:$0xf] %v1596
  %1661 = vst [vmem:[%s6 + $0x34] sm:$0xf] %v1597
  %1662 = vst [vmem:[%s6 + $0x38] sm:$0xf] %v1598
  %1663 = vst [vmem:[%s6 + $0x3c] sm:$0xf] %v1599
  %1664 = vst [vmem:[%s6 + $0x40] sm:$0xf] %v1600
  %1665 = vst [vmem:[%s6 + $0x44] sm:$0xf] %v1601
  %1666 = vst [vmem:[%s6 + $0x48] sm:$0xf] %v1602
  %1667 = vst [vmem:[%s6 + $0x4c] sm:$0xf] %v1603
  %1668 = vst [vmem:[%s6 + $0x50] sm:$0xf] %v1604
  %1669 = vst [vmem:[%s6 + $0x54] sm:$0xf] %v1605
  %1670 = vst [vmem:[%s6 + $0x58] sm:$0xf] %v1606
  %1671 = vst [vmem:[%s6 + $0x5c] sm:$0xf] %v1607
  %1672 = vst [vmem:[%s6 + $0x60] sm:$0xf] %v1608
  %1673 = vst [vmem:[%s6 + $0x64] sm:$0xf] %v1609
  %1674 = vst [vmem:[%s6 + $0x68] sm:$0xf] %v1610
  %1675 = vst [vmem:[%s6 + $0x6c] sm:$0xf] %v1611
  %1676 = vst [vmem:[%s6 + $0x70] sm:$0xf] %v1612
  %1677 = vst [vmem:[%s6 + $0x74] sm:$0xf] %v1613
  %1678 = vst [vmem:[%s6 + $0x78] sm:$0xf] %v1614
  %1679 = vst [vmem:[%s6 + $0x7c] sm:$0xf] %v1615
  // Predicated region
  $region26: #{bert_back_forward.12} parent=0 // pred_check
    _
  $region27: #{bert_back_forward.12} parent=0 // pred_check_branch
    %1681 = sbr.rel (0) target = $region29
  $region28: #{bert_back_forward.12} parent=0 // pred_region
    _
  $region29: #{bert_back_forward.12} parent=0 // pred_fallthru
    _
  // Predicated region
  $region30: #{bert_back_forward.12} parent=0 // pred_check
    _
  $region31: #{bert_back_forward.12} parent=0 // pred_check_branch
    %1683 = sbr.rel (0) target = $region33
  $region32: #{bert_back_forward.12} parent=0 // pred_region
    _
  $region33: #{bert_back_forward.12} parent=0 // pred_fallthru
    _

</llo_original>
